<compile_context>
chip_gen: v5e
topology: v5e:2x2
jax: 0.10.0
libtpu: 0.0.40
codegen_flags: <defaults>
</compile_context>

<pallas_src>
import functools

import jax
import jax.numpy as jnp
from jax.experimental import pallas as pl
from jax.experimental.pallas import tpu as pltpu

NEG_SLOPE = 0.2
BN_EPS = 1e-5


# -----------------------------------------------------------------------------
# Pallas kernels
# -----------------------------------------------------------------------------
def _conv3d_kernel(x_ref, w_ref, scale_ref, shift_ref, out_ref, stats_ref,
                   xpad_ref, *, D, H, W, Cin, Cout, apply_act, stride2_dh):
    """3x3x3 'same' conv for one batch element, single K=27*Cin MXU dot.

    x_ref:     (1, D, H, W, Cin) f32       unpadded raw input block
    w_ref:     (27*Cin, Cout)    bf16      (kd,kh,kw,ci)-flattened weights
    scale/shift_ref: (1, Cin)    f32       folded BN affine of previous layer
    out_ref:   (1, M, Cout)      f32       conv output, flattened spatial
    stats_ref: (1, 2, Cout)      f32       per-step [sum, sum_sq]
    xpad_ref:  (D+2, H+2, W+2, Cin) bf16   VMEM scratch, zero halo built here

    stride2_dh=True computes output only at even D/H positions (downsample
    conv); W stays stride-1 (subsampled wrapper-side), M = (D/2)*(H/2)*W.
    """
    Dp, Hp, Wp = D + 2, H + 2, W + 2
    x = x_ref[0]  # (D, H, W, Cin) f32

    if apply_act:
        # Previous layer's BN-affine + LeakyReLU fused into this conv's input
        # path.  Applied to the interior only -> the halo stays exactly zero,
        # no re-zero mask needed.
        scale = scale_ref[...].reshape(1, 1, 1, Cin)
        shift = shift_ref[...].reshape(1, 1, 1, Cin)
        y = x * scale + shift
        x = jnp.where(y >= 0, y, NEG_SLOPE * y)

    xb = x.astype(jnp.bfloat16)  # bf16 in / f32 accumulate = native MXU mode

    # In-kernel zero padding: zero only the six halo faces, then write interior.
    xpad_ref[0:1, :, :, :] = jnp.zeros((1, Hp, Wp, Cin), jnp.bfloat16)
    xpad_ref[Dp - 1:Dp, :, :, :] = jnp.zeros((1, Hp, Wp, Cin), jnp.bfloat16)
    xpad_ref[:, 0:1, :, :] = jnp.zeros((Dp, 1, Wp, Cin), jnp.bfloat16)
    xpad_ref[:, Hp - 1:Hp, :, :] = jnp.zeros((Dp, 1, Wp, Cin), jnp.bfloat16)
    xpad_ref[:, :, 0:1, :] = jnp.zeros((Dp, Hp, 1, Cin), jnp.bfloat16)
    xpad_ref[:, :, Wp - 1:Wp, :] = jnp.zeros((Dp, Hp, 1, Cin), jnp.bfloat16)
    xpad_ref[1:D + 1, 1:H + 1, 1:W + 1, :] = xb

    xp = xpad_ref[...]  # (Dp, Hp, Wp, Cin) bf16

    if stride2_dh:
        # Stride-2 along D and H via a layout-free leading-dim pair regroup:
        # padded index 2*o + k  ->  (pair q = o + k//2, parity r = k % 2).
        Do, Ho = D // 2, H // 2
        x6 = xp.reshape(Dp // 2, 2, Hp // 2, 2, Wp, Cin)
        taps = [x6[kd // 2:kd // 2 + Do, kd % 2,
                   kh // 2:kh // 2 + Ho, kh % 2,
                   kw:kw + W, :]
                for kd in range(3) for kh in range(3) for kw in range(3)]
        M = Do * Ho * W
    else:
        taps = [xp[kd:kd + D, kh:kh + H, kw:kw + W, :]
                for kd in range(3) for kh in range(3) for kw in range(3)]
        M = D * H * W

    patch = jnp.concatenate(taps, axis=-1)            # (..., 27*Cin)
    acc = jnp.dot(patch.reshape(M, 27 * Cin), w_ref[...],
                  preferred_element_type=jnp.float32)  # single MXU contraction

    out_ref[0] = acc
    s1 = jnp.sum(acc, axis=0, keepdims=True)           # (1, Cout)
    s2 = jnp.sum(acc * acc, axis=0, keepdims=True)     # (1, Cout)
    stats_ref[0] = jnp.concatenate([s1, s2], axis=0)   # (2, Cout)


def _bn_lrelu_kernel(x_ref, scale_ref, shift_ref, o_ref):
    """Row-tiled fused per-channel affine (folded BatchNorm) + LeakyReLU."""
    y = x_ref[...] * scale_ref[...] + shift_ref[...]
    o_ref[...] = jnp.where(y >= 0, y, NEG_SLOPE * y)


# -----------------------------------------------------------------------------
# pallas_call wrappers
# -----------------------------------------------------------------------------
def conv3d_pallas(x, w, *, scale=None, shift=None, apply_act=False,
                  stride2_dh=False):
    """x: (N, D, H, W, Cin) f32 raw (pre-activation) input; w: (3,3,3,Cin,Cout).
    Returns (y_flat (N, M, Cout) f32, stats (N, 2, Cout) f32)."""
    N, D, H, W, Cin = x.shape
    Cout = w.shape[-1]
    if stride2_dh:
        assert D % 2 == 0 and H % 2 == 0
        M = (D // 2) * (H // 2) * W
    else:
        M = D * H * W

    wf = w.reshape(27 * Cin, Cout).astype(jnp.bfloat16)

    if scale is None:
        scale = jnp.ones((Cin,), jnp.float32)
        shift = jnp.zeros((Cin,), jnp.float32)
    scale = scale.reshape(1, Cin).astype(jnp.float32)
    shift = shift.reshape(1, Cin).astype(jnp.float32)

    kern = functools.partial(_conv3d_kernel, D=D, H=H, W=W, Cin=Cin, Cout=Cout,
                             apply_act=apply_act, stride2_dh=stride2_dh)
    out, stats = pl.pallas_call(
        kern,
        grid=(N,),
        in_specs=[
            pl.BlockSpec((1, D, H, W, Cin), lambda n: (n, 0, 0, 0, 0)),
            pl.BlockSpec((27 * Cin, Cout), lambda n: (0, 0)),
            pl.BlockSpec((1, Cin), lambda n: (0, 0)),
            pl.BlockSpec((1, Cin), lambda n: (0, 0)),
        ],
        out_specs=(
            pl.BlockSpec((1, M, Cout), lambda n: (n, 0, 0)),
            pl.BlockSpec((1, 2, Cout), lambda n: (n, 0, 0)),
        ),
        out_shape=(
            jax.ShapeDtypeStruct((N, M, Cout), jnp.float32),
            jax.ShapeDtypeStruct((N, 2, Cout), jnp.float32),
        ),
        scratch_shapes=[pltpu.VMEM((D + 2, H + 2, W + 2, Cin), jnp.bfloat16)],
        compiler_params=pltpu.CompilerParams(
            dimension_semantics=("parallel",),   # per-step stats -> parallel OK
            vmem_limit_bytes=64 * 1024 * 1024),
    )(x, wf, scale, shift)
    return out, stats


def downsample_conv3d_pallas(x, w):
    """Stride-2, pad-1, k-3 conv.  D/H strided in-kernel; W subsampled here."""
    N, D, H, W, Cin = x.shape
    assert W % 2 == 0
    Cout = w.shape[-1]
    y_flat, _ = conv3d_pallas(x, w, apply_act=False, stride2_dh=True)
    y = y_flat.reshape(N, D // 2, H // 2, W, Cout)
    # TODO(synk): remaining 2x -- fold W pairs into lanes inside the kernel so
    # this strided slice (on an already 4x-smaller tensor) disappears too.
    return y[:, :, :, ::2, :]


def bn_lrelu_pallas(y_flat, scale, shift):
    """y_flat: (N, M, C) f32; scale/shift: (C,) folded BN affine.

    Lane-dense layout: when possible the (R, C) elementwise problem is
    reshaped (free, row-major) to (R*C/128, 128) with scale/shift tiled
    128/C times, so stores are full-width instead of masked."""
    N, M, C = y_flat.shape
    total = N * M * C
    if total % 128 == 0 and 128 % C == 0:
        L = 128
        rows = total // L
        rep = L // C
        s2 = jnp.tile(scale.astype(jnp.float32), rep).reshape(1, L)
        b2 = jnp.tile(shift.astype(jnp.float32), rep).reshape(1, L)
    else:  # fallback: per-channel lane layout
        L = C
        rows = N * M
        s2 = scale.reshape(1, C).astype(jnp.float32)
        b2 = shift.reshape(1, C).astype(jnp.float32)
    y2 = y_flat.reshape(rows, L)

    rb = rows
    for cand in (1024, 512, 256, 128, 64, 32, 16, 8):
        if rows % cand == 0:
            rb = cand
            break

    out = pl.pallas_call(
        _bn_lrelu_kernel,
        grid=(rows // rb,),
        in_specs=[
            pl.BlockSpec((rb, L), lambda r: (r, 0)),
            pl.BlockSpec((1, L), lambda r: (0, 0)),
            pl.BlockSpec((1, L), lambda r: (0, 0)),
        ],
        out_specs=pl.BlockSpec((rb, L), lambda r: (r, 0)),
        out_shape=jax.ShapeDtypeStruct((rows, L), jnp.float32),
        compiler_params=pltpu.CompilerParams(
            dimension_semantics=("parallel",),
            vmem_limit_bytes=64 * 1024 * 1024),
    )(y2, s2, b2)
    return out.reshape(N, M, C)


# -----------------------------------------------------------------------------
# Module forward (glue in plain JAX)
# -----------------------------------------------------------------------------
def unet_down_block_forward(x_ncdhw, params, down_sample):
    x = jnp.transpose(x_ncdhw, (0, 2, 3, 4, 1)).astype(jnp.float32)  # -> NDHWC

    if down_sample:
        x = downsample_conv3d_pallas(x, params["w_down"])

    scale = None
    shift = None
    for i in (1, 2, 3):
        # Layer i conv; for i>1 the previous layer's BN+LeakyReLU is fused into
        # this kernel's input path (x holds the *raw* conv output of layer i-1).
        y_flat, stats = conv3d_pallas(x, params[f"w{i}"],
                                      scale=scale, shift=shift,
                                      apply_act=(i > 1))
        N, D, H, W, _ = x.shape
        Cout = params[f"w{i}"].shape[-1]
        n_elems = N * D * H * W
        ssum = jnp.sum(stats[:, 0, :], axis=0)
        ssq = jnp.sum(stats[:, 1, :], axis=0)
        mean = ssum / n_elems
        # Biased (training-mode) batch variance.  max(.,0) guards the
        # E[x^2]-E[x]^2 cancellation at these magnitudes.
        var = jnp.maximum(ssq / n_elems - mean * mean, 0.0)
        scale = params[f"gamma{i}"] / jnp.sqrt(var + BN_EPS)
        shift = params[f"beta{i}"] - mean * scale
        if i < 3:
            x = y_flat.reshape(N, D, H, W, Cout)          # raw (pre-BN) output
        else:
            # Final layer's BN + LeakyReLU has no following conv to fuse into.
            x = bn_lrelu_pallas(y_flat, scale, shift).reshape(N, D, H, W, Cout)

    return jnp.transpose(x, (0, 4, 1, 2, 3))              # back to NCDHW


# -----------------------------------------------------------------------------
# Deterministic parameter init (shapes from the torch module's __init__)
# -----------------------------------------------------------------------------
def init_params(key, cin, cout):
    ks = jax.random.split(key, 7)

    def conv_w(k, ci, co):
        # torch Conv3d weight (co, ci, 3, 3, 3) -> kernel layout (3, 3, 3, ci, co)
        w = jax.random.normal(k, (co, ci, 3, 3, 3), jnp.float32)
        w = w * (1.0 / jnp.sqrt(ci * 27.0))
        return jnp.transpose(w, (2, 3, 4, 1, 0))

    params = {
        "w_down": conv_w(ks[0], cin, cin),
        "w1": conv_w(ks[1], cin, cout),
        "w2": conv_w(ks[2], cout, cout),
        "w3": conv_w(ks[3], cout, cout),
    }
    for i, k in zip((1, 2, 3), ks[4:7]):
        kg, kb = jax.random.split(k)
        params[f"gamma{i}"] = 1.0 + 0.1 * jax.random.normal(kg, (cout,), jnp.float32)
        params[f"beta{i}"] = 0.05 * jax.random.normal(kb, (cout,), jnp.float32)
    return params


# -----------------------------------------------------------------------------
# Pure-JAX reference (matching bf16-input / f32-accumulate conv precision)
# -----------------------------------------------------------------------------
def _ref_conv3d(x, w_oidhw, stride):
    return jax.lax.conv_general_dilated(
        x.astype(jnp.bfloat16), w_oidhw.astype(jnp.bfloat16),
        window_strides=(stride,) * 3, padding=((1, 1),) * 3,
        dimension_numbers=("NCDHW", "OIDHW", "NCDHW"),
        preferred_element_type=jnp.float32)


def _ref_bn_lrelu(y, gamma, beta):
    mean = jnp.mean(y, axis=(0, 2, 3, 4), keepdims=True)
    var = jnp.var(y, axis=(0, 2, 3, 4), keepdims=True)  # biased
    yn = (y - mean) / jnp.sqrt(var + BN_EPS)
    yn = yn * gamma.reshape(1, -1, 1, 1, 1) + beta.reshape(1, -1, 1, 1, 1)
    return jnp.where(yn >= 0, yn, NEG_SLOPE * yn)


def reference_forward(x, params, down_sample):
    def to_oidhw(w):  # (3,3,3,ci,co) -> (co,ci,3,3,3)
        return jnp.transpose(w, (4, 3, 0, 1, 2))

    if down_sample:
        x = _ref_conv3d(x, to_oidhw(params["w_down"]), 2)
    for i in (1, 2, 3):
        y = _ref_conv3d(x, to_oidhw(params[f"w{i}"]), 1)
        x = _ref_bn_lrelu(y, params[f"gamma{i}"], params[f"beta{i}"])
    return x


if __name__ == "__main__":
    key = jax.random.PRNGKey(0)
    k_x, k_p = jax.random.split(key)

    N, Cin, Cout, S = 2, 4, 8, 8            # small synthetic shapes
    x = jax.random.normal(k_x, (N, Cin, S, S, S), jnp.float32)   # NCDHW
    params = init_params(k_p, Cin, Cout)

    for ds in (True, False):
        out = unet_down_block_forward(x, params, down_sample=ds)
        out = jax.block_until_ready(out)
        ref = reference_forward(x, params, down_sample=ds)
        exp_s = S // 2 if ds else S
        assert out.shape == ref.shape == (N, Cout, exp_s, exp_s, exp_s), out.shape
        err = float(jnp.max(jnp.abs(out - ref)))
        if not jnp.allclose(out, ref, rtol=5e-3, atol=5e-3):
            raise AssertionError(
                f"mismatch (down_sample={ds}), max abs err = {err}")

    print("KERNEL_OK")
</pallas_src>

<mosaic_0001>
module attributes {stable_mosaic.version = 11 : i64} {
  func.func @_conv3d_kernel(%arg0: i32, %arg1: memref<1x8x8x8x4xf32, #tpu.memory_space<vmem>>, %arg2: memref<108x4xbf16, #tpu.memory_space<vmem>>, %arg3: memref<1x4xf32, #tpu.memory_space<vmem>>, %arg4: memref<1x4xf32, #tpu.memory_space<vmem>>, %arg5: memref<1x128x4xf32, #tpu.memory_space<vmem>>, %arg6: memref<1x2x4xf32, #tpu.memory_space<vmem>>, %arg7: memref<10x10x10x4xbf16, #tpu.memory_space<vmem>>) attributes {dimension_semantics = [#tpu.dimension_semantics<parallel>], iteration_bounds = array<i64: 2>, scalar_prefetch = 0 : i64, scratch_operands = 1 : i64, tpu.core_type = #tpu.core_type<tc>, window_params = [{transform_indices = @transform_0, window_bounds = array<i64: 1, 8, 8, 8, 4>}, {pipeline_mode = #tpu.pipeline_mode<synchronous>, transform_indices = @transform_1, window_bounds = array<i64: 108, 4>}, {pipeline_mode = #tpu.pipeline_mode<synchronous>, transform_indices = @transform_2, window_bounds = array<i64: 1, 4>}, {pipeline_mode = #tpu.pipeline_mode<synchronous>, transform_indices = @transform_3, window_bounds = array<i64: 1, 4>}, {transform_indices = @transform_4, window_bounds = array<i64: 1, 128, 4>}, {transform_indices = @transform_5, window_bounds = array<i64: 1, 2, 4>}]} {
    %c0 = arith.constant 0 : index
    %c0_0 = arith.constant 0 : index
    %c0_1 = arith.constant 0 : index
    %c0_2 = arith.constant 0 : index
    %c0_3 = arith.constant 0 : index
    %0 = vector.load %arg1[%c0, %c0_0, %c0_1, %c0_2, %c0_3] : memref<1x8x8x8x4xf32, #tpu.memory_space<vmem>>, vector<1x8x8x8x4xf32>
    %1 = vector.shape_cast %0 : vector<1x8x8x8x4xf32> to vector<8x8x8x4xf32>
    %2 = arith.truncf %1 : vector<8x8x8x4xf32> to vector<8x8x8x4xbf16>
    %cst = arith.constant 0.000000e+00 : bf16
    %3 = vector.broadcast %cst : bf16 to vector<1x10x10x4xbf16>
    %c0_4 = arith.constant 0 : index
    %c0_5 = arith.constant 0 : index
    %c0_6 = arith.constant 0 : index
    %c0_7 = arith.constant 0 : index
    %4 = vector.load %arg7[%c0_4, %c0_5, %c0_6, %c0_7] : memref<10x10x10x4xbf16, #tpu.memory_space<vmem>>, vector<1x10x10x4xbf16>
    tpu.vector_store %arg7[%c0_4, %c0_5, %c0_6, %c0_7], %3 {strides = array<i32>} : memref<10x10x10x4xbf16, #tpu.memory_space<vmem>>, vector<1x10x10x4xbf16>,
    %cst_8 = arith.constant 0.000000e+00 : bf16
    %5 = vector.broadcast %cst_8 : bf16 to vector<1x10x10x4xbf16>
    %c9 = arith.constant 9 : index
    %c0_9 = arith.constant 0 : index
    %c0_10 = arith.constant 0 : index
    %c0_11 = arith.constant 0 : index
    %6 = vector.load %arg7[%c9, %c0_9, %c0_10, %c0_11] : memref<10x10x10x4xbf16, #tpu.memory_space<vmem>>, vector<1x10x10x4xbf16>
    tpu.vector_store %arg7[%c9, %c0_9, %c0_10, %c0_11], %5 {strides = array<i32>} : memref<10x10x10x4xbf16, #tpu.memory_space<vmem>>, vector<1x10x10x4xbf16>,
    %cst_12 = arith.constant 0.000000e+00 : bf16
    %7 = vector.broadcast %cst_12 : bf16 to vector<10x1x10x4xbf16>
    %c0_13 = arith.constant 0 : index
    %c0_14 = arith.constant 0 : index
    %c0_15 = arith.constant 0 : index
    %c0_16 = arith.constant 0 : index
    %8 = vector.load %arg7[%c0_13, %c0_14, %c0_15, %c0_16] : memref<10x10x10x4xbf16, #tpu.memory_space<vmem>>, vector<10x1x10x4xbf16>
    tpu.vector_store %arg7[%c0_13, %c0_14, %c0_15, %c0_16], %7 {strides = array<i32>} : memref<10x10x10x4xbf16, #tpu.memory_space<vmem>>, vector<10x1x10x4xbf16>,
    %cst_17 = arith.constant 0.000000e+00 : bf16
    %9 = vector.broadcast %cst_17 : bf16 to vector<10x1x10x4xbf16>
    %c0_18 = arith.constant 0 : index
    %c9_19 = arith.constant 9 : index
    %c0_20 = arith.constant 0 : index
    %c0_21 = arith.constant 0 : index
    %10 = vector.load %arg7[%c0_18, %c9_19, %c0_20, %c0_21] : memref<10x10x10x4xbf16, #tpu.memory_space<vmem>>, vector<10x1x10x4xbf16>
    tpu.vector_store %arg7[%c0_18, %c9_19, %c0_20, %c0_21], %9 {strides = array<i32>} : memref<10x10x10x4xbf16, #tpu.memory_space<vmem>>, vector<10x1x10x4xbf16>,
    %cst_22 = arith.constant 0.000000e+00 : bf16
    %11 = vector.broadcast %cst_22 : bf16 to vector<10x10x1x4xbf16>
    %c0_23 = arith.constant 0 : index
    %c0_24 = arith.constant 0 : index
    %c0_25 = arith.constant 0 : index
    %c0_26 = arith.constant 0 : index
    %12 = vector.load %arg7[%c0_23, %c0_24, %c0_25, %c0_26] : memref<10x10x10x4xbf16, #tpu.memory_space<vmem>>, vector<10x10x1x4xbf16>
    tpu.vector_store %arg7[%c0_23, %c0_24, %c0_25, %c0_26], %11 {strides = array<i32>} : memref<10x10x10x4xbf16, #tpu.memory_space<vmem>>, vector<10x10x1x4xbf16>,
    %cst_27 = arith.constant 0.000000e+00 : bf16
    %13 = vector.broadcast %cst_27 : bf16 to vector<10x10x1x4xbf16>
    %c0_28 = arith.constant 0 : index
    %c0_29 = arith.constant 0 : index
    %c9_30 = arith.constant 9 : index
    %c0_31 = arith.constant 0 : index
    %14 = vector.load %arg7[%c0_28, %c0_29, %c9_30, %c0_31] : memref<10x10x10x4xbf16, #tpu.memory_space<vmem>>, vector<10x10x1x4xbf16>
    tpu.vector_store %arg7[%c0_28, %c0_29, %c9_30, %c0_31], %13 {strides = array<i32>} : memref<10x10x10x4xbf16, #tpu.memory_space<vmem>>, vector<10x10x1x4xbf16>,
    %c1 = arith.constant 1 : index
    %c1_32 = arith.constant 1 : index
    %c1_33 = arith.constant 1 : index
    %c0_34 = arith.constant 0 : index
    %15 = vector.load %arg7[%c1, %c1_32, %c1_33, %c0_34] : memref<10x10x10x4xbf16, #tpu.memory_space<vmem>>, vector<8x8x8x4xbf16>
    tpu.vector_store %arg7[%c1, %c1_32, %c1_33, %c0_34], %2 {strides = array<i32>} : memref<10x10x10x4xbf16, #tpu.memory_space<vmem>>, vector<8x8x8x4xbf16>,
    %c0_35 = arith.constant 0 : index
    %c0_36 = arith.constant 0 : index
    %c0_37 = arith.constant 0 : index
    %c0_38 = arith.constant 0 : index
    %16 = vector.load %arg7[%c0_35, %c0_36, %c0_37, %c0_38] : memref<10x10x10x4xbf16, #tpu.memory_space<vmem>>, vector<10x10x10x4xbf16>
    %17 = vector.shape_cast %16 : vector<10x10x10x4xbf16> to vector<5x2x5x2x10x4xbf16>
    %18 = vector.extract_strided_slice %17 {offsets = [0, 0, 0, 0, 0, 0], sizes = [4, 1, 4, 1, 8, 4], strides = [1, 1, 1, 1, 1, 1]} : vector<5x2x5x2x10x4xbf16> to vector<4x1x4x1x8x4xbf16>
    %19 = vector.shape_cast %18 : vector<4x1x4x1x8x4xbf16> to vector<4x4x8x4xbf16>
    %20 = vector.extract_strided_slice %17 {offsets = [0, 0, 0, 0, 1, 0], sizes = [4, 1, 4, 1, 8, 4], strides = [1, 1, 1, 1, 1, 1]} : vector<5x2x5x2x10x4xbf16> to vector<4x1x4x1x8x4xbf16>
    %21 = vector.shape_cast %20 : vector<4x1x4x1x8x4xbf16> to vector<4x4x8x4xbf16>
    %22 = vector.extract_strided_slice %17 {offsets = [0, 0, 0, 0, 2, 0], sizes = [4, 1, 4, 1, 8, 4], strides = [1, 1, 1, 1, 1, 1]} : vector<5x2x5x2x10x4xbf16> to vector<4x1x4x1x8x4xbf16>
    %23 = vector.shape_cast %22 : vector<4x1x4x1x8x4xbf16> to vector<4x4x8x4xbf16>
    %24 = vector.extract_strided_slice %17 {offsets = [0, 0, 0, 1, 0, 0], sizes = [4, 1, 4, 1, 8, 4], strides = [1, 1, 1, 1, 1, 1]} : vector<5x2x5x2x10x4xbf16> to vector<4x1x4x1x8x4xbf16>
    %25 = vector.shape_cast %24 : vector<4x1x4x1x8x4xbf16> to vector<4x4x8x4xbf16>
    %26 = vector.extract_strided_slice %17 {offsets = [0, 0, 0, 1, 1, 0], sizes = [4, 1, 4, 1, 8, 4], strides = [1, 1, 1, 1, 1, 1]} : vector<5x2x5x2x10x4xbf16> to vector<4x1x4x1x8x4xbf16>
    %27 = vector.shape_cast %26 : vector<4x1x4x1x8x4xbf16> to vector<4x4x8x4xbf16>
    %28 = vector.extract_strided_slice %17 {offsets = [0, 0, 0, 1, 2, 0], sizes = [4, 1, 4, 1, 8, 4], strides = [1, 1, 1, 1, 1, 1]} : vector<5x2x5x2x10x4xbf16> to vector<4x1x4x1x8x4xbf16>
    %29 = vector.shape_cast %28 : vector<4x1x4x1x8x4xbf16> to vector<4x4x8x4xbf16>
    %30 = vector.extract_strided_slice %17 {offsets = [0, 0, 1, 0, 0, 0], sizes = [4, 1, 4, 1, 8, 4], strides = [1, 1, 1, 1, 1, 1]} : vector<5x2x5x2x10x4xbf16> to vector<4x1x4x1x8x4xbf16>
    %31 = vector.shape_cast %30 : vector<4x1x4x1x8x4xbf16> to vector<4x4x8x4xbf16>
    %32 = vector.extract_strided_slice %17 {offsets = [0, 0, 1, 0, 1, 0], sizes = [4, 1, 4, 1, 8, 4], strides = [1, 1, 1, 1, 1, 1]} : vector<5x2x5x2x10x4xbf16> to vector<4x1x4x1x8x4xbf16>
    %33 = vector.shape_cast %32 : vector<4x1x4x1x8x4xbf16> to vector<4x4x8x4xbf16>
    %34 = vector.extract_strided_slice %17 {offsets = [0, 0, 1, 0, 2, 0], sizes = [4, 1, 4, 1, 8, 4], strides = [1, 1, 1, 1, 1, 1]} : vector<5x2x5x2x10x4xbf16> to vector<4x1x4x1x8x4xbf16>
    %35 = vector.shape_cast %34 : vector<4x1x4x1x8x4xbf16> to vector<4x4x8x4xbf16>
    %36 = vector.extract_strided_slice %17 {offsets = [0, 1, 0, 0, 0, 0], sizes = [4, 1, 4, 1, 8, 4], strides = [1, 1, 1, 1, 1, 1]} : vector<5x2x5x2x10x4xbf16> to vector<4x1x4x1x8x4xbf16>
    %37 = vector.shape_cast %36 : vector<4x1x4x1x8x4xbf16> to vector<4x4x8x4xbf16>
    %38 = vector.extract_strided_slice %17 {offsets = [0, 1, 0, 0, 1, 0], sizes = [4, 1, 4, 1, 8, 4], strides = [1, 1, 1, 1, 1, 1]} : vector<5x2x5x2x10x4xbf16> to vector<4x1x4x1x8x4xbf16>
    %39 = vector.shape_cast %38 : vector<4x1x4x1x8x4xbf16> to vector<4x4x8x4xbf16>
    %40 = vector.extract_strided_slice %17 {offsets = [0, 1, 0, 0, 2, 0], sizes = [4, 1, 4, 1, 8, 4], strides = [1, 1, 1, 1, 1, 1]} : vector<5x2x5x2x10x4xbf16> to vector<4x1x4x1x8x4xbf16>
    %41 = vector.shape_cast %40 : vector<4x1x4x1x8x4xbf16> to vector<4x4x8x4xbf16>
    %42 = vector.extract_strided_slice %17 {offsets = [0, 1, 0, 1, 0, 0], sizes = [4, 1, 4, 1, 8, 4], strides = [1, 1, 1, 1, 1, 1]} : vector<5x2x5x2x10x4xbf16> to vector<4x1x4x1x8x4xbf16>
    %43 = vector.shape_cast %42 : vector<4x1x4x1x8x4xbf16> to vector<4x4x8x4xbf16>
    %44 = vector.extract_strided_slice %17 {offsets = [0, 1, 0, 1, 1, 0], sizes = [4, 1, 4, 1, 8, 4], strides = [1, 1, 1, 1, 1, 1]} : vector<5x2x5x2x10x4xbf16> to vector<4x1x4x1x8x4xbf16>
    %45 = vector.shape_cast %44 : vector<4x1x4x1x8x4xbf16> to vector<4x4x8x4xbf16>
    %46 = vector.extract_strided_slice %17 {offsets = [0, 1, 0, 1, 2, 0], sizes = [4, 1, 4, 1, 8, 4], strides = [1, 1, 1, 1, 1, 1]} : vector<5x2x5x2x10x4xbf16> to vector<4x1x4x1x8x4xbf16>
    %47 = vector.shape_cast %46 : vector<4x1x4x1x8x4xbf16> to vector<4x4x8x4xbf16>
    %48 = vector.extract_strided_slice %17 {offsets = [0, 1, 1, 0, 0, 0], sizes = [4, 1, 4, 1, 8, 4], strides = [1, 1, 1, 1, 1, 1]} : vector<5x2x5x2x10x4xbf16> to vector<4x1x4x1x8x4xbf16>
    %49 = vector.shape_cast %48 : vector<4x1x4x1x8x4xbf16> to vector<4x4x8x4xbf16>
    %50 = vector.extract_strided_slice %17 {offsets = [0, 1, 1, 0, 1, 0], sizes = [4, 1, 4, 1, 8, 4], strides = [1, 1, 1, 1, 1, 1]} : vector<5x2x5x2x10x4xbf16> to vector<4x1x4x1x8x4xbf16>
    %51 = vector.shape_cast %50 : vector<4x1x4x1x8x4xbf16> to vector<4x4x8x4xbf16>
    %52 = vector.extract_strided_slice %17 {offsets = [0, 1, 1, 0, 2, 0], sizes = [4, 1, 4, 1, 8, 4], strides = [1, 1, 1, 1, 1, 1]} : vector<5x2x5x2x10x4xbf16> to vector<4x1x4x1x8x4xbf16>
    %53 = vector.shape_cast %52 : vector<4x1x4x1x8x4xbf16> to vector<4x4x8x4xbf16>
    %54 = vector.extract_strided_slice %17 {offsets = [1, 0, 0, 0, 0, 0], sizes = [4, 1, 4, 1, 8, 4], strides = [1, 1, 1, 1, 1, 1]} : vector<5x2x5x2x10x4xbf16> to vector<4x1x4x1x8x4xbf16>
    %55 = vector.shape_cast %54 : vector<4x1x4x1x8x4xbf16> to vector<4x4x8x4xbf16>
    %56 = vector.extract_strided_slice %17 {offsets = [1, 0, 0, 0, 1, 0], sizes = [4, 1, 4, 1, 8, 4], strides = [1, 1, 1, 1, 1, 1]} : vector<5x2x5x2x10x4xbf16> to vector<4x1x4x1x8x4xbf16>
    %57 = vector.shape_cast %56 : vector<4x1x4x1x8x4xbf16> to vector<4x4x8x4xbf16>
    %58 = vector.extract_strided_slice %17 {offsets = [1, 0, 0, 0, 2, 0], sizes = [4, 1, 4, 1, 8, 4], strides = [1, 1, 1, 1, 1, 1]} : vector<5x2x5x2x10x4xbf16> to vector<4x1x4x1x8x4xbf16>
    %59 = vector.shape_cast %58 : vector<4x1x4x1x8x4xbf16> to vector<4x4x8x4xbf16>
    %60 = vector.extract_strided_slice %17 {offsets = [1, 0, 0, 1, 0, 0], sizes = [4, 1, 4, 1, 8, 4], strides = [1, 1, 1, 1, 1, 1]} : vector<5x2x5x2x10x4xbf16> to vector<4x1x4x1x8x4xbf16>
    %61 = vector.shape_cast %60 : vector<4x1x4x1x8x4xbf16> to vector<4x4x8x4xbf16>
    %62 = vector.extract_strided_slice %17 {offsets = [1, 0, 0, 1, 1, 0], sizes = [4, 1, 4, 1, 8, 4], strides = [1, 1, 1, 1, 1, 1]} : vector<5x2x5x2x10x4xbf16> to vector<4x1x4x1x8x4xbf16>
    %63 = vector.shape_cast %62 : vector<4x1x4x1x8x4xbf16> to vector<4x4x8x4xbf16>
    %64 = vector.extract_strided_slice %17 {offsets = [1, 0, 0, 1, 2, 0], sizes = [4, 1, 4, 1, 8, 4], strides = [1, 1, 1, 1, 1, 1]} : vector<5x2x5x2x10x4xbf16> to vector<4x1x4x1x8x4xbf16>
    %65 = vector.shape_cast %64 : vector<4x1x4x1x8x4xbf16> to vector<4x4x8x4xbf16>
    %66 = vector.extract_strided_slice %17 {offsets = [1, 0, 1, 0, 0, 0], sizes = [4, 1, 4, 1, 8, 4], strides = [1, 1, 1, 1, 1, 1]} : vector<5x2x5x2x10x4xbf16> to vector<4x1x4x1x8x4xbf16>
    %67 = vector.shape_cast %66 : vector<4x1x4x1x8x4xbf16> to vector<4x4x8x4xbf16>
    %68 = vector.extract_strided_slice %17 {offsets = [1, 0, 1, 0, 1, 0], sizes = [4, 1, 4, 1, 8, 4], strides = [1, 1, 1, 1, 1, 1]} : vector<5x2x5x2x10x4xbf16> to vector<4x1x4x1x8x4xbf16>
    %69 = vector.shape_cast %68 : vector<4x1x4x1x8x4xbf16> to vector<4x4x8x4xbf16>
    %70 = vector.extract_strided_slice %17 {offsets = [1, 0, 1, 0, 2, 0], sizes = [4, 1, 4, 1, 8, 4], strides = [1, 1, 1, 1, 1, 1]} : vector<5x2x5x2x10x4xbf16> to vector<4x1x4x1x8x4xbf16>
    %71 = vector.shape_cast %70 : vector<4x1x4x1x8x4xbf16> to vector<4x4x8x4xbf16>
    %72 = tpu.concatenate %19, %21, %23, %25, %27, %29, %31, %33, %35, %37, %39, %41, %43, %45, %47, %49 in 3 : vector<4x4x8x4xbf16>, vector<4x4x8x4xbf16>, vector<4x4x8x4xbf16>, vector<4x4x8x4xbf16>, vector<4x4x8x4xbf16>, vector<4x4x8x4xbf16>, vector<4x4x8x4xbf16>, vector<4x4x8x4xbf16>, vector<4x4x8x4xbf16>, vector<4x4x8x4xbf16>, vector<4x4x8x4xbf16>, vector<4x4x8x4xbf16>, vector<4x4x8x4xbf16>, vector<4x4x8x4xbf16>, vector<4x4x8x4xbf16>, vector<4x4x8x4xbf16> -> vector<4x4x8x64xbf16>
    %73 = tpu.concatenate %51, %53, %55, %57, %59, %61, %63, %65, %67, %69, %71 in 3 : vector<4x4x8x4xbf16>, vector<4x4x8x4xbf16>, vector<4x4x8x4xbf16>, vector<4x4x8x4xbf16>, vector<4x4x8x4xbf16>, vector<4x4x8x4xbf16>, vector<4x4x8x4xbf16>, vector<4x4x8x4xbf16>, vector<4x4x8x4xbf16>, vector<4x4x8x4xbf16>, vector<4x4x8x4xbf16> -> vector<4x4x8x44xbf16>
    %74 = tpu.concatenate %72, %73 in 3 : vector<4x4x8x64xbf16>, vector<4x4x8x44xbf16> -> vector<4x4x8x108xbf16>
    %75 = vector.shape_cast %74 : vector<4x4x8x108xbf16> to vector<128x108xbf16>
    %c0_39 = arith.constant 0 : index
    %c0_40 = arith.constant 0 : index
    %76 = vector.load %arg2[%c0_39, %c0_40] : memref<108x4xbf16, #tpu.memory_space<vmem>>, vector<108x4xbf16>
    %cst_41 = arith.constant dense<0.000000e+00> : vector<128x4xf32>
    %77 = tpu.matmul %75, %76, %cst_41 {dimension_numbers = #tpu.dot_dimension_numbers<[1], [0], [0], [1], [0, 0, 1, 1], [], []>} : vector<128x108xbf16>, vector<108x4xbf16>, vector<128x4xf32> -> vector<128x4xf32>
    %c0_42 = arith.constant 0 : index
    %c0_43 = arith.constant 0 : index
    %c0_44 = arith.constant 0 : index
    %78 = vector.load %arg5[%c0_42, %c0_43, %c0_44] : memref<1x128x4xf32, #tpu.memory_space<vmem>>, vector<1x128x4xf32>
    %79 = vector.shape_cast %78 : vector<1x128x4xf32> to vector<128x4xf32>
    %80 = vector.shape_cast %77 : vector<128x4xf32> to vector<1x128x4xf32>
    tpu.vector_store %arg5[%c0_42, %c0_43, %c0_44], %80 {strides = array<i32>} : memref<1x128x4xf32, #tpu.memory_space<vmem>>, vector<1x128x4xf32>,
    %cst_45 = arith.constant dense<0.000000e+00> : vector<4xf32>
    %81 = vector.multi_reduction <add>, %77, %cst_45 [0] : vector<128x4xf32> to vector<4xf32>
    %82 = vector.shape_cast %81 : vector<4xf32> to vector<1x4xf32>
    %83 = arith.mulf %77, %77 : vector<128x4xf32>
    %cst_46 = arith.constant dense<0.000000e+00> : vector<4xf32>
    %84 = vector.multi_reduction <add>, %83, %cst_46 [0] : vector<128x4xf32> to vector<4xf32>
    %85 = vector.shape_cast %84 : vector<4xf32> to vector<1x4xf32>
    %86 = tpu.concatenate %82, %85 in 0 : vector<1x4xf32>, vector<1x4xf32> -> vector<2x4xf32>
    %c0_47 = arith.constant 0 : index
    %c0_48 = arith.constant 0 : index
    %c0_49 = arith.constant 0 : index
    %87 = vector.load %arg6[%c0_47, %c0_48, %c0_49] : memref<1x2x4xf32, #tpu.memory_space<vmem>>, vector<1x2x4xf32>
    %88 = vector.shape_cast %87 : vector<1x2x4xf32> to vector<2x4xf32>
    %89 = vector.shape_cast %86 : vector<2x4xf32> to vector<1x2x4xf32>
    tpu.vector_store %arg6[%c0_47, %c0_48, %c0_49], %89 {strides = array<i32>} : memref<1x2x4xf32, #tpu.memory_space<vmem>>, vector<1x2x4xf32>,
    return
  }
  func.func @transform_0(%arg0: i32) -> (i32, i32, i32, i32, i32) {
    %c0_i32 = arith.constant 0 : i32
    %c0_i32_0 = arith.constant 0 : i32
    %c0_i32_1 = arith.constant 0 : i32
    %c0_i32_2 = arith.constant 0 : i32
    %c0_i32_3 = arith.constant 0 : i32
    return %arg0, %c0_i32, %c0_i32_0, %c0_i32_1, %c0_i32_2 : i32, i32, i32, i32, i32
  }
  func.func @transform_1(%arg0: i32) -> (i32, i32) {
    %c0_i32 = arith.constant 0 : i32
    %c0_i32_0 = arith.constant 0 : i32
    %c0_i32_1 = arith.constant 0 : i32
    return %c0_i32, %c0_i32_0 : i32, i32
  }
  func.func @transform_2(%arg0: i32) -> (i32, i32) {
    %c0_i32 = arith.constant 0 : i32
    %c0_i32_0 = arith.constant 0 : i32
    %c0_i32_1 = arith.constant 0 : i32
    return %c0_i32, %c0_i32_0 : i32, i32
  }
  func.func @transform_3(%arg0: i32) -> (i32, i32) {
    %c0_i32 = arith.constant 0 : i32
    %c0_i32_0 = arith.constant 0 : i32
    %c0_i32_1 = arith.constant 0 : i32
    return %c0_i32, %c0_i32_0 : i32, i32
  }
  func.func @transform_4(%arg0: i32) -> (i32, i32, i32) {
    %c0_i32 = arith.constant 0 : i32
    %c0_i32_0 = arith.constant 0 : i32
    %c0_i32_1 = arith.constant 0 : i32
    return %arg0, %c0_i32, %c0_i32_0 : i32, i32, i32
  }
  func.func @transform_5(%arg0: i32) -> (i32, i32, i32) {
    %c0_i32 = arith.constant 0 : i32
    %c0_i32_0 = arith.constant 0 : i32
    %c0_i32_1 = arith.constant 0 : i32
    return %arg0, %c0_i32, %c0_i32_0 : i32, i32, i32
  }
}

</mosaic_0001>

<llo_original>
// kernel: tpu_custom_call.1
$region0: #{tpu_custom_call.1}
  #allocation0 [shape = 'u32[]', space=smem, size = 0x4, offset = 0x4, fixed_abs, tag = 'smem constant byte address 0x4 - core index']
  #allocation1 [shape = 'u32[72,128]{1,0:T(1,128)}', space=vmem, size = 0x9000, scoped, tag = 'internal scratch']
  #allocation2 [shape = 'bf16[10,10,10,4]{3,2,1,0:T(8,128)(2,1)}', space=vmem, size = 0x64000, scoped, tag = 'scratch operand']
  %s0 = inlined_call_operand.vmem [shape: f32[2,8,8,8,4], index: 0, kind: input, shape index: {}]
  %s1 = inlined_call_operand.vmem [shape: bf16[108,4], index: 1, kind: input, shape index: {}]
  %s2 = inlined_call_operand.vmem [shape: f32[1,4], index: 2, kind: input, shape index: {}]
  %s3 = inlined_call_operand.vmem [shape: f32[1,4], index: 3, kind: input, shape index: {}]
  %s4 = inlined_call_operand.vmem [shape: f32[2,128,4], index: 4, kind: output, shape index: {0}]
  %s5 = inlined_call_operand.hbm [shape: f32[2,2,4], index: 5, kind: output, shape index: {1}]
  %6 = xla_tuple %s4, %s5
  %s7 = sld [smem:[#allocation0]]
  $region57: #{tpu_custom_call.1} parent=0
    _
  %s9 = ssub.s32 1, %s7
  %s10 = scalar_select 0, %s9, %s7
  $region1: #{tpu_custom_call.1} parent=0
    #allocation3 [shape = 'u8[2048]{0}', space=vmem, size = 0x800, scoped, tag = 'output window, operand 1']
    #allocation4 [shape = 's32[2]{0}', space=sflag, size = 0x8, scoped, tag = 'scoped memory for tpu_custom_call.1']
    %11 = vsyncpa [#allocation4], 0
    %s12 = scalar_lea.sflag [#allocation4], 1
    %13 = vsyncpa %s12, 0
    loop: start=0, step=1, limit=4
    $region2: #{tpu_custom_call.1} parent=1 // loop_pre_header
      _
    $region3: #{tpu_custom_call.1} parent=1 // loop_header
      %s15 = sphi 0, %s19
      %p16 = scmp.ge.s32.totalorder %s15, 4
      %s25 = sphi 0, %s27
      %s28 = sphi 0, %s25
      %s29 = sphi 0, %s28
      %s45 = sphi 0, %s29
      %s49 = sphi 0, %s49
      %s51 = sphi 0, %s49
      %s52 = sphi 0, %s51
      %s66 = sphi 0, %s52
      %s70 = sphi 0, %s70
      %s72 = sphi 0, %s70
      %s73 = sphi 0, %s72
      %s87 = sphi 0, %s73
      %s91 = sphi 0, %s91
      %s93 = sphi 0, %s91
      %s94 = sphi 0, %s93
      %s108 = sphi 0, %s94
      %s114 = sphi 0, %s116
      %s117 = sphi 0, %s114
      %s118 = sphi 0, %s117
      %s134 = sphi 0, %s118
      %s140 = sphi 0, %s142
      %s143 = sphi 0, %s140
      %s144 = sphi 0, %s143
      %s160 = sphi 0, %s144
    $region4: #{tpu_custom_call.1} parent=1 // loop_header_branch
      %18 = sbr.rel (%p16) target = $region8
    $region5: #{tpu_custom_call.1} parent=1 // loop_body
      %s20 = ssub.s32 %s15, 1
      %s21 = ssub.s32 %s15, 2
      %s22 = sadd.s32 %s15, 1
      %s23 = ssub.s32 %s15, %s22
      %p24 = scmp.eq.s32.totalorder %s23, 0
      %s26 = sadd.s32 %s25, 1
      %s27 = scalar_select %p24, %s25, %s26
      %p30 = pneg %p24
      %p31 = scmp.eq.s32.totalorder %s15, 1
      %p32 = por %p30, %p31
      %p33 = scmp.ne.s32.totalorder %s25, %s28
      %p34 = scmp.eq.s32.totalorder %s15, 0
      %p35 = por %p33, %p34
      %p36 = scmp.ne.s32.totalorder %s25, %s28
      %p37 = scmp.eq.s32.totalorder %s20, 1
      %p38 = por %p36, %p37
      %p39 = scmp.ne.s32.totalorder %s28, %s29
      %p40 = scmp.eq.s32.totalorder %s20, 0
      %p41 = por %p39, %p40
      %p42 = scmp.ne.s32.totalorder %s28, %s29
      %p43 = scmp.eq.s32.totalorder %s21, 1
      %p44 = por %p42, %p43
      %p46 = scmp.ne.s32.totalorder %s29, %s45
      %p47 = scmp.eq.s32.totalorder %s21, 0
      %p48 = por %p46, %p47
      %s50 = sadd.s32 %s49, 1
      %p53 = scmp.eq.s32.totalorder %s15, 1
      %p54 = scmp.ne.s32.totalorder %s49, %s51
      %p55 = scmp.eq.s32.totalorder %s15, 0
      %p56 = por %p54, %p55
      %p57 = scmp.ne.s32.totalorder %s49, %s51
      %p58 = scmp.eq.s32.totalorder %s20, 1
      %p59 = por %p57, %p58
      %p60 = scmp.ne.s32.totalorder %s51, %s52
      %p61 = scmp.eq.s32.totalorder %s20, 0
      %p62 = por %p60, %p61
      %p63 = scmp.ne.s32.totalorder %s51, %s52
      %p64 = scmp.eq.s32.totalorder %s21, 1
      %p65 = por %p63, %p64
      %p67 = scmp.ne.s32.totalorder %s52, %s66
      %p68 = scmp.eq.s32.totalorder %s21, 0
      %p69 = por %p67, %p68
      %s71 = sadd.s32 %s70, 1
      %p74 = scmp.eq.s32.totalorder %s15, 1
      %p75 = scmp.ne.s32.totalorder %s70, %s72
      %p76 = scmp.eq.s32.totalorder %s15, 0
      %p77 = por %p75, %p76
      %p78 = scmp.ne.s32.totalorder %s70, %s72
      %p79 = scmp.eq.s32.totalorder %s20, 1
      %p80 = por %p78, %p79
      %p81 = scmp.ne.s32.totalorder %s72, %s73
      %p82 = scmp.eq.s32.totalorder %s20, 0
      %p83 = por %p81, %p82
      %p84 = scmp.ne.s32.totalorder %s72, %s73
      %p85 = scmp.eq.s32.totalorder %s21, 1
      %p86 = por %p84, %p85
      %p88 = scmp.ne.s32.totalorder %s73, %s87
      %p89 = scmp.eq.s32.totalorder %s21, 0
      %p90 = por %p88, %p89
      %s92 = sadd.s32 %s91, 1
      %p95 = scmp.eq.s32.totalorder %s15, 1
      %p96 = scmp.ne.s32.totalorder %s91, %s93
      %p97 = scmp.eq.s32.totalorder %s15, 0
      %p98 = por %p96, %p97
      %p99 = scmp.ne.s32.totalorder %s91, %s93
      %p100 = scmp.eq.s32.totalorder %s20, 1
      %p101 = por %p99, %p100
      %p102 = scmp.ne.s32.totalorder %s93, %s94
      %p103 = scmp.eq.s32.totalorder %s20, 0
      %p104 = por %p102, %p103
      %p105 = scmp.ne.s32.totalorder %s93, %s94
      %p106 = scmp.eq.s32.totalorder %s21, 1
      %p107 = por %p105, %p106
      %p109 = scmp.ne.s32.totalorder %s94, %s108
      %p110 = scmp.eq.s32.totalorder %s21, 0
      %p111 = por %p109, %p110
      %s112 = ssub.s32 %s15, %s22
      %p113 = scmp.eq.s32.totalorder %s112, 0
      %s115 = sadd.s32 %s114, 1
      %s116 = scalar_select %p113, %s114, %s115
      %p119 = pneg %p113
      %p120 = scmp.eq.s32.totalorder %s15, 1
      %p121 = por %p119, %p120
      %p122 = scmp.ne.s32.totalorder %s114, %s117
      %p123 = scmp.eq.s32.totalorder %s15, 0
      %p124 = por %p122, %p123
      %p125 = scmp.ne.s32.totalorder %s114, %s117
      %p126 = scmp.eq.s32.totalorder %s20, 1
      %p127 = por %p125, %p126
      %p128 = scmp.ne.s32.totalorder %s117, %s118
      %p129 = scmp.eq.s32.totalorder %s20, 0
      %p130 = por %p128, %p129
      %p131 = scmp.ne.s32.totalorder %s117, %s118
      %p132 = scmp.eq.s32.totalorder %s21, 1
      %p133 = por %p131, %p132
      %p135 = scmp.ne.s32.totalorder %s118, %s134
      %p136 = scmp.eq.s32.totalorder %s21, 0
      %p137 = por %p135, %p136
      %s138 = ssub.s32 %s15, %s22
      %p139 = scmp.eq.s32.totalorder %s138, 0
      %s141 = sadd.s32 %s140, 1
      %s142 = scalar_select %p139, %s140, %s141
      %p145 = pneg %p139
      %p146 = scmp.eq.s32.totalorder %s15, 1
      %p147 = por %p145, %p146
      %p148 = scmp.ne.s32.totalorder %s140, %s143
      %p149 = scmp.eq.s32.totalorder %s15, 0
      %p150 = por %p148, %p149
      %p151 = scmp.ne.s32.totalorder %s140, %s143
      %p152 = scmp.eq.s32.totalorder %s20, 1
      %p153 = por %p151, %p152
      %p154 = scmp.ne.s32.totalorder %s143, %s144
      %p155 = scmp.eq.s32.totalorder %s20, 0
      %p156 = por %p154, %p155
      %p157 = scmp.ne.s32.totalorder %s143, %s144
      %p158 = scmp.eq.s32.totalorder %s21, 1
      %p159 = por %p157, %p158
      %p161 = scmp.ne.s32.totalorder %s144, %s160
      %p162 = scmp.eq.s32.totalorder %s21, 0
      %p163 = por %p161, %p162
      %p164 = scmp.le.s32.totalorder 1, %s15
      %p165 = scmp.lt.s32.totalorder %s15, 3
      %p166 = pnand %p164, %p165
      %p167 = pneg %p166
      // Predicated region
      $region9: #{tpu_custom_call.1} parent=5 // pred_check
        _
      $region10: #{tpu_custom_call.1} parent=5 // pred_check_branch
        %169 = sbr.rel (%p166) target = $region12
      $region11: #{tpu_custom_call.1} parent=5 // pred_region
        %s170 = ssub.s32 %s15, 1
        // Predicated region
        $region13: #{tpu_custom_call.1} parent=11 // pred_check
          %p171 = pneg %p62
        $region14: #{tpu_custom_call.1} parent=11 // pred_check_branch
          %173 = sbr.rel (%p171) target = $region16
        $region15: #{tpu_custom_call.1} parent=11 // pred_region
          _
        $region16: #{tpu_custom_call.1} parent=11 // pred_fallthru
          _
        // Predicated region
        $region17: #{tpu_custom_call.1} parent=11 // pred_check
          %p174 = pneg %p83
        $region18: #{tpu_custom_call.1} parent=11 // pred_check_branch
          %176 = sbr.rel (%p174) target = $region20
        $region19: #{tpu_custom_call.1} parent=11 // pred_region
          _
        $region20: #{tpu_custom_call.1} parent=11 // pred_fallthru
          _
        // Predicated region
        $region21: #{tpu_custom_call.1} parent=11 // pred_check
          %p177 = pneg %p104
        $region22: #{tpu_custom_call.1} parent=11 // pred_check_branch
          %179 = sbr.rel (%p177) target = $region24
        $region23: #{tpu_custom_call.1} parent=11 // pred_region
          _
        $region24: #{tpu_custom_call.1} parent=11 // pred_fallthru
          _
      $region12: #{tpu_custom_call.1} parent=5 // pred_fallthru
        _
      %p180 = scmp.lt.s32.totalorder %s15, 2
      // Predicated region
      $region25: #{tpu_custom_call.1} parent=5 // pred_check
        %p181 = pneg %p180
      $region26: #{tpu_custom_call.1} parent=5 // pred_check_branch
        %183 = sbr.rel (%p181) target = $region28
      $region27: #{tpu_custom_call.1} parent=5 // pred_region
        // Predicated region
        $region29: #{tpu_custom_call.1} parent=27 // pred_check
          %p184 = pneg %p35
        $region30: #{tpu_custom_call.1} parent=27 // pred_check_branch
          %186 = sbr.rel (%p184) target = $region32
        $region31: #{tpu_custom_call.1} parent=27 // pred_region
          %p187 = scmp.lt.s32.totalorder %s15, 1
          %s188 = scalar_select %p187, %s15, 1
          %s189 = smul.addr %s188, 64
          %s190 = smul.addr %s189, 8
          %s191 = scalar_lea.vmem %s0, %s190
        $region32: #{tpu_custom_call.1} parent=27 // pred_fallthru
          _
      $region28: #{tpu_custom_call.1} parent=5 // pred_fallthru
        _
      %p192 = scmp.le.s32.totalorder 1, %s15
      %p193 = scmp.lt.s32.totalorder %s15, 3
      %p194 = pnand %p192, %p193
      %p195 = pneg %p194
      // Predicated region
      $region33: #{tpu_custom_call.1} parent=5 // pred_check
        _
      $region34: #{tpu_custom_call.1} parent=5 // pred_check_branch
        %197 = sbr.rel (%p194) target = $region36
      $region35: #{tpu_custom_call.1} parent=5 // pred_region
        %s198 = ssub.s32 %s15, 1
        %p199 = scmp.lt.s32.totalorder %s20, 1
        %s200 = scalar_select %p199, %s20, 1
        %s201 = smul.addr %s200, 64
        %s202 = smul.addr %s201, 8
        %s203 = scalar_lea.vmem %s0, %s202
        %p204 = pneg %p41
        %p205 = pneg %p38
        %p206 = pneg %p62
        %p207 = pneg %p59
        %p208 = pneg %p83
        %p209 = pneg %p80
        %p210 = pneg %p104
        %p211 = pneg %p101
        %p212 = pneg %p130
        %p213 = pneg %p127
        %p214 = scmp.lt.s32.totalorder %s20, 1
        %s215 = scalar_select %p214, %s20, 1
        %s216 = smul.addr %s215, 16
        %s217 = smul.addr %s216, 8
        %s218 = scalar_lea.vmem %s4, %s217
        %p219 = pneg %p156
        %p220 = pneg %p153
        %s221 = sand.u32 %s143, 1
        %s222 = scalar_lea.sflag [#allocation4], %s221
        %s223 = sand.u32 %s143, 1
        %s224 = smul.addr %s223, 2
        %s225 = scalar_lea.vmem [#allocation3], %s224
        %p226 = scmp.lt.s32.totalorder %s20, 1
        %s227 = scalar_select %p226, %s20, 1
        %s228 = smul.addr %s227, 64
        %s229 = smul.addr %s228, 8
        %s230 = scalar_lea.vmem %s0, %s229
        %p231 = scmp.lt.s32.totalorder %s20, 1
        %s232 = scalar_select %p231, %s20, 1
        %s233 = smul.addr %s232, 16
        %s234 = smul.addr %s233, 8
        %s235 = scalar_lea.vmem %s4, %s234
        %v237 = vld [vmem:[%s230] sm:$0xff]
        %v238 = vld [vmem:[%s230 + $0x8] sm:$0xff]
        %v239 = vld [vmem:[%s230 + $0x10] sm:$0xff]
        %v240 = vld [vmem:[%s230 + $0x18] sm:$0xff]
        %v241 = vld [vmem:[%s230 + $0x20] sm:$0xff]
        %v242 = vld [vmem:[%s230 + $0x28] sm:$0xff]
        %v243 = vld [vmem:[%s230 + $0x30] sm:$0xff]
        %v244 = vld [vmem:[%s230 + $0x38] sm:$0xff]
        %v245 = vld [vmem:[%s230 + $0x40] sm:$0xff]
        %v246 = vld [vmem:[%s230 + $0x48] sm:$0xff]
        %v247 = vld [vmem:[%s230 + $0x50] sm:$0xff]
        %v248 = vld [vmem:[%s230 + $0x58] sm:$0xff]
        %v249 = vld [vmem:[%s230 + $0x60] sm:$0xff]
        %v250 = vld [vmem:[%s230 + $0x68] sm:$0xff]
        %v251 = vld [vmem:[%s230 + $0x70] sm:$0xff]
        %v252 = vld [vmem:[%s230 + $0x78] sm:$0xff]
        %v253 = vld [vmem:[%s230 + $0x80] sm:$0xff]
        %v254 = vld [vmem:[%s230 + $0x88] sm:$0xff]
        %v255 = vld [vmem:[%s230 + $0x90] sm:$0xff]
        %v256 = vld [vmem:[%s230 + $0x98] sm:$0xff]
        %v257 = vld [vmem:[%s230 + $0xa0] sm:$0xff]
        %v258 = vld [vmem:[%s230 + $0xa8] sm:$0xff]
        %v259 = vld [vmem:[%s230 + $0xb0] sm:$0xff]
        %v260 = vld [vmem:[%s230 + $0xb8] sm:$0xff]
        %v261 = vld [vmem:[%s230 + $0xc0] sm:$0xff]
        %v262 = vld [vmem:[%s230 + $0xc8] sm:$0xff]
        %v263 = vld [vmem:[%s230 + $0xd0] sm:$0xff]
        %v264 = vld [vmem:[%s230 + $0xd8] sm:$0xff]
        %v265 = vld [vmem:[%s230 + $0xe0] sm:$0xff]
        %v266 = vld [vmem:[%s230 + $0xe8] sm:$0xff]
        %v267 = vld [vmem:[%s230 + $0xf0] sm:$0xff]
        %v268 = vld [vmem:[%s230 + $0xf8] sm:$0xff]
        %v269 = vld [vmem:[%s230 + $0x100] sm:$0xff]
        %v270 = vld [vmem:[%s230 + $0x108] sm:$0xff]
        %v271 = vld [vmem:[%s230 + $0x110] sm:$0xff]
        %v272 = vld [vmem:[%s230 + $0x118] sm:$0xff]
        %v273 = vld [vmem:[%s230 + $0x120] sm:$0xff]
        %v274 = vld [vmem:[%s230 + $0x128] sm:$0xff]
        %v275 = vld [vmem:[%s230 + $0x130] sm:$0xff]
        %v276 = vld [vmem:[%s230 + $0x138] sm:$0xff]
        %v277 = vld [vmem:[%s230 + $0x140] sm:$0xff]
        %v278 = vld [vmem:[%s230 + $0x148] sm:$0xff]
        %v279 = vld [vmem:[%s230 + $0x150] sm:$0xff]
        %v280 = vld [vmem:[%s230 + $0x158] sm:$0xff]
        %v281 = vld [vmem:[%s230 + $0x160] sm:$0xff]
        %v282 = vld [vmem:[%s230 + $0x168] sm:$0xff]
        %v283 = vld [vmem:[%s230 + $0x170] sm:$0xff]
        %v284 = vld [vmem:[%s230 + $0x178] sm:$0xff]
        %v285 = vld [vmem:[%s230 + $0x180] sm:$0xff]
        %v286 = vld [vmem:[%s230 + $0x188] sm:$0xff]
        %v287 = vld [vmem:[%s230 + $0x190] sm:$0xff]
        %v288 = vld [vmem:[%s230 + $0x198] sm:$0xff]
        %v289 = vld [vmem:[%s230 + $0x1a0] sm:$0xff]
        %v290 = vld [vmem:[%s230 + $0x1a8] sm:$0xff]
        %v291 = vld [vmem:[%s230 + $0x1b0] sm:$0xff]
        %v292 = vld [vmem:[%s230 + $0x1b8] sm:$0xff]
        %v293 = vld [vmem:[%s230 + $0x1c0] sm:$0xff]
        %v294 = vld [vmem:[%s230 + $0x1c8] sm:$0xff]
        %v295 = vld [vmem:[%s230 + $0x1d0] sm:$0xff]
        %v296 = vld [vmem:[%s230 + $0x1d8] sm:$0xff]
        %v297 = vld [vmem:[%s230 + $0x1e0] sm:$0xff]
        %v298 = vld [vmem:[%s230 + $0x1e8] sm:$0xff]
        %v299 = vld [vmem:[%s230 + $0x1f0] sm:$0xff]
        %v300 = vld [vmem:[%s230 + $0x1f8] sm:$0xff]
        %v301 = vpack.c.bf16 %v237, %v237
        %v302 = vpack.c.bf16 %v238, %v238
        %v303 = vpack.c.bf16 %v239, %v239
        %v304 = vpack.c.bf16 %v240, %v240
        %v305 = vpack.c.bf16 %v241, %v241
        %v306 = vpack.c.bf16 %v242, %v242
        %v307 = vpack.c.bf16 %v243, %v243
        %v308 = vpack.c.bf16 %v244, %v244
        %v309 = vpack.c.bf16 %v245, %v245
        %v310 = vpack.c.bf16 %v246, %v246
        %v311 = vpack.c.bf16 %v247, %v247
        %v312 = vpack.c.bf16 %v248, %v248
        %v313 = vpack.c.bf16 %v249, %v249
        %v314 = vpack.c.bf16 %v250, %v250
        %v315 = vpack.c.bf16 %v251, %v251
        %v316 = vpack.c.bf16 %v252, %v252
        %v317 = vpack.c.bf16 %v253, %v253
        %v318 = vpack.c.bf16 %v254, %v254
        %v319 = vpack.c.bf16 %v255, %v255
        %v320 = vpack.c.bf16 %v256, %v256
        %v321 = vpack.c.bf16 %v257, %v257
        %v322 = vpack.c.bf16 %v258, %v258
        %v323 = vpack.c.bf16 %v259, %v259
        %v324 = vpack.c.bf16 %v260, %v260
        %v325 = vpack.c.bf16 %v261, %v261
        %v326 = vpack.c.bf16 %v262, %v262
        %v327 = vpack.c.bf16 %v263, %v263
        %v328 = vpack.c.bf16 %v264, %v264
        %v329 = vpack.c.bf16 %v265, %v265
        %v330 = vpack.c.bf16 %v266, %v266
        %v331 = vpack.c.bf16 %v267, %v267
        %v332 = vpack.c.bf16 %v268, %v268
        %v333 = vpack.c.bf16 %v269, %v269
        %v334 = vpack.c.bf16 %v270, %v270
        %v335 = vpack.c.bf16 %v271, %v271
        %v336 = vpack.c.bf16 %v272, %v272
        %v337 = vpack.c.bf16 %v273, %v273
        %v338 = vpack.c.bf16 %v274, %v274
        %v339 = vpack.c.bf16 %v275, %v275
        %v340 = vpack.c.bf16 %v276, %v276
        %v341 = vpack.c.bf16 %v277, %v277
        %v342 = vpack.c.bf16 %v278, %v278
        %v343 = vpack.c.bf16 %v279, %v279
        %v344 = vpack.c.bf16 %v280, %v280
        %v345 = vpack.c.bf16 %v281, %v281
        %v346 = vpack.c.bf16 %v282, %v282
        %v347 = vpack.c.bf16 %v283, %v283
        %v348 = vpack.c.bf16 %v284, %v284
        %v349 = vpack.c.bf16 %v285, %v285
        %v350 = vpack.c.bf16 %v286, %v286
        %v351 = vpack.c.bf16 %v287, %v287
        %v352 = vpack.c.bf16 %v288, %v288
        %v353 = vpack.c.bf16 %v289, %v289
        %v354 = vpack.c.bf16 %v290, %v290
        %v355 = vpack.c.bf16 %v291, %v291
        %v356 = vpack.c.bf16 %v292, %v292
        %v357 = vpack.c.bf16 %v293, %v293
        %v358 = vpack.c.bf16 %v294, %v294
        %v359 = vpack.c.bf16 %v295, %v295
        %v360 = vpack.c.bf16 %v296, %v296
        %v361 = vpack.c.bf16 %v297, %v297
        %v362 = vpack.c.bf16 %v298, %v298
        %v363 = vpack.c.bf16 %v299, %v299
        %v364 = vpack.c.bf16 %v300, %v300
        %vm365 = vcmask 27648
        %366 = vst.msk [vmem:[#allocation2] sm:$0xf] %vm365, 0
        %vm367 = vcmask 24576
        %368 = vst.msk [vmem:[#allocation2 + $0x4] sm:$0x1] %vm367, 0
        %369 = vst.msk [vmem:[#allocation2 + $0x8] sm:$0xf] %vm365, 0
        %370 = vst.msk [vmem:[#allocation2 + $0xc] sm:$0x1] %vm367, 0
        %371 = vst.msk [vmem:[#allocation2 + $0x10] sm:$0xf] %vm365, 0
        %372 = vst.msk [vmem:[#allocation2 + $0x14] sm:$0x1] %vm367, 0
        %373 = vst.msk [vmem:[#allocation2 + $0x18] sm:$0xf] %vm365, 0
        %374 = vst.msk [vmem:[#allocation2 + $0x1c] sm:$0x1] %vm367, 0
        %375 = vst.msk [vmem:[#allocation2 + $0x20] sm:$0xf] %vm365, 0
        %376 = vst.msk [vmem:[#allocation2 + $0x24] sm:$0x1] %vm367, 0
        %377 = vst.msk [vmem:[#allocation2 + $0x28] sm:$0xf] %vm365, 0
        %378 = vst.msk [vmem:[#allocation2 + $0x2c] sm:$0x1] %vm367, 0
        %379 = vst.msk [vmem:[#allocation2 + $0x30] sm:$0xf] %vm365, 0
        %380 = vst.msk [vmem:[#allocation2 + $0x34] sm:$0x1] %vm367, 0
        %381 = vst.msk [vmem:[#allocation2 + $0x38] sm:$0xf] %vm365, 0
        %382 = vst.msk [vmem:[#allocation2 + $0x3c] sm:$0x1] %vm367, 0
        %383 = vst.msk [vmem:[#allocation2 + $0x40] sm:$0xf] %vm365, 0
        %384 = vst.msk [vmem:[#allocation2 + $0x44] sm:$0x1] %vm367, 0
        %385 = vst.msk [vmem:[#allocation2 + $0x48] sm:$0xf] %vm365, 0
        %386 = vst.msk [vmem:[#allocation2 + $0x4c] sm:$0x1] %vm367, 0
        %s387 = scalar_lea.vmem [#allocation2], 720
        %388 = vst.msk [vmem:[%s387] sm:$0xf] %vm365, 0
        %389 = vst.msk [vmem:[%s387 + $0x4] sm:$0x1] %vm367, 0
        %390 = vst.msk [vmem:[%s387 + $0x8] sm:$0xf] %vm365, 0
        %391 = vst.msk [vmem:[%s387 + $0xc] sm:$0x1] %vm367, 0
        %392 = vst.msk [vmem:[%s387 + $0x10] sm:$0xf] %vm365, 0
        %393 = vst.msk [vmem:[%s387 + $0x14] sm:$0x1] %vm367, 0
        %394 = vst.msk [vmem:[%s387 + $0x18] sm:$0xf] %vm365, 0
        %395 = vst.msk [vmem:[%s387 + $0x1c] sm:$0x1] %vm367, 0
        %396 = vst.msk [vmem:[%s387 + $0x20] sm:$0xf] %vm365, 0
        %397 = vst.msk [vmem:[%s387 + $0x24] sm:$0x1] %vm367, 0
        %398 = vst.msk [vmem:[%s387 + $0x28] sm:$0xf] %vm365, 0
        %399 = vst.msk [vmem:[%s387 + $0x2c] sm:$0x1] %vm367, 0
        %400 = vst.msk [vmem:[%s387 + $0x30] sm:$0xf] %vm365, 0
        %401 = vst.msk [vmem:[%s387 + $0x34] sm:$0x1] %vm367, 0
        %402 = vst.msk [vmem:[%s387 + $0x38] sm:$0xf] %vm365, 0
        %403 = vst.msk [vmem:[%s387 + $0x3c] sm:$0x1] %vm367, 0
        %404 = vst.msk [vmem:[%s387 + $0x40] sm:$0xf] %vm365, 0
        %405 = vst.msk [vmem:[%s387 + $0x44] sm:$0x1] %vm367, 0
        %406 = vst.msk [vmem:[%s387 + $0x48] sm:$0xf] %vm365, 0
        %407 = vst.msk [vmem:[%s387 + $0x4c] sm:$0x1] %vm367, 0
        %408 = vst.msk [vmem:[#allocation2] sm:$0xf] %vm365, 0
        %409 = vst.msk [vmem:[#allocation2 + $0x4] sm:$0x1] %vm367, 0
        %410 = vst.msk [vmem:[#allocation2 + $0x50] sm:$0xf] %vm365, 0
        %411 = vst.msk [vmem:[#allocation2 + $0x54] sm:$0x1] %vm367, 0
        %412 = vst.msk [vmem:[#allocation2 + $0xa0] sm:$0xf] %vm365, 0
        %413 = vst.msk [vmem:[#allocation2 + $0xa4] sm:$0x1] %vm367, 0
        %414 = vst.msk [vmem:[#allocation2 + $0xf0] sm:$0xf] %vm365, 0
        %415 = vst.msk [vmem:[#allocation2 + $0xf4] sm:$0x1] %vm367, 0
        %416 = vst.msk [vmem:[#allocation2 + $0x140] sm:$0xf] %vm365, 0
        %417 = vst.msk [vmem:[#allocation2 + $0x144] sm:$0x1] %vm367, 0
        %418 = vst.msk [vmem:[#allocation2 + $0x190] sm:$0xf] %vm365, 0
        %419 = vst.msk [vmem:[#allocation2 + $0x194] sm:$0x1] %vm367, 0
        %420 = vst.msk [vmem:[#allocation2 + $0x1e0] sm:$0xf] %vm365, 0
        %421 = vst.msk [vmem:[#allocation2 + $0x1e4] sm:$0x1] %vm367, 0
        %422 = vst.msk [vmem:[#allocation2 + $0x230] sm:$0xf] %vm365, 0
        %423 = vst.msk [vmem:[#allocation2 + $0x234] sm:$0x1] %vm367, 0
        %424 = vst.msk [vmem:[#allocation2 + $0x280] sm:$0xf] %vm365, 0
        %425 = vst.msk [vmem:[#allocation2 + $0x284] sm:$0x1] %vm367, 0
        %426 = vst.msk [vmem:[#allocation2 + $0x2d0] sm:$0xf] %vm365, 0
        %427 = vst.msk [vmem:[#allocation2 + $0x2d4] sm:$0x1] %vm367, 0
        %s428 = scalar_lea.vmem [#allocation2], 72
        %429 = vst.msk [vmem:[%s428] sm:$0xf] %vm365, 0
        %430 = vst.msk [vmem:[%s428 + $0x4] sm:$0x1] %vm367, 0
        %431 = vst.msk [vmem:[%s428 + $0x50] sm:$0xf] %vm365, 0
        %432 = vst.msk [vmem:[%s428 + $0x54] sm:$0x1] %vm367, 0
        %433 = vst.msk [vmem:[%s428 + $0xa0] sm:$0xf] %vm365, 0
        %434 = vst.msk [vmem:[%s428 + $0xa4] sm:$0x1] %vm367, 0
        %435 = vst.msk [vmem:[%s428 + $0xf0] sm:$0xf] %vm365, 0
        %436 = vst.msk [vmem:[%s428 + $0xf4] sm:$0x1] %vm367, 0
        %437 = vst.msk [vmem:[%s428 + $0x140] sm:$0xf] %vm365, 0
        %438 = vst.msk [vmem:[%s428 + $0x144] sm:$0x1] %vm367, 0
        %439 = vst.msk [vmem:[%s428 + $0x190] sm:$0xf] %vm365, 0
        %440 = vst.msk [vmem:[%s428 + $0x194] sm:$0x1] %vm367, 0
        %441 = vst.msk [vmem:[%s428 + $0x1e0] sm:$0xf] %vm365, 0
        %442 = vst.msk [vmem:[%s428 + $0x1e4] sm:$0x1] %vm367, 0
        %443 = vst.msk [vmem:[%s428 + $0x230] sm:$0xf] %vm365, 0
        %444 = vst.msk [vmem:[%s428 + $0x234] sm:$0x1] %vm367, 0
        %445 = vst.msk [vmem:[%s428 + $0x280] sm:$0xf] %vm365, 0
        %446 = vst.msk [vmem:[%s428 + $0x284] sm:$0x1] %vm367, 0
        %447 = vst.msk [vmem:[%s428 + $0x2d0] sm:$0xf] %vm365, 0
        %448 = vst.msk [vmem:[%s428 + $0x2d4] sm:$0x1] %vm367, 0
        %vm449 = vcmask 24576
        %vm450 = vsmask.f32 256
        %vm451 = vmand %vm449, %vm450
        %v452 = vld [vmem:[#allocation2] sm:$0x1]
        %v453 = vsel %vm451, 0, %v452
        %454 = vst [vmem:[#allocation2] sm:$0x1] %v453
        %v455 = vld [vmem:[#allocation2 + $0x8] sm:$0x1]
        %v456 = vsel %vm451, 0, %v455
        %457 = vst [vmem:[#allocation2 + $0x8] sm:$0x1] %v456
        %v458 = vld [vmem:[#allocation2 + $0x10] sm:$0x1]
        %v459 = vsel %vm451, 0, %v458
        %460 = vst [vmem:[#allocation2 + $0x10] sm:$0x1] %v459
        %v461 = vld [vmem:[#allocation2 + $0x18] sm:$0x1]
        %v462 = vsel %vm451, 0, %v461
        %463 = vst [vmem:[#allocation2 + $0x18] sm:$0x1] %v462
        %v464 = vld [vmem:[#allocation2 + $0x20] sm:$0x1]
        %v465 = vsel %vm451, 0, %v464
        %466 = vst [vmem:[#allocation2 + $0x20] sm:$0x1] %v465
        %v467 = vld [vmem:[#allocation2 + $0x28] sm:$0x1]
        %v468 = vsel %vm451, 0, %v467
        %469 = vst [vmem:[#allocation2 + $0x28] sm:$0x1] %v468
        %v470 = vld [vmem:[#allocation2 + $0x30] sm:$0x1]
        %v471 = vsel %vm451, 0, %v470
        %472 = vst [vmem:[#allocation2 + $0x30] sm:$0x1] %v471
        %v473 = vld [vmem:[#allocation2 + $0x38] sm:$0x1]
        %v474 = vsel %vm451, 0, %v473
        %475 = vst [vmem:[#allocation2 + $0x38] sm:$0x1] %v474
        %v476 = vld [vmem:[#allocation2 + $0x40] sm:$0x1]
        %v477 = vsel %vm451, 0, %v476
        %478 = vst [vmem:[#allocation2 + $0x40] sm:$0x1] %v477
        %v479 = vld [vmem:[#allocation2 + $0x48] sm:$0x1]
        %v480 = vsel %vm451, 0, %v479
        %481 = vst [vmem:[#allocation2 + $0x48] sm:$0x1] %v480
        %v482 = vld [vmem:[#allocation2 + $0x50] sm:$0x1]
        %v483 = vsel %vm451, 0, %v482
        %484 = vst [vmem:[#allocation2 + $0x50] sm:$0x1] %v483
        %v485 = vld [vmem:[#allocation2 + $0x58] sm:$0x1]
        %v486 = vsel %vm451, 0, %v485
        %487 = vst [vmem:[#allocation2 + $0x58] sm:$0x1] %v486
        %v488 = vld [vmem:[#allocation2 + $0x60] sm:$0x1]
        %v489 = vsel %vm451, 0, %v488
        %490 = vst [vmem:[#allocation2 + $0x60] sm:$0x1] %v489
        %v491 = vld [vmem:[#allocation2 + $0x68] sm:$0x1]
        %v492 = vsel %vm451, 0, %v491
        %493 = vst [vmem:[#allocation2 + $0x68] sm:$0x1] %v492
        %v494 = vld [vmem:[#allocation2 + $0x70] sm:$0x1]
        %v495 = vsel %vm451, 0, %v494
        %496 = vst [vmem:[#allocation2 + $0x70] sm:$0x1] %v495
        %v497 = vld [vmem:[#allocation2 + $0x78] sm:$0x1]
        %v498 = vsel %vm451, 0, %v497
        %499 = vst [vmem:[#allocation2 + $0x78] sm:$0x1] %v498
        %v500 = vld [vmem:[#allocation2 + $0x80] sm:$0x1]
        %v501 = vsel %vm451, 0, %v500
        %502 = vst [vmem:[#allocation2 + $0x80] sm:$0x1] %v501
        %v503 = vld [vmem:[#allocation2 + $0x88] sm:$0x1]
        %v504 = vsel %vm451, 0, %v503
        %505 = vst [vmem:[#allocation2 + $0x88] sm:$0x1] %v504
        %v506 = vld [vmem:[#allocation2 + $0x90] sm:$0x1]
        %v507 = vsel %vm451, 0, %v506
        %508 = vst [vmem:[#allocation2 + $0x90] sm:$0x1] %v507
        %v509 = vld [vmem:[#allocation2 + $0x98] sm:$0x1]
        %v510 = vsel %vm451, 0, %v509
        %511 = vst [vmem:[#allocation2 + $0x98] sm:$0x1] %v510
        %v512 = vld [vmem:[#allocation2 + $0xa0] sm:$0x1]
        %v513 = vsel %vm451, 0, %v512
        %514 = vst [vmem:[#allocation2 + $0xa0] sm:$0x1] %v513
        %v515 = vld [vmem:[#allocation2 + $0xa8] sm:$0x1]
        %v516 = vsel %vm451, 0, %v515
        %517 = vst [vmem:[#allocation2 + $0xa8] sm:$0x1] %v516
        %v518 = vld [vmem:[#allocation2 + $0xb0] sm:$0x1]
        %v519 = vsel %vm451, 0, %v518
        %520 = vst [vmem:[#allocation2 + $0xb0] sm:$0x1] %v519
        %v521 = vld [vmem:[#allocation2 + $0xb8] sm:$0x1]
        %v522 = vsel %vm451, 0, %v521
        %523 = vst [vmem:[#allocation2 + $0xb8] sm:$0x1] %v522
        %v524 = vld [vmem:[#allocation2 + $0xc0] sm:$0x1]
        %v525 = vsel %vm451, 0, %v524
        %526 = vst [vmem:[#allocation2 + $0xc0] sm:$0x1] %v525
        %v527 = vld [vmem:[#allocation2 + $0xc8] sm:$0x1]
        %v528 = vsel %vm451, 0, %v527
        %529 = vst [vmem:[#allocation2 + $0xc8] sm:$0x1] %v528
        %v530 = vld [vmem:[#allocation2 + $0xd0] sm:$0x1]
        %v531 = vsel %vm451, 0, %v530
        %532 = vst [vmem:[#allocation2 + $0xd0] sm:$0x1] %v531
        %v533 = vld [vmem:[#allocation2 + $0xd8] sm:$0x1]
        %v534 = vsel %vm451, 0, %v533
        %535 = vst [vmem:[#allocation2 + $0xd8] sm:$0x1] %v534
        %v536 = vld [vmem:[#allocation2 + $0xe0] sm:$0x1]
        %v537 = vsel %vm451, 0, %v536
        %538 = vst [vmem:[#allocation2 + $0xe0] sm:$0x1] %v537
        %v539 = vld [vmem:[#allocation2 + $0xe8] sm:$0x1]
        %v540 = vsel %vm451, 0, %v539
        %541 = vst [vmem:[#allocation2 + $0xe8] sm:$0x1] %v540
        %v542 = vld [vmem:[#allocation2 + $0xf0] sm:$0x1]
        %v543 = vsel %vm451, 0, %v542
        %544 = vst [vmem:[#allocation2 + $0xf0] sm:$0x1] %v543
        %v545 = vld [vmem:[#allocation2 + $0xf8] sm:$0x1]
        %v546 = vsel %vm451, 0, %v545
        %547 = vst [vmem:[#allocation2 + $0xf8] sm:$0x1] %v546
        %v548 = vld [vmem:[#allocation2 + $0x100] sm:$0x1]
        %v549 = vsel %vm451, 0, %v548
        %550 = vst [vmem:[#allocation2 + $0x100] sm:$0x1] %v549
        %v551 = vld [vmem:[#allocation2 + $0x108] sm:$0x1]
        %v552 = vsel %vm451, 0, %v551
        %553 = vst [vmem:[#allocation2 + $0x108] sm:$0x1] %v552
        %v554 = vld [vmem:[#allocation2 + $0x110] sm:$0x1]
        %v555 = vsel %vm451, 0, %v554
        %556 = vst [vmem:[#allocation2 + $0x110] sm:$0x1] %v555
        %v557 = vld [vmem:[#allocation2 + $0x118] sm:$0x1]
        %v558 = vsel %vm451, 0, %v557
        %559 = vst [vmem:[#allocation2 + $0x118] sm:$0x1] %v558
        %v560 = vld [vmem:[#allocation2 + $0x120] sm:$0x1]
        %v561 = vsel %vm451, 0, %v560
        %562 = vst [vmem:[#allocation2 + $0x120] sm:$0x1] %v561
        %v563 = vld [vmem:[#allocation2 + $0x128] sm:$0x1]
        %v564 = vsel %vm451, 0, %v563
        %565 = vst [vmem:[#allocation2 + $0x128] sm:$0x1] %v564
        %v566 = vld [vmem:[#allocation2 + $0x130] sm:$0x1]
        %v567 = vsel %vm451, 0, %v566
        %568 = vst [vmem:[#allocation2 + $0x130] sm:$0x1] %v567
        %v569 = vld [vmem:[#allocation2 + $0x138] sm:$0x1]
        %v570 = vsel %vm451, 0, %v569
        %571 = vst [vmem:[#allocation2 + $0x138] sm:$0x1] %v570
        %v572 = vld [vmem:[#allocation2 + $0x140] sm:$0x1]
        %v573 = vsel %vm451, 0, %v572
        %574 = vst [vmem:[#allocation2 + $0x140] sm:$0x1] %v573
        %v575 = vld [vmem:[#allocation2 + $0x148] sm:$0x1]
        %v576 = vsel %vm451, 0, %v575
        %577 = vst [vmem:[#allocation2 + $0x148] sm:$0x1] %v576
        %v578 = vld [vmem:[#allocation2 + $0x150] sm:$0x1]
        %v579 = vsel %vm451, 0, %v578
        %580 = vst [vmem:[#allocation2 + $0x150] sm:$0x1] %v579
        %v581 = vld [vmem:[#allocation2 + $0x158] sm:$0x1]
        %v582 = vsel %vm451, 0, %v581
        %583 = vst [vmem:[#allocation2 + $0x158] sm:$0x1] %v582
        %v584 = vld [vmem:[#allocation2 + $0x160] sm:$0x1]
        %v585 = vsel %vm451, 0, %v584
        %586 = vst [vmem:[#allocation2 + $0x160] sm:$0x1] %v585
        %v587 = vld [vmem:[#allocation2 + $0x168] sm:$0x1]
        %v588 = vsel %vm451, 0, %v587
        %589 = vst [vmem:[#allocation2 + $0x168] sm:$0x1] %v588
        %v590 = vld [vmem:[#allocation2 + $0x170] sm:$0x1]
        %v591 = vsel %vm451, 0, %v590
        %592 = vst [vmem:[#allocation2 + $0x170] sm:$0x1] %v591
        %v593 = vld [vmem:[#allocation2 + $0x178] sm:$0x1]
        %v594 = vsel %vm451, 0, %v593
        %595 = vst [vmem:[#allocation2 + $0x178] sm:$0x1] %v594
        %v596 = vld [vmem:[#allocation2 + $0x180] sm:$0x1]
        %v597 = vsel %vm451, 0, %v596
        %598 = vst [vmem:[#allocation2 + $0x180] sm:$0x1] %v597
        %v599 = vld [vmem:[#allocation2 + $0x188] sm:$0x1]
        %v600 = vsel %vm451, 0, %v599
        %601 = vst [vmem:[#allocation2 + $0x188] sm:$0x1] %v600
        %v602 = vld [vmem:[#allocation2 + $0x190] sm:$0x1]
        %v603 = vsel %vm451, 0, %v602
        %604 = vst [vmem:[#allocation2 + $0x190] sm:$0x1] %v603
        %v605 = vld [vmem:[#allocation2 + $0x198] sm:$0x1]
        %v606 = vsel %vm451, 0, %v605
        %607 = vst [vmem:[#allocation2 + $0x198] sm:$0x1] %v606
        %v608 = vld [vmem:[#allocation2 + $0x1a0] sm:$0x1]
        %v609 = vsel %vm451, 0, %v608
        %610 = vst [vmem:[#allocation2 + $0x1a0] sm:$0x1] %v609
        %v611 = vld [vmem:[#allocation2 + $0x1a8] sm:$0x1]
        %v612 = vsel %vm451, 0, %v611
        %613 = vst [vmem:[#allocation2 + $0x1a8] sm:$0x1] %v612
        %v614 = vld [vmem:[#allocation2 + $0x1b0] sm:$0x1]
        %v615 = vsel %vm451, 0, %v614
        %616 = vst [vmem:[#allocation2 + $0x1b0] sm:$0x1] %v615
        %v617 = vld [vmem:[#allocation2 + $0x1b8] sm:$0x1]
        %v618 = vsel %vm451, 0, %v617
        %619 = vst [vmem:[#allocation2 + $0x1b8] sm:$0x1] %v618
        %v620 = vld [vmem:[#allocation2 + $0x1c0] sm:$0x1]
        %v621 = vsel %vm451, 0, %v620
        %622 = vst [vmem:[#allocation2 + $0x1c0] sm:$0x1] %v621
        %v623 = vld [vmem:[#allocation2 + $0x1c8] sm:$0x1]
        %v624 = vsel %vm451, 0, %v623
        %625 = vst [vmem:[#allocation2 + $0x1c8] sm:$0x1] %v624
        %v626 = vld [vmem:[#allocation2 + $0x1d0] sm:$0x1]
        %v627 = vsel %vm451, 0, %v626
        %628 = vst [vmem:[#allocation2 + $0x1d0] sm:$0x1] %v627
        %v629 = vld [vmem:[#allocation2 + $0x1d8] sm:$0x1]
        %v630 = vsel %vm451, 0, %v629
        %631 = vst [vmem:[#allocation2 + $0x1d8] sm:$0x1] %v630
        %v632 = vld [vmem:[#allocation2 + $0x1e0] sm:$0x1]
        %v633 = vsel %vm451, 0, %v632
        %634 = vst [vmem:[#allocation2 + $0x1e0] sm:$0x1] %v633
        %v635 = vld [vmem:[#allocation2 + $0x1e8] sm:$0x1]
        %v636 = vsel %vm451, 0, %v635
        %637 = vst [vmem:[#allocation2 + $0x1e8] sm:$0x1] %v636
        %v638 = vld [vmem:[#allocation2 + $0x1f0] sm:$0x1]
        %v639 = vsel %vm451, 0, %v638
        %640 = vst [vmem:[#allocation2 + $0x1f0] sm:$0x1] %v639
        %v641 = vld [vmem:[#allocation2 + $0x1f8] sm:$0x1]
        %v642 = vsel %vm451, 0, %v641
        %643 = vst [vmem:[#allocation2 + $0x1f8] sm:$0x1] %v642
        %v644 = vld [vmem:[#allocation2 + $0x200] sm:$0x1]
        %v645 = vsel %vm451, 0, %v644
        %646 = vst [vmem:[#allocation2 + $0x200] sm:$0x1] %v645
        %v647 = vld [vmem:[#allocation2 + $0x208] sm:$0x1]
        %v648 = vsel %vm451, 0, %v647
        %649 = vst [vmem:[#allocation2 + $0x208] sm:$0x1] %v648
        %v650 = vld [vmem:[#allocation2 + $0x210] sm:$0x1]
        %v651 = vsel %vm451, 0, %v650
        %652 = vst [vmem:[#allocation2 + $0x210] sm:$0x1] %v651
        %v653 = vld [vmem:[#allocation2 + $0x218] sm:$0x1]
        %v654 = vsel %vm451, 0, %v653
        %655 = vst [vmem:[#allocation2 + $0x218] sm:$0x1] %v654
        %v656 = vld [vmem:[#allocation2 + $0x220] sm:$0x1]
        %v657 = vsel %vm451, 0, %v656
        %658 = vst [vmem:[#allocation2 + $0x220] sm:$0x1] %v657
        %v659 = vld [vmem:[#allocation2 + $0x228] sm:$0x1]
        %v660 = vsel %vm451, 0, %v659
        %661 = vst [vmem:[#allocation2 + $0x228] sm:$0x1] %v660
        %v662 = vld [vmem:[#allocation2 + $0x230] sm:$0x1]
        %v663 = vsel %vm451, 0, %v662
        %664 = vst [vmem:[#allocation2 + $0x230] sm:$0x1] %v663
        %v665 = vld [vmem:[#allocation2 + $0x238] sm:$0x1]
        %v666 = vsel %vm451, 0, %v665
        %667 = vst [vmem:[#allocation2 + $0x238] sm:$0x1] %v666
        %v668 = vld [vmem:[#allocation2 + $0x240] sm:$0x1]
        %v669 = vsel %vm451, 0, %v668
        %670 = vst [vmem:[#allocation2 + $0x240] sm:$0x1] %v669
        %v671 = vld [vmem:[#allocation2 + $0x248] sm:$0x1]
        %v672 = vsel %vm451, 0, %v671
        %673 = vst [vmem:[#allocation2 + $0x248] sm:$0x1] %v672
        %v674 = vld [vmem:[#allocation2 + $0x250] sm:$0x1]
        %v675 = vsel %vm451, 0, %v674
        %676 = vst [vmem:[#allocation2 + $0x250] sm:$0x1] %v675
        %v677 = vld [vmem:[#allocation2 + $0x258] sm:$0x1]
        %v678 = vsel %vm451, 0, %v677
        %679 = vst [vmem:[#allocation2 + $0x258] sm:$0x1] %v678
        %v680 = vld [vmem:[#allocation2 + $0x260] sm:$0x1]
        %v681 = vsel %vm451, 0, %v680
        %682 = vst [vmem:[#allocation2 + $0x260] sm:$0x1] %v681
        %v683 = vld [vmem:[#allocation2 + $0x268] sm:$0x1]
        %v684 = vsel %vm451, 0, %v683
        %685 = vst [vmem:[#allocation2 + $0x268] sm:$0x1] %v684
        %v686 = vld [vmem:[#allocation2 + $0x270] sm:$0x1]
        %v687 = vsel %vm451, 0, %v686
        %688 = vst [vmem:[#allocation2 + $0x270] sm:$0x1] %v687
        %v689 = vld [vmem:[#allocation2 + $0x278] sm:$0x1]
        %v690 = vsel %vm451, 0, %v689
        %691 = vst [vmem:[#allocation2 + $0x278] sm:$0x1] %v690
        %v692 = vld [vmem:[#allocation2 + $0x280] sm:$0x1]
        %v693 = vsel %vm451, 0, %v692
        %694 = vst [vmem:[#allocation2 + $0x280] sm:$0x1] %v693
        %v695 = vld [vmem:[#allocation2 + $0x288] sm:$0x1]
        %v696 = vsel %vm451, 0, %v695
        %697 = vst [vmem:[#allocation2 + $0x288] sm:$0x1] %v696
        %v698 = vld [vmem:[#allocation2 + $0x290] sm:$0x1]
        %v699 = vsel %vm451, 0, %v698
        %700 = vst [vmem:[#allocation2 + $0x290] sm:$0x1] %v699
        %v701 = vld [vmem:[#allocation2 + $0x298] sm:$0x1]
        %v702 = vsel %vm451, 0, %v701
        %703 = vst [vmem:[#allocation2 + $0x298] sm:$0x1] %v702
        %v704 = vld [vmem:[#allocation2 + $0x2a0] sm:$0x1]
        %v705 = vsel %vm451, 0, %v704
        %706 = vst [vmem:[#allocation2 + $0x2a0] sm:$0x1] %v705
        %v707 = vld [vmem:[#allocation2 + $0x2a8] sm:$0x1]
        %v708 = vsel %vm451, 0, %v707
        %709 = vst [vmem:[#allocation2 + $0x2a8] sm:$0x1] %v708
        %v710 = vld [vmem:[#allocation2 + $0x2b0] sm:$0x1]
        %v711 = vsel %vm451, 0, %v710
        %712 = vst [vmem:[#allocation2 + $0x2b0] sm:$0x1] %v711
        %v713 = vld [vmem:[#allocation2 + $0x2b8] sm:$0x1]
        %v714 = vsel %vm451, 0, %v713
        %715 = vst [vmem:[#allocation2 + $0x2b8] sm:$0x1] %v714
        %v716 = vld [vmem:[#allocation2 + $0x2c0] sm:$0x1]
        %v717 = vsel %vm451, 0, %v716
        %718 = vst [vmem:[#allocation2 + $0x2c0] sm:$0x1] %v717
        %v719 = vld [vmem:[#allocation2 + $0x2c8] sm:$0x1]
        %v720 = vsel %vm451, 0, %v719
        %721 = vst [vmem:[#allocation2 + $0x2c8] sm:$0x1] %v720
        %v722 = vld [vmem:[#allocation2 + $0x2d0] sm:$0x1]
        %v723 = vsel %vm451, 0, %v722
        %724 = vst [vmem:[#allocation2 + $0x2d0] sm:$0x1] %v723
        %v725 = vld [vmem:[#allocation2 + $0x2d8] sm:$0x1]
        %v726 = vsel %vm451, 0, %v725
        %727 = vst [vmem:[#allocation2 + $0x2d8] sm:$0x1] %v726
        %v728 = vld [vmem:[#allocation2 + $0x2e0] sm:$0x1]
        %v729 = vsel %vm451, 0, %v728
        %730 = vst [vmem:[#allocation2 + $0x2e0] sm:$0x1] %v729
        %v731 = vld [vmem:[#allocation2 + $0x2e8] sm:$0x1]
        %v732 = vsel %vm451, 0, %v731
        %733 = vst [vmem:[#allocation2 + $0x2e8] sm:$0x1] %v732
        %v734 = vld [vmem:[#allocation2 + $0x2f0] sm:$0x1]
        %v735 = vsel %vm451, 0, %v734
        %736 = vst [vmem:[#allocation2 + $0x2f0] sm:$0x1] %v735
        %v737 = vld [vmem:[#allocation2 + $0x2f8] sm:$0x1]
        %v738 = vsel %vm451, 0, %v737
        %739 = vst [vmem:[#allocation2 + $0x2f8] sm:$0x1] %v738
        %v740 = vld [vmem:[#allocation2 + $0x300] sm:$0x1]
        %v741 = vsel %vm451, 0, %v740
        %742 = vst [vmem:[#allocation2 + $0x300] sm:$0x1] %v741
        %v743 = vld [vmem:[#allocation2 + $0x308] sm:$0x1]
        %v744 = vsel %vm451, 0, %v743
        %745 = vst [vmem:[#allocation2 + $0x308] sm:$0x1] %v744
        %v746 = vld [vmem:[#allocation2 + $0x310] sm:$0x1]
        %v747 = vsel %vm451, 0, %v746
        %748 = vst [vmem:[#allocation2 + $0x310] sm:$0x1] %v747
        %v749 = vld [vmem:[#allocation2 + $0x318] sm:$0x1]
        %v750 = vsel %vm451, 0, %v749
        %751 = vst [vmem:[#allocation2 + $0x318] sm:$0x1] %v750
        %vm752 = vsmask.f32 7938
        %vm753 = vmand %vm449, %vm752
        %v754 = vld [vmem:[#allocation2 + $0x4] sm:$0x1]
        %v755 = vsel %vm753, 0, %v754
        %756 = vst [vmem:[#allocation2 + $0x4] sm:$0x1] %v755
        %v757 = vld [vmem:[#allocation2 + $0xc] sm:$0x1]
        %v758 = vsel %vm753, 0, %v757
        %759 = vst [vmem:[#allocation2 + $0xc] sm:$0x1] %v758
        %v760 = vld [vmem:[#allocation2 + $0x14] sm:$0x1]
        %v761 = vsel %vm753, 0, %v760
        %762 = vst [vmem:[#allocation2 + $0x14] sm:$0x1] %v761
        %v763 = vld [vmem:[#allocation2 + $0x1c] sm:$0x1]
        %v764 = vsel %vm753, 0, %v763
        %765 = vst [vmem:[#allocation2 + $0x1c] sm:$0x1] %v764
        %v766 = vld [vmem:[#allocation2 + $0x24] sm:$0x1]
        %v767 = vsel %vm753, 0, %v766
        %768 = vst [vmem:[#allocation2 + $0x24] sm:$0x1] %v767
        %v769 = vld [vmem:[#allocation2 + $0x2c] sm:$0x1]
        %v770 = vsel %vm753, 0, %v769
        %771 = vst [vmem:[#allocation2 + $0x2c] sm:$0x1] %v770
        %v772 = vld [vmem:[#allocation2 + $0x34] sm:$0x1]
        %v773 = vsel %vm753, 0, %v772
        %774 = vst [vmem:[#allocation2 + $0x34] sm:$0x1] %v773
        %v775 = vld [vmem:[#allocation2 + $0x3c] sm:$0x1]
        %v776 = vsel %vm753, 0, %v775
        %777 = vst [vmem:[#allocation2 + $0x3c] sm:$0x1] %v776
        %v778 = vld [vmem:[#allocation2 + $0x44] sm:$0x1]
        %v779 = vsel %vm753, 0, %v778
        %780 = vst [vmem:[#allocation2 + $0x44] sm:$0x1] %v779
        %v781 = vld [vmem:[#allocation2 + $0x4c] sm:$0x1]
        %v782 = vsel %vm753, 0, %v781
        %783 = vst [vmem:[#allocation2 + $0x4c] sm:$0x1] %v782
        %v784 = vld [vmem:[#allocation2 + $0x54] sm:$0x1]
        %v785 = vsel %vm753, 0, %v784
        %786 = vst [vmem:[#allocation2 + $0x54] sm:$0x1] %v785
        %v787 = vld [vmem:[#allocation2 + $0x5c] sm:$0x1]
        %v788 = vsel %vm753, 0, %v787
        %789 = vst [vmem:[#allocation2 + $0x5c] sm:$0x1] %v788
        %v790 = vld [vmem:[#allocation2 + $0x64] sm:$0x1]
        %v791 = vsel %vm753, 0, %v790
        %792 = vst [vmem:[#allocation2 + $0x64] sm:$0x1] %v791
        %v793 = vld [vmem:[#allocation2 + $0x6c] sm:$0x1]
        %v794 = vsel %vm753, 0, %v793
        %795 = vst [vmem:[#allocation2 + $0x6c] sm:$0x1] %v794
        %v796 = vld [vmem:[#allocation2 + $0x74] sm:$0x1]
        %v797 = vsel %vm753, 0, %v796
        %798 = vst [vmem:[#allocation2 + $0x74] sm:$0x1] %v797
        %v799 = vld [vmem:[#allocation2 + $0x7c] sm:$0x1]
        %v800 = vsel %vm753, 0, %v799
        %801 = vst [vmem:[#allocation2 + $0x7c] sm:$0x1] %v800
        %v802 = vld [vmem:[#allocation2 + $0x84] sm:$0x1]
        %v803 = vsel %vm753, 0, %v802
        %804 = vst [vmem:[#allocation2 + $0x84] sm:$0x1] %v803
        %v805 = vld [vmem:[#allocation2 + $0x8c] sm:$0x1]
        %v806 = vsel %vm753, 0, %v805
        %807 = vst [vmem:[#allocation2 + $0x8c] sm:$0x1] %v806
        %v808 = vld [vmem:[#allocation2 + $0x94] sm:$0x1]
        %v809 = vsel %vm753, 0, %v808
        %810 = vst [vmem:[#allocation2 + $0x94] sm:$0x1] %v809
        %v811 = vld [vmem:[#allocation2 + $0x9c] sm:$0x1]
        %v812 = vsel %vm753, 0, %v811
        %813 = vst [vmem:[#allocation2 + $0x9c] sm:$0x1] %v812
        %v814 = vld [vmem:[#allocation2 + $0xa4] sm:$0x1]
        %v815 = vsel %vm753, 0, %v814
        %816 = vst [vmem:[#allocation2 + $0xa4] sm:$0x1] %v815
        %v817 = vld [vmem:[#allocation2 + $0xac] sm:$0x1]
        %v818 = vsel %vm753, 0, %v817
        %819 = vst [vmem:[#allocation2 + $0xac] sm:$0x1] %v818
        %v820 = vld [vmem:[#allocation2 + $0xb4] sm:$0x1]
        %v821 = vsel %vm753, 0, %v820
        %822 = vst [vmem:[#allocation2 + $0xb4] sm:$0x1] %v821
        %v823 = vld [vmem:[#allocation2 + $0xbc] sm:$0x1]
        %v824 = vsel %vm753, 0, %v823
        %825 = vst [vmem:[#allocation2 + $0xbc] sm:$0x1] %v824
        %v826 = vld [vmem:[#allocation2 + $0xc4] sm:$0x1]
        %v827 = vsel %vm753, 0, %v826
        %828 = vst [vmem:[#allocation2 + $0xc4] sm:$0x1] %v827
        %v829 = vld [vmem:[#allocation2 + $0xcc] sm:$0x1]
        %v830 = vsel %vm753, 0, %v829
        %831 = vst [vmem:[#allocation2 + $0xcc] sm:$0x1] %v830
        %v832 = vld [vmem:[#allocation2 + $0xd4] sm:$0x1]
        %v833 = vsel %vm753, 0, %v832
        %834 = vst [vmem:[#allocation2 + $0xd4] sm:$0x1] %v833
        %v835 = vld [vmem:[#allocation2 + $0xdc] sm:$0x1]
        %v836 = vsel %vm753, 0, %v835
        %837 = vst [vmem:[#allocation2 + $0xdc] sm:$0x1] %v836
        %v838 = vld [vmem:[#allocation2 + $0xe4] sm:$0x1]
        %v839 = vsel %vm753, 0, %v838
        %840 = vst [vmem:[#allocation2 + $0xe4] sm:$0x1] %v839
        %v841 = vld [vmem:[#allocation2 + $0xec] sm:$0x1]
        %v842 = vsel %vm753, 0, %v841
        %843 = vst [vmem:[#allocation2 + $0xec] sm:$0x1] %v842
        %v844 = vld [vmem:[#allocation2 + $0xf4] sm:$0x1]
        %v845 = vsel %vm753, 0, %v844
        %846 = vst [vmem:[#allocation2 + $0xf4] sm:$0x1] %v845
        %v847 = vld [vmem:[#allocation2 + $0xfc] sm:$0x1]
        %v848 = vsel %vm753, 0, %v847
        %849 = vst [vmem:[#allocation2 + $0xfc] sm:$0x1] %v848
        %v850 = vld [vmem:[#allocation2 + $0x104] sm:$0x1]
        %v851 = vsel %vm753, 0, %v850
        %852 = vst [vmem:[#allocation2 + $0x104] sm:$0x1] %v851
        %v853 = vld [vmem:[#allocation2 + $0x10c] sm:$0x1]
        %v854 = vsel %vm753, 0, %v853
        %855 = vst [vmem:[#allocation2 + $0x10c] sm:$0x1] %v854
        %v856 = vld [vmem:[#allocation2 + $0x114] sm:$0x1]
        %v857 = vsel %vm753, 0, %v856
        %858 = vst [vmem:[#allocation2 + $0x114] sm:$0x1] %v857
        %v859 = vld [vmem:[#allocation2 + $0x11c] sm:$0x1]
        %v860 = vsel %vm753, 0, %v859
        %861 = vst [vmem:[#allocation2 + $0x11c] sm:$0x1] %v860
        %v862 = vld [vmem:[#allocation2 + $0x124] sm:$0x1]
        %v863 = vsel %vm753, 0, %v862
        %864 = vst [vmem:[#allocation2 + $0x124] sm:$0x1] %v863
        %v865 = vld [vmem:[#allocation2 + $0x12c] sm:$0x1]
        %v866 = vsel %vm753, 0, %v865
        %867 = vst [vmem:[#allocation2 + $0x12c] sm:$0x1] %v866
        %v868 = vld [vmem:[#allocation2 + $0x134] sm:$0x1]
        %v869 = vsel %vm753, 0, %v868
        %870 = vst [vmem:[#allocation2 + $0x134] sm:$0x1] %v869
        %v871 = vld [vmem:[#allocation2 + $0x13c] sm:$0x1]
        %v872 = vsel %vm753, 0, %v871
        %873 = vst [vmem:[#allocation2 + $0x13c] sm:$0x1] %v872
        %v874 = vld [vmem:[#allocation2 + $0x144] sm:$0x1]
        %v875 = vsel %vm753, 0, %v874
        %876 = vst [vmem:[#allocation2 + $0x144] sm:$0x1] %v875
        %v877 = vld [vmem:[#allocation2 + $0x14c] sm:$0x1]
        %v878 = vsel %vm753, 0, %v877
        %879 = vst [vmem:[#allocation2 + $0x14c] sm:$0x1] %v878
        %v880 = vld [vmem:[#allocation2 + $0x154] sm:$0x1]
        %v881 = vsel %vm753, 0, %v880
        %882 = vst [vmem:[#allocation2 + $0x154] sm:$0x1] %v881
        %v883 = vld [vmem:[#allocation2 + $0x15c] sm:$0x1]
        %v884 = vsel %vm753, 0, %v883
        %885 = vst [vmem:[#allocation2 + $0x15c] sm:$0x1] %v884
        %v886 = vld [vmem:[#allocation2 + $0x164] sm:$0x1]
        %v887 = vsel %vm753, 0, %v886
        %888 = vst [vmem:[#allocation2 + $0x164] sm:$0x1] %v887
        %v889 = vld [vmem:[#allocation2 + $0x16c] sm:$0x1]
        %v890 = vsel %vm753, 0, %v889
        %891 = vst [vmem:[#allocation2 + $0x16c] sm:$0x1] %v890
        %v892 = vld [vmem:[#allocation2 + $0x174] sm:$0x1]
        %v893 = vsel %vm753, 0, %v892
        %894 = vst [vmem:[#allocation2 + $0x174] sm:$0x1] %v893
        %v895 = vld [vmem:[#allocation2 + $0x17c] sm:$0x1]
        %v896 = vsel %vm753, 0, %v895
        %897 = vst [vmem:[#allocation2 + $0x17c] sm:$0x1] %v896
        %v898 = vld [vmem:[#allocation2 + $0x184] sm:$0x1]
        %v899 = vsel %vm753, 0, %v898
        %900 = vst [vmem:[#allocation2 + $0x184] sm:$0x1] %v899
        %v901 = vld [vmem:[#allocation2 + $0x18c] sm:$0x1]
        %v902 = vsel %vm753, 0, %v901
        %903 = vst [vmem:[#allocation2 + $0x18c] sm:$0x1] %v902
        %v904 = vld [vmem:[#allocation2 + $0x194] sm:$0x1]
        %v905 = vsel %vm753, 0, %v904
        %906 = vst [vmem:[#allocation2 + $0x194] sm:$0x1] %v905
        %v907 = vld [vmem:[#allocation2 + $0x19c] sm:$0x1]
        %v908 = vsel %vm753, 0, %v907
        %909 = vst [vmem:[#allocation2 + $0x19c] sm:$0x1] %v908
        %v910 = vld [vmem:[#allocation2 + $0x1a4] sm:$0x1]
        %v911 = vsel %vm753, 0, %v910
        %912 = vst [vmem:[#allocation2 + $0x1a4] sm:$0x1] %v911
        %v913 = vld [vmem:[#allocation2 + $0x1ac] sm:$0x1]
        %v914 = vsel %vm753, 0, %v913
        %915 = vst [vmem:[#allocation2 + $0x1ac] sm:$0x1] %v914
        %v916 = vld [vmem:[#allocation2 + $0x1b4] sm:$0x1]
        %v917 = vsel %vm753, 0, %v916
        %918 = vst [vmem:[#allocation2 + $0x1b4] sm:$0x1] %v917
        %v919 = vld [vmem:[#allocation2 + $0x1bc] sm:$0x1]
        %v920 = vsel %vm753, 0, %v919
        %921 = vst [vmem:[#allocation2 + $0x1bc] sm:$0x1] %v920
        %v922 = vld [vmem:[#allocation2 + $0x1c4] sm:$0x1]
        %v923 = vsel %vm753, 0, %v922
        %924 = vst [vmem:[#allocation2 + $0x1c4] sm:$0x1] %v923
        %v925 = vld [vmem:[#allocation2 + $0x1cc] sm:$0x1]
        %v926 = vsel %vm753, 0, %v925
        %927 = vst [vmem:[#allocation2 + $0x1cc] sm:$0x1] %v926
        %v928 = vld [vmem:[#allocation2 + $0x1d4] sm:$0x1]
        %v929 = vsel %vm753, 0, %v928
        %930 = vst [vmem:[#allocation2 + $0x1d4] sm:$0x1] %v929
        %v931 = vld [vmem:[#allocation2 + $0x1dc] sm:$0x1]
        %v932 = vsel %vm753, 0, %v931
        %933 = vst [vmem:[#allocation2 + $0x1dc] sm:$0x1] %v932
        %v934 = vld [vmem:[#allocation2 + $0x1e4] sm:$0x1]
        %v935 = vsel %vm753, 0, %v934
        %936 = vst [vmem:[#allocation2 + $0x1e4] sm:$0x1] %v935
        %v937 = vld [vmem:[#allocation2 + $0x1ec] sm:$0x1]
        %v938 = vsel %vm753, 0, %v937
        %939 = vst [vmem:[#allocation2 + $0x1ec] sm:$0x1] %v938
        %v940 = vld [vmem:[#allocation2 + $0x1f4] sm:$0x1]
        %v941 = vsel %vm753, 0, %v940
        %942 = vst [vmem:[#allocation2 + $0x1f4] sm:$0x1] %v941
        %v943 = vld [vmem:[#allocation2 + $0x1fc] sm:$0x1]
        %v944 = vsel %vm753, 0, %v943
        %945 = vst [vmem:[#allocation2 + $0x1fc] sm:$0x1] %v944
        %v946 = vld [vmem:[#allocation2 + $0x204] sm:$0x1]
        %v947 = vsel %vm753, 0, %v946
        %948 = vst [vmem:[#allocation2 + $0x204] sm:$0x1] %v947
        %v949 = vld [vmem:[#allocation2 + $0x20c] sm:$0x1]
        %v950 = vsel %vm753, 0, %v949
        %951 = vst [vmem:[#allocation2 + $0x20c] sm:$0x1] %v950
        %v952 = vld [vmem:[#allocation2 + $0x214] sm:$0x1]
        %v953 = vsel %vm753, 0, %v952
        %954 = vst [vmem:[#allocation2 + $0x214] sm:$0x1] %v953
        %v955 = vld [vmem:[#allocation2 + $0x21c] sm:$0x1]
        %v956 = vsel %vm753, 0, %v955
        %957 = vst [vmem:[#allocation2 + $0x21c] sm:$0x1] %v956
        %v958 = vld [vmem:[#allocation2 + $0x224] sm:$0x1]
        %v959 = vsel %vm753, 0, %v958
        %960 = vst [vmem:[#allocation2 + $0x224] sm:$0x1] %v959
        %v961 = vld [vmem:[#allocation2 + $0x22c] sm:$0x1]
        %v962 = vsel %vm753, 0, %v961
        %963 = vst [vmem:[#allocation2 + $0x22c] sm:$0x1] %v962
        %v964 = vld [vmem:[#allocation2 + $0x234] sm:$0x1]
        %v965 = vsel %vm753, 0, %v964
        %966 = vst [vmem:[#allocation2 + $0x234] sm:$0x1] %v965
        %v967 = vld [vmem:[#allocation2 + $0x23c] sm:$0x1]
        %v968 = vsel %vm753, 0, %v967
        %969 = vst [vmem:[#allocation2 + $0x23c] sm:$0x1] %v968
        %v970 = vld [vmem:[#allocation2 + $0x244] sm:$0x1]
        %v971 = vsel %vm753, 0, %v970
        %972 = vst [vmem:[#allocation2 + $0x244] sm:$0x1] %v971
        %v973 = vld [vmem:[#allocation2 + $0x24c] sm:$0x1]
        %v974 = vsel %vm753, 0, %v973
        %975 = vst [vmem:[#allocation2 + $0x24c] sm:$0x1] %v974
        %v976 = vld [vmem:[#allocation2 + $0x254] sm:$0x1]
        %v977 = vsel %vm753, 0, %v976
        %978 = vst [vmem:[#allocation2 + $0x254] sm:$0x1] %v977
        %v979 = vld [vmem:[#allocation2 + $0x25c] sm:$0x1]
        %v980 = vsel %vm753, 0, %v979
        %981 = vst [vmem:[#allocation2 + $0x25c] sm:$0x1] %v980
        %v982 = vld [vmem:[#allocation2 + $0x264] sm:$0x1]
        %v983 = vsel %vm753, 0, %v982
        %984 = vst [vmem:[#allocation2 + $0x264] sm:$0x1] %v983
        %v985 = vld [vmem:[#allocation2 + $0x26c] sm:$0x1]
        %v986 = vsel %vm753, 0, %v985
        %987 = vst [vmem:[#allocation2 + $0x26c] sm:$0x1] %v986
        %v988 = vld [vmem:[#allocation2 + $0x274] sm:$0x1]
        %v989 = vsel %vm753, 0, %v988
        %990 = vst [vmem:[#allocation2 + $0x274] sm:$0x1] %v989
        %v991 = vld [vmem:[#allocation2 + $0x27c] sm:$0x1]
        %v992 = vsel %vm753, 0, %v991
        %993 = vst [vmem:[#allocation2 + $0x27c] sm:$0x1] %v992
        %v994 = vld [vmem:[#allocation2 + $0x284] sm:$0x1]
        %v995 = vsel %vm753, 0, %v994
        %996 = vst [vmem:[#allocation2 + $0x284] sm:$0x1] %v995
        %v997 = vld [vmem:[#allocation2 + $0x28c] sm:$0x1]
        %v998 = vsel %vm753, 0, %v997
        %999 = vst [vmem:[#allocation2 + $0x28c] sm:$0x1] %v998
        %v1000 = vld [vmem:[#allocation2 + $0x294] sm:$0x1]
        %v1001 = vsel %vm753, 0, %v1000
        %1002 = vst [vmem:[#allocation2 + $0x294] sm:$0x1] %v1001
        %v1003 = vld [vmem:[#allocation2 + $0x29c] sm:$0x1]
        %v1004 = vsel %vm753, 0, %v1003
        %1005 = vst [vmem:[#allocation2 + $0x29c] sm:$0x1] %v1004
        %v1006 = vld [vmem:[#allocation2 + $0x2a4] sm:$0x1]
        %v1007 = vsel %vm753, 0, %v1006
        %1008 = vst [vmem:[#allocation2 + $0x2a4] sm:$0x1] %v1007
        %v1009 = vld [vmem:[#allocation2 + $0x2ac] sm:$0x1]
        %v1010 = vsel %vm753, 0, %v1009
        %1011 = vst [vmem:[#allocation2 + $0x2ac] sm:$0x1] %v1010
        %v1012 = vld [vmem:[#allocation2 + $0x2b4] sm:$0x1]
        %v1013 = vsel %vm753, 0, %v1012
        %1014 = vst [vmem:[#allocation2 + $0x2b4] sm:$0x1] %v1013
        %v1015 = vld [vmem:[#allocation2 + $0x2bc] sm:$0x1]
        %v1016 = vsel %vm753, 0, %v1015
        %1017 = vst [vmem:[#allocation2 + $0x2bc] sm:$0x1] %v1016
        %v1018 = vld [vmem:[#allocation2 + $0x2c4] sm:$0x1]
        %v1019 = vsel %vm753, 0, %v1018
        %1020 = vst [vmem:[#allocation2 + $0x2c4] sm:$0x1] %v1019
        %v1021 = vld [vmem:[#allocation2 + $0x2cc] sm:$0x1]
        %v1022 = vsel %vm753, 0, %v1021
        %1023 = vst [vmem:[#allocation2 + $0x2cc] sm:$0x1] %v1022
        %v1024 = vld [vmem:[#allocation2 + $0x2d4] sm:$0x1]
        %v1025 = vsel %vm753, 0, %v1024
        %1026 = vst [vmem:[#allocation2 + $0x2d4] sm:$0x1] %v1025
        %v1027 = vld [vmem:[#allocation2 + $0x2dc] sm:$0x1]
        %v1028 = vsel %vm753, 0, %v1027
        %1029 = vst [vmem:[#allocation2 + $0x2dc] sm:$0x1] %v1028
        %v1030 = vld [vmem:[#allocation2 + $0x2e4] sm:$0x1]
        %v1031 = vsel %vm753, 0, %v1030
        %1032 = vst [vmem:[#allocation2 + $0x2e4] sm:$0x1] %v1031
        %v1033 = vld [vmem:[#allocation2 + $0x2ec] sm:$0x1]
        %v1034 = vsel %vm753, 0, %v1033
        %1035 = vst [vmem:[#allocation2 + $0x2ec] sm:$0x1] %v1034
        %v1036 = vld [vmem:[#allocation2 + $0x2f4] sm:$0x1]
        %v1037 = vsel %vm753, 0, %v1036
        %1038 = vst [vmem:[#allocation2 + $0x2f4] sm:$0x1] %v1037
        %v1039 = vld [vmem:[#allocation2 + $0x2fc] sm:$0x1]
        %v1040 = vsel %vm753, 0, %v1039
        %1041 = vst [vmem:[#allocation2 + $0x2fc] sm:$0x1] %v1040
        %v1042 = vld [vmem:[#allocation2 + $0x304] sm:$0x1]
        %v1043 = vsel %vm753, 0, %v1042
        %1044 = vst [vmem:[#allocation2 + $0x304] sm:$0x1] %v1043
        %v1045 = vld [vmem:[#allocation2 + $0x30c] sm:$0x1]
        %v1046 = vsel %vm753, 0, %v1045
        %1047 = vst [vmem:[#allocation2 + $0x30c] sm:$0x1] %v1046
        %v1048 = vld [vmem:[#allocation2 + $0x314] sm:$0x1]
        %v1049 = vsel %vm753, 0, %v1048
        %1050 = vst [vmem:[#allocation2 + $0x314] sm:$0x1] %v1049
        %v1051 = vld [vmem:[#allocation2 + $0x31c] sm:$0x1]
        %v1052 = vsel %vm753, 0, %v1051
        %1053 = vst [vmem:[#allocation2 + $0x31c] sm:$0x1] %v1052
        %v1055 = vshrl.u32 %v301, 16
        %v1057 = vrot.slane %v1055, 7
        %v1058 = vshll.u32 %v301, 16
        %v1060 = vor.u32 %v1057, %v1058
        %v1061 = vrot.slane %v1057, 4
        %v1063 = vshrl.u32 %v302, 16
        %v1065 = vrot.slane %v1063, 7
        %v1066 = vshll.u32 %v302, 16
        %v1068 = vor.u32 %v1065, %v1066
        %v1069 = vrot.slane %v1065, 4
        %v1071 = vshrl.u32 %v303, 16
        %v1073 = vrot.slane %v1071, 7
        %v1074 = vshll.u32 %v303, 16
        %v1076 = vor.u32 %v1073, %v1074
        %v1077 = vrot.slane %v1073, 4
        %v1079 = vshrl.u32 %v304, 16
        %v1081 = vrot.slane %v1079, 7
        %v1082 = vshll.u32 %v304, 16
        %v1084 = vor.u32 %v1081, %v1082
        %v1085 = vrot.slane %v1081, 4
        %v1087 = vshrl.u32 %v305, 16
        %v1089 = vrot.slane %v1087, 7
        %v1090 = vshll.u32 %v305, 16
        %v1092 = vor.u32 %v1089, %v1090
        %v1093 = vrot.slane %v1089, 4
        %v1095 = vshrl.u32 %v306, 16
        %v1097 = vrot.slane %v1095, 7
        %v1098 = vshll.u32 %v306, 16
        %v1100 = vor.u32 %v1097, %v1098
        %v1101 = vrot.slane %v1097, 4
        %v1103 = vshrl.u32 %v307, 16
        %v1105 = vrot.slane %v1103, 7
        %v1106 = vshll.u32 %v307, 16
        %v1108 = vor.u32 %v1105, %v1106
        %v1109 = vrot.slane %v1105, 4
        %v1111 = vshrl.u32 %v308, 16
        %v1113 = vrot.slane %v1111, 7
        %v1114 = vshll.u32 %v308, 16
        %v1116 = vor.u32 %v1113, %v1114
        %v1117 = vrot.slane %v1113, 4
        %v1119 = vshrl.u32 %v309, 16
        %v1121 = vrot.slane %v1119, 7
        %v1122 = vshll.u32 %v309, 16
        %v1124 = vor.u32 %v1121, %v1122
        %v1125 = vrot.slane %v1121, 4
        %v1127 = vshrl.u32 %v310, 16
        %v1129 = vrot.slane %v1127, 7
        %v1130 = vshll.u32 %v310, 16
        %v1132 = vor.u32 %v1129, %v1130
        %v1133 = vrot.slane %v1129, 4
        %v1135 = vshrl.u32 %v311, 16
        %v1137 = vrot.slane %v1135, 7
        %v1138 = vshll.u32 %v311, 16
        %v1140 = vor.u32 %v1137, %v1138
        %v1141 = vrot.slane %v1137, 4
        %v1143 = vshrl.u32 %v312, 16
        %v1145 = vrot.slane %v1143, 7
        %v1146 = vshll.u32 %v312, 16
        %v1148 = vor.u32 %v1145, %v1146
        %v1149 = vrot.slane %v1145, 4
        %v1151 = vshrl.u32 %v313, 16
        %v1153 = vrot.slane %v1151, 7
        %v1154 = vshll.u32 %v313, 16
        %v1156 = vor.u32 %v1153, %v1154
        %v1157 = vrot.slane %v1153, 4
        %v1159 = vshrl.u32 %v314, 16
        %v1161 = vrot.slane %v1159, 7
        %v1162 = vshll.u32 %v314, 16
        %v1164 = vor.u32 %v1161, %v1162
        %v1165 = vrot.slane %v1161, 4
        %v1167 = vshrl.u32 %v315, 16
        %v1169 = vrot.slane %v1167, 7
        %v1170 = vshll.u32 %v315, 16
        %v1172 = vor.u32 %v1169, %v1170
        %v1173 = vrot.slane %v1169, 4
        %v1175 = vshrl.u32 %v316, 16
        %v1177 = vrot.slane %v1175, 7
        %v1178 = vshll.u32 %v316, 16
        %v1180 = vor.u32 %v1177, %v1178
        %v1181 = vrot.slane %v1177, 4
        %v1183 = vshrl.u32 %v317, 16
        %v1185 = vrot.slane %v1183, 7
        %v1186 = vshll.u32 %v317, 16
        %v1188 = vor.u32 %v1185, %v1186
        %v1189 = vrot.slane %v1185, 4
        %v1191 = vshrl.u32 %v318, 16
        %v1193 = vrot.slane %v1191, 7
        %v1194 = vshll.u32 %v318, 16
        %v1196 = vor.u32 %v1193, %v1194
        %v1197 = vrot.slane %v1193, 4
        %v1199 = vshrl.u32 %v319, 16
        %v1201 = vrot.slane %v1199, 7
        %v1202 = vshll.u32 %v319, 16
        %v1204 = vor.u32 %v1201, %v1202
        %v1205 = vrot.slane %v1201, 4
        %v1207 = vshrl.u32 %v320, 16
        %v1209 = vrot.slane %v1207, 7
        %v1210 = vshll.u32 %v320, 16
        %v1212 = vor.u32 %v1209, %v1210
        %v1213 = vrot.slane %v1209, 4
        %v1215 = vshrl.u32 %v321, 16
        %v1217 = vrot.slane %v1215, 7
        %v1218 = vshll.u32 %v321, 16
        %v1220 = vor.u32 %v1217, %v1218
        %v1221 = vrot.slane %v1217, 4
        %v1223 = vshrl.u32 %v322, 16
        %v1225 = vrot.slane %v1223, 7
        %v1226 = vshll.u32 %v322, 16
        %v1228 = vor.u32 %v1225, %v1226
        %v1229 = vrot.slane %v1225, 4
        %v1231 = vshrl.u32 %v323, 16
        %v1233 = vrot.slane %v1231, 7
        %v1234 = vshll.u32 %v323, 16
        %v1236 = vor.u32 %v1233, %v1234
        %v1237 = vrot.slane %v1233, 4
        %v1239 = vshrl.u32 %v324, 16
        %v1241 = vrot.slane %v1239, 7
        %v1242 = vshll.u32 %v324, 16
        %v1244 = vor.u32 %v1241, %v1242
        %v1245 = vrot.slane %v1241, 4
        %v1247 = vshrl.u32 %v325, 16
        %v1249 = vrot.slane %v1247, 7
        %v1250 = vshll.u32 %v325, 16
        %v1252 = vor.u32 %v1249, %v1250
        %v1253 = vrot.slane %v1249, 4
        %v1255 = vshrl.u32 %v326, 16
        %v1257 = vrot.slane %v1255, 7
        %v1258 = vshll.u32 %v326, 16
        %v1260 = vor.u32 %v1257, %v1258
        %v1261 = vrot.slane %v1257, 4
        %v1263 = vshrl.u32 %v327, 16
        %v1265 = vrot.slane %v1263, 7
        %v1266 = vshll.u32 %v327, 16
        %v1268 = vor.u32 %v1265, %v1266
        %v1269 = vrot.slane %v1265, 4
        %v1271 = vshrl.u32 %v328, 16
        %v1273 = vrot.slane %v1271, 7
        %v1274 = vshll.u32 %v328, 16
        %v1276 = vor.u32 %v1273, %v1274
        %v1277 = vrot.slane %v1273, 4
        %v1279 = vshrl.u32 %v329, 16
        %v1281 = vrot.slane %v1279, 7
        %v1282 = vshll.u32 %v329, 16
        %v1284 = vor.u32 %v1281, %v1282
        %v1285 = vrot.slane %v1281, 4
        %v1287 = vshrl.u32 %v330, 16
        %v1289 = vrot.slane %v1287, 7
        %v1290 = vshll.u32 %v330, 16
        %v1292 = vor.u32 %v1289, %v1290
        %v1293 = vrot.slane %v1289, 4
        %v1295 = vshrl.u32 %v331, 16
        %v1297 = vrot.slane %v1295, 7
        %v1298 = vshll.u32 %v331, 16
        %v1300 = vor.u32 %v1297, %v1298
        %v1301 = vrot.slane %v1297, 4
        %v1303 = vshrl.u32 %v332, 16
        %v1305 = vrot.slane %v1303, 7
        %v1306 = vshll.u32 %v332, 16
        %v1308 = vor.u32 %v1305, %v1306
        %v1309 = vrot.slane %v1305, 4
        %v1311 = vshrl.u32 %v333, 16
        %v1313 = vrot.slane %v1311, 7
        %v1314 = vshll.u32 %v333, 16
        %v1316 = vor.u32 %v1313, %v1314
        %v1317 = vrot.slane %v1313, 4
        %v1319 = vshrl.u32 %v334, 16
        %v1321 = vrot.slane %v1319, 7
        %v1322 = vshll.u32 %v334, 16
        %v1324 = vor.u32 %v1321, %v1322
        %v1325 = vrot.slane %v1321, 4
        %v1327 = vshrl.u32 %v335, 16
        %v1329 = vrot.slane %v1327, 7
        %v1330 = vshll.u32 %v335, 16
        %v1332 = vor.u32 %v1329, %v1330
        %v1333 = vrot.slane %v1329, 4
        %v1335 = vshrl.u32 %v336, 16
        %v1337 = vrot.slane %v1335, 7
        %v1338 = vshll.u32 %v336, 16
        %v1340 = vor.u32 %v1337, %v1338
        %v1341 = vrot.slane %v1337, 4
        %v1343 = vshrl.u32 %v337, 16
        %v1345 = vrot.slane %v1343, 7
        %v1346 = vshll.u32 %v337, 16
        %v1348 = vor.u32 %v1345, %v1346
        %v1349 = vrot.slane %v1345, 4
        %v1351 = vshrl.u32 %v338, 16
        %v1353 = vrot.slane %v1351, 7
        %v1354 = vshll.u32 %v338, 16
        %v1356 = vor.u32 %v1353, %v1354
        %v1357 = vrot.slane %v1353, 4
        %v1359 = vshrl.u32 %v339, 16
        %v1361 = vrot.slane %v1359, 7
        %v1362 = vshll.u32 %v339, 16
        %v1364 = vor.u32 %v1361, %v1362
        %v1365 = vrot.slane %v1361, 4
        %v1367 = vshrl.u32 %v340, 16
        %v1369 = vrot.slane %v1367, 7
        %v1370 = vshll.u32 %v340, 16
        %v1372 = vor.u32 %v1369, %v1370
        %v1373 = vrot.slane %v1369, 4
        %v1375 = vshrl.u32 %v341, 16
        %v1377 = vrot.slane %v1375, 7
        %v1378 = vshll.u32 %v341, 16
        %v1380 = vor.u32 %v1377, %v1378
        %v1381 = vrot.slane %v1377, 4
        %v1383 = vshrl.u32 %v342, 16
        %v1385 = vrot.slane %v1383, 7
        %v1386 = vshll.u32 %v342, 16
        %v1388 = vor.u32 %v1385, %v1386
        %v1389 = vrot.slane %v1385, 4
        %v1391 = vshrl.u32 %v343, 16
        %v1393 = vrot.slane %v1391, 7
        %v1394 = vshll.u32 %v343, 16
        %v1396 = vor.u32 %v1393, %v1394
        %v1397 = vrot.slane %v1393, 4
        %v1399 = vshrl.u32 %v344, 16
        %v1401 = vrot.slane %v1399, 7
        %v1402 = vshll.u32 %v344, 16
        %v1404 = vor.u32 %v1401, %v1402
        %v1405 = vrot.slane %v1401, 4
        %v1407 = vshrl.u32 %v345, 16
        %v1409 = vrot.slane %v1407, 7
        %v1410 = vshll.u32 %v345, 16
        %v1412 = vor.u32 %v1409, %v1410
        %v1413 = vrot.slane %v1409, 4
        %v1415 = vshrl.u32 %v346, 16
        %v1417 = vrot.slane %v1415, 7
        %v1418 = vshll.u32 %v346, 16
        %v1420 = vor.u32 %v1417, %v1418
        %v1421 = vrot.slane %v1417, 4
        %v1423 = vshrl.u32 %v347, 16
        %v1425 = vrot.slane %v1423, 7
        %v1426 = vshll.u32 %v347, 16
        %v1428 = vor.u32 %v1425, %v1426
        %v1429 = vrot.slane %v1425, 4
        %v1431 = vshrl.u32 %v348, 16
        %v1433 = vrot.slane %v1431, 7
        %v1434 = vshll.u32 %v348, 16
        %v1436 = vor.u32 %v1433, %v1434
        %v1437 = vrot.slane %v1433, 4
        %v1439 = vshrl.u32 %v349, 16
        %v1441 = vrot.slane %v1439, 7
        %v1442 = vshll.u32 %v349, 16
        %v1444 = vor.u32 %v1441, %v1442
        %v1445 = vrot.slane %v1441, 4
        %v1447 = vshrl.u32 %v350, 16
        %v1449 = vrot.slane %v1447, 7
        %v1450 = vshll.u32 %v350, 16
        %v1452 = vor.u32 %v1449, %v1450
        %v1453 = vrot.slane %v1449, 4
        %v1455 = vshrl.u32 %v351, 16
        %v1457 = vrot.slane %v1455, 7
        %v1458 = vshll.u32 %v351, 16
        %v1460 = vor.u32 %v1457, %v1458
        %v1461 = vrot.slane %v1457, 4
        %v1463 = vshrl.u32 %v352, 16
        %v1465 = vrot.slane %v1463, 7
        %v1466 = vshll.u32 %v352, 16
        %v1468 = vor.u32 %v1465, %v1466
        %v1469 = vrot.slane %v1465, 4
        %v1471 = vshrl.u32 %v353, 16
        %v1473 = vrot.slane %v1471, 7
        %v1474 = vshll.u32 %v353, 16
        %v1476 = vor.u32 %v1473, %v1474
        %v1477 = vrot.slane %v1473, 4
        %v1479 = vshrl.u32 %v354, 16
        %v1481 = vrot.slane %v1479, 7
        %v1482 = vshll.u32 %v354, 16
        %v1484 = vor.u32 %v1481, %v1482
        %v1485 = vrot.slane %v1481, 4
        %v1487 = vshrl.u32 %v355, 16
        %v1489 = vrot.slane %v1487, 7
        %v1490 = vshll.u32 %v355, 16
        %v1492 = vor.u32 %v1489, %v1490
        %v1493 = vrot.slane %v1489, 4
        %v1495 = vshrl.u32 %v356, 16
        %v1497 = vrot.slane %v1495, 7
        %v1498 = vshll.u32 %v356, 16
        %v1500 = vor.u32 %v1497, %v1498
        %v1501 = vrot.slane %v1497, 4
        %v1503 = vshrl.u32 %v357, 16
        %v1505 = vrot.slane %v1503, 7
        %v1506 = vshll.u32 %v357, 16
        %v1508 = vor.u32 %v1505, %v1506
        %v1509 = vrot.slane %v1505, 4
        %v1511 = vshrl.u32 %v358, 16
        %v1513 = vrot.slane %v1511, 7
        %v1514 = vshll.u32 %v358, 16
        %v1516 = vor.u32 %v1513, %v1514
        %v1517 = vrot.slane %v1513, 4
        %v1519 = vshrl.u32 %v359, 16
        %v1521 = vrot.slane %v1519, 7
        %v1522 = vshll.u32 %v359, 16
        %v1524 = vor.u32 %v1521, %v1522
        %v1525 = vrot.slane %v1521, 4
        %v1527 = vshrl.u32 %v360, 16
        %v1529 = vrot.slane %v1527, 7
        %v1530 = vshll.u32 %v360, 16
        %v1532 = vor.u32 %v1529, %v1530
        %v1533 = vrot.slane %v1529, 4
        %v1535 = vshrl.u32 %v361, 16
        %v1537 = vrot.slane %v1535, 7
        %v1538 = vshll.u32 %v361, 16
        %v1540 = vor.u32 %v1537, %v1538
        %v1541 = vrot.slane %v1537, 4
        %v1543 = vshrl.u32 %v362, 16
        %v1545 = vrot.slane %v1543, 7
        %v1546 = vshll.u32 %v362, 16
        %v1548 = vor.u32 %v1545, %v1546
        %v1549 = vrot.slane %v1545, 4
        %v1551 = vshrl.u32 %v363, 16
        %v1553 = vrot.slane %v1551, 7
        %v1554 = vshll.u32 %v363, 16
        %v1556 = vor.u32 %v1553, %v1554
        %v1557 = vrot.slane %v1553, 4
        %v1559 = vshrl.u32 %v364, 16
        %v1561 = vrot.slane %v1559, 7
        %v1562 = vshll.u32 %v364, 16
        %v1564 = vor.u32 %v1561, %v1562
        %v1565 = vrot.slane %v1561, 4
        %s1694 = scalar_lea.vmem [#allocation2], 88
        %vm1695 = vcmask 27648
        %vm1696 = vmand %vm1695, %vm752
        %v1697 = vld [vmem:[%s1694] sm:$0xf]
        %v1698 = vsel %vm1696, %v1060, %v1697
        %1699 = vst [vmem:[%s1694] sm:$0xf] %v1698
        %v1700 = vld [vmem:[%s1694 + $0x4] sm:$0x1]
        %v1701 = vsel %vm451, %v1061, %v1700
        %1702 = vst [vmem:[%s1694 + $0x4] sm:$0x1] %v1701
        %v1703 = vld [vmem:[%s1694 + $0x8] sm:$0xf]
        %v1704 = vsel %vm1696, %v1068, %v1703
        %1705 = vst [vmem:[%s1694 + $0x8] sm:$0xf] %v1704
        %v1706 = vld [vmem:[%s1694 + $0xc] sm:$0x1]
        %v1707 = vsel %vm451, %v1069, %v1706
        %1708 = vst [vmem:[%s1694 + $0xc] sm:$0x1] %v1707
        %v1709 = vld [vmem:[%s1694 + $0x10] sm:$0xf]
        %v1710 = vsel %vm1696, %v1076, %v1709
        %1711 = vst [vmem:[%s1694 + $0x10] sm:$0xf] %v1710
        %v1712 = vld [vmem:[%s1694 + $0x14] sm:$0x1]
        %v1713 = vsel %vm451, %v1077, %v1712
        %1714 = vst [vmem:[%s1694 + $0x14] sm:$0x1] %v1713
        %v1715 = vld [vmem:[%s1694 + $0x18] sm:$0xf]
        %v1716 = vsel %vm1696, %v1084, %v1715
        %1717 = vst [vmem:[%s1694 + $0x18] sm:$0xf] %v1716
        %v1718 = vld [vmem:[%s1694 + $0x1c] sm:$0x1]
        %v1719 = vsel %vm451, %v1085, %v1718
        %1720 = vst [vmem:[%s1694 + $0x1c] sm:$0x1] %v1719
        %v1721 = vld [vmem:[%s1694 + $0x20] sm:$0xf]
        %v1722 = vsel %vm1696, %v1092, %v1721
        %1723 = vst [vmem:[%s1694 + $0x20] sm:$0xf] %v1722
        %v1724 = vld [vmem:[%s1694 + $0x24] sm:$0x1]
        %v1725 = vsel %vm451, %v1093, %v1724
        %1726 = vst [vmem:[%s1694 + $0x24] sm:$0x1] %v1725
        %v1727 = vld [vmem:[%s1694 + $0x28] sm:$0xf]
        %v1728 = vsel %vm1696, %v1100, %v1727
        %1729 = vst [vmem:[%s1694 + $0x28] sm:$0xf] %v1728
        %v1730 = vld [vmem:[%s1694 + $0x2c] sm:$0x1]
        %v1731 = vsel %vm451, %v1101, %v1730
        %1732 = vst [vmem:[%s1694 + $0x2c] sm:$0x1] %v1731
        %v1733 = vld [vmem:[%s1694 + $0x30] sm:$0xf]
        %v1734 = vsel %vm1696, %v1108, %v1733
        %1735 = vst [vmem:[%s1694 + $0x30] sm:$0xf] %v1734
        %v1736 = vld [vmem:[%s1694 + $0x34] sm:$0x1]
        %v1737 = vsel %vm451, %v1109, %v1736
        %1738 = vst [vmem:[%s1694 + $0x34] sm:$0x1] %v1737
        %v1739 = vld [vmem:[%s1694 + $0x38] sm:$0xf]
        %v1740 = vsel %vm1696, %v1116, %v1739
        %1741 = vst [vmem:[%s1694 + $0x38] sm:$0xf] %v1740
        %v1742 = vld [vmem:[%s1694 + $0x3c] sm:$0x1]
        %v1743 = vsel %vm451, %v1117, %v1742
        %1744 = vst [vmem:[%s1694 + $0x3c] sm:$0x1] %v1743
        %v1745 = vld [vmem:[%s1694 + $0x50] sm:$0xf]
        %v1746 = vsel %vm1696, %v1124, %v1745
        %1747 = vst [vmem:[%s1694 + $0x50] sm:$0xf] %v1746
        %v1748 = vld [vmem:[%s1694 + $0x54] sm:$0x1]
        %v1749 = vsel %vm451, %v1125, %v1748
        %1750 = vst [vmem:[%s1694 + $0x54] sm:$0x1] %v1749
        %v1751 = vld [vmem:[%s1694 + $0x58] sm:$0xf]
        %v1752 = vsel %vm1696, %v1132, %v1751
        %1753 = vst [vmem:[%s1694 + $0x58] sm:$0xf] %v1752
        %v1754 = vld [vmem:[%s1694 + $0x5c] sm:$0x1]
        %v1755 = vsel %vm451, %v1133, %v1754
        %1756 = vst [vmem:[%s1694 + $0x5c] sm:$0x1] %v1755
        %v1757 = vld [vmem:[%s1694 + $0x60] sm:$0xf]
        %v1758 = vsel %vm1696, %v1140, %v1757
        %1759 = vst [vmem:[%s1694 + $0x60] sm:$0xf] %v1758
        %v1760 = vld [vmem:[%s1694 + $0x64] sm:$0x1]
        %v1761 = vsel %vm451, %v1141, %v1760
        %1762 = vst [vmem:[%s1694 + $0x64] sm:$0x1] %v1761
        %v1763 = vld [vmem:[%s1694 + $0x68] sm:$0xf]
        %v1764 = vsel %vm1696, %v1148, %v1763
        %1765 = vst [vmem:[%s1694 + $0x68] sm:$0xf] %v1764
        %v1766 = vld [vmem:[%s1694 + $0x6c] sm:$0x1]
        %v1767 = vsel %vm451, %v1149, %v1766
        %1768 = vst [vmem:[%s1694 + $0x6c] sm:$0x1] %v1767
        %v1769 = vld [vmem:[%s1694 + $0x70] sm:$0xf]
        %v1770 = vsel %vm1696, %v1156, %v1769
        %1771 = vst [vmem:[%s1694 + $0x70] sm:$0xf] %v1770
        %v1772 = vld [vmem:[%s1694 + $0x74] sm:$0x1]
        %v1773 = vsel %vm451, %v1157, %v1772
        %1774 = vst [vmem:[%s1694 + $0x74] sm:$0x1] %v1773
        %v1775 = vld [vmem:[%s1694 + $0x78] sm:$0xf]
        %v1776 = vsel %vm1696, %v1164, %v1775
        %1777 = vst [vmem:[%s1694 + $0x78] sm:$0xf] %v1776
        %v1778 = vld [vmem:[%s1694 + $0x7c] sm:$0x1]
        %v1779 = vsel %vm451, %v1165, %v1778
        %1780 = vst [vmem:[%s1694 + $0x7c] sm:$0x1] %v1779
        %v1781 = vld [vmem:[%s1694 + $0x80] sm:$0xf]
        %v1782 = vsel %vm1696, %v1172, %v1781
        %1783 = vst [vmem:[%s1694 + $0x80] sm:$0xf] %v1782
        %v1784 = vld [vmem:[%s1694 + $0x84] sm:$0x1]
        %v1785 = vsel %vm451, %v1173, %v1784
        %1786 = vst [vmem:[%s1694 + $0x84] sm:$0x1] %v1785
        %v1787 = vld [vmem:[%s1694 + $0x88] sm:$0xf]
        %v1788 = vsel %vm1696, %v1180, %v1787
        %1789 = vst [vmem:[%s1694 + $0x88] sm:$0xf] %v1788
        %v1790 = vld [vmem:[%s1694 + $0x8c] sm:$0x1]
        %v1791 = vsel %vm451, %v1181, %v1790
        %1792 = vst [vmem:[%s1694 + $0x8c] sm:$0x1] %v1791
        %v1793 = vld [vmem:[%s1694 + $0xa0] sm:$0xf]
        %v1794 = vsel %vm1696, %v1188, %v1793
        %1795 = vst [vmem:[%s1694 + $0xa0] sm:$0xf] %v1794
        %v1796 = vld [vmem:[%s1694 + $0xa4] sm:$0x1]
        %v1797 = vsel %vm451, %v1189, %v1796
        %1798 = vst [vmem:[%s1694 + $0xa4] sm:$0x1] %v1797
        %v1799 = vld [vmem:[%s1694 + $0xa8] sm:$0xf]
        %v1800 = vsel %vm1696, %v1196, %v1799
        %1801 = vst [vmem:[%s1694 + $0xa8] sm:$0xf] %v1800
        %v1802 = vld [vmem:[%s1694 + $0xac] sm:$0x1]
        %v1803 = vsel %vm451, %v1197, %v1802
        %1804 = vst [vmem:[%s1694 + $0xac] sm:$0x1] %v1803
        %v1805 = vld [vmem:[%s1694 + $0xb0] sm:$0xf]
        %v1806 = vsel %vm1696, %v1204, %v1805
        %1807 = vst [vmem:[%s1694 + $0xb0] sm:$0xf] %v1806
        %v1808 = vld [vmem:[%s1694 + $0xb4] sm:$0x1]
        %v1809 = vsel %vm451, %v1205, %v1808
        %1810 = vst [vmem:[%s1694 + $0xb4] sm:$0x1] %v1809
        %v1811 = vld [vmem:[%s1694 + $0xb8] sm:$0xf]
        %v1812 = vsel %vm1696, %v1212, %v1811
        %1813 = vst [vmem:[%s1694 + $0xb8] sm:$0xf] %v1812
        %v1814 = vld [vmem:[%s1694 + $0xbc] sm:$0x1]
        %v1815 = vsel %vm451, %v1213, %v1814
        %1816 = vst [vmem:[%s1694 + $0xbc] sm:$0x1] %v1815
        %v1817 = vld [vmem:[%s1694 + $0xc0] sm:$0xf]
        %v1818 = vsel %vm1696, %v1220, %v1817
        %1819 = vst [vmem:[%s1694 + $0xc0] sm:$0xf] %v1818
        %v1820 = vld [vmem:[%s1694 + $0xc4] sm:$0x1]
        %v1821 = vsel %vm451, %v1221, %v1820
        %1822 = vst [vmem:[%s1694 + $0xc4] sm:$0x1] %v1821
        %v1823 = vld [vmem:[%s1694 + $0xc8] sm:$0xf]
        %v1824 = vsel %vm1696, %v1228, %v1823
        %1825 = vst [vmem:[%s1694 + $0xc8] sm:$0xf] %v1824
        %v1826 = vld [vmem:[%s1694 + $0xcc] sm:$0x1]
        %v1827 = vsel %vm451, %v1229, %v1826
        %1828 = vst [vmem:[%s1694 + $0xcc] sm:$0x1] %v1827
        %v1829 = vld [vmem:[%s1694 + $0xd0] sm:$0xf]
        %v1830 = vsel %vm1696, %v1236, %v1829
        %1831 = vst [vmem:[%s1694 + $0xd0] sm:$0xf] %v1830
        %v1832 = vld [vmem:[%s1694 + $0xd4] sm:$0x1]
        %v1833 = vsel %vm451, %v1237, %v1832
        %1834 = vst [vmem:[%s1694 + $0xd4] sm:$0x1] %v1833
        %v1835 = vld [vmem:[%s1694 + $0xd8] sm:$0xf]
        %v1836 = vsel %vm1696, %v1244, %v1835
        %1837 = vst [vmem:[%s1694 + $0xd8] sm:$0xf] %v1836
        %v1838 = vld [vmem:[%s1694 + $0xdc] sm:$0x1]
        %v1839 = vsel %vm451, %v1245, %v1838
        %1840 = vst [vmem:[%s1694 + $0xdc] sm:$0x1] %v1839
        %v1841 = vld [vmem:[%s1694 + $0xf0] sm:$0xf]
        %v1842 = vsel %vm1696, %v1252, %v1841
        %1843 = vst [vmem:[%s1694 + $0xf0] sm:$0xf] %v1842
        %v1844 = vld [vmem:[%s1694 + $0xf4] sm:$0x1]
        %v1845 = vsel %vm451, %v1253, %v1844
        %1846 = vst [vmem:[%s1694 + $0xf4] sm:$0x1] %v1845
        %v1847 = vld [vmem:[%s1694 + $0xf8] sm:$0xf]
        %v1848 = vsel %vm1696, %v1260, %v1847
        %1849 = vst [vmem:[%s1694 + $0xf8] sm:$0xf] %v1848
        %v1850 = vld [vmem:[%s1694 + $0xfc] sm:$0x1]
        %v1851 = vsel %vm451, %v1261, %v1850
        %1852 = vst [vmem:[%s1694 + $0xfc] sm:$0x1] %v1851
        %v1853 = vld [vmem:[%s1694 + $0x100] sm:$0xf]
        %v1854 = vsel %vm1696, %v1268, %v1853
        %1855 = vst [vmem:[%s1694 + $0x100] sm:$0xf] %v1854
        %v1856 = vld [vmem:[%s1694 + $0x104] sm:$0x1]
        %v1857 = vsel %vm451, %v1269, %v1856
        %1858 = vst [vmem:[%s1694 + $0x104] sm:$0x1] %v1857
        %v1859 = vld [vmem:[%s1694 + $0x108] sm:$0xf]
        %v1860 = vsel %vm1696, %v1276, %v1859
        %1861 = vst [vmem:[%s1694 + $0x108] sm:$0xf] %v1860
        %v1862 = vld [vmem:[%s1694 + $0x10c] sm:$0x1]
        %v1863 = vsel %vm451, %v1277, %v1862
        %1864 = vst [vmem:[%s1694 + $0x10c] sm:$0x1] %v1863
        %v1865 = vld [vmem:[%s1694 + $0x110] sm:$0xf]
        %v1866 = vsel %vm1696, %v1284, %v1865
        %1867 = vst [vmem:[%s1694 + $0x110] sm:$0xf] %v1866
        %v1868 = vld [vmem:[%s1694 + $0x114] sm:$0x1]
        %v1869 = vsel %vm451, %v1285, %v1868
        %1870 = vst [vmem:[%s1694 + $0x114] sm:$0x1] %v1869
        %v1871 = vld [vmem:[%s1694 + $0x118] sm:$0xf]
        %v1872 = vsel %vm1696, %v1292, %v1871
        %1873 = vst [vmem:[%s1694 + $0x118] sm:$0xf] %v1872
        %v1874 = vld [vmem:[%s1694 + $0x11c] sm:$0x1]
        %v1875 = vsel %vm451, %v1293, %v1874
        %1876 = vst [vmem:[%s1694 + $0x11c] sm:$0x1] %v1875
        %v1877 = vld [vmem:[%s1694 + $0x120] sm:$0xf]
        %v1878 = vsel %vm1696, %v1300, %v1877
        %1879 = vst [vmem:[%s1694 + $0x120] sm:$0xf] %v1878
        %v1880 = vld [vmem:[%s1694 + $0x124] sm:$0x1]
        %v1881 = vsel %vm451, %v1301, %v1880
        %1882 = vst [vmem:[%s1694 + $0x124] sm:$0x1] %v1881
        %v1883 = vld [vmem:[%s1694 + $0x128] sm:$0xf]
        %v1884 = vsel %vm1696, %v1308, %v1883
        %1885 = vst [vmem:[%s1694 + $0x128] sm:$0xf] %v1884
        %v1886 = vld [vmem:[%s1694 + $0x12c] sm:$0x1]
        %v1887 = vsel %vm451, %v1309, %v1886
        %1888 = vst [vmem:[%s1694 + $0x12c] sm:$0x1] %v1887
        %v1889 = vld [vmem:[%s1694 + $0x140] sm:$0xf]
        %v1890 = vsel %vm1696, %v1316, %v1889
        %1891 = vst [vmem:[%s1694 + $0x140] sm:$0xf] %v1890
        %v1892 = vld [vmem:[%s1694 + $0x144] sm:$0x1]
        %v1893 = vsel %vm451, %v1317, %v1892
        %1894 = vst [vmem:[%s1694 + $0x144] sm:$0x1] %v1893
        %v1895 = vld [vmem:[%s1694 + $0x148] sm:$0xf]
        %v1896 = vsel %vm1696, %v1324, %v1895
        %1897 = vst [vmem:[%s1694 + $0x148] sm:$0xf] %v1896
        %v1898 = vld [vmem:[%s1694 + $0x14c] sm:$0x1]
        %v1899 = vsel %vm451, %v1325, %v1898
        %1900 = vst [vmem:[%s1694 + $0x14c] sm:$0x1] %v1899
        %v1901 = vld [vmem:[%s1694 + $0x150] sm:$0xf]
        %v1902 = vsel %vm1696, %v1332, %v1901
        %1903 = vst [vmem:[%s1694 + $0x150] sm:$0xf] %v1902
        %v1904 = vld [vmem:[%s1694 + $0x154] sm:$0x1]
        %v1905 = vsel %vm451, %v1333, %v1904
        %1906 = vst [vmem:[%s1694 + $0x154] sm:$0x1] %v1905
        %v1907 = vld [vmem:[%s1694 + $0x158] sm:$0xf]
        %v1908 = vsel %vm1696, %v1340, %v1907
        %1909 = vst [vmem:[%s1694 + $0x158] sm:$0xf] %v1908
        %v1910 = vld [vmem:[%s1694 + $0x15c] sm:$0x1]
        %v1911 = vsel %vm451, %v1341, %v1910
        %1912 = vst [vmem:[%s1694 + $0x15c] sm:$0x1] %v1911
        %v1913 = vld [vmem:[%s1694 + $0x160] sm:$0xf]
        %v1914 = vsel %vm1696, %v1348, %v1913
        %1915 = vst [vmem:[%s1694 + $0x160] sm:$0xf] %v1914
        %v1916 = vld [vmem:[%s1694 + $0x164] sm:$0x1]
        %v1917 = vsel %vm451, %v1349, %v1916
        %1918 = vst [vmem:[%s1694 + $0x164] sm:$0x1] %v1917
        %v1919 = vld [vmem:[%s1694 + $0x168] sm:$0xf]
        %v1920 = vsel %vm1696, %v1356, %v1919
        %1921 = vst [vmem:[%s1694 + $0x168] sm:$0xf] %v1920
        %v1922 = vld [vmem:[%s1694 + $0x16c] sm:$0x1]
        %v1923 = vsel %vm451, %v1357, %v1922
        %1924 = vst [vmem:[%s1694 + $0x16c] sm:$0x1] %v1923
        %v1925 = vld [vmem:[%s1694 + $0x170] sm:$0xf]
        %v1926 = vsel %vm1696, %v1364, %v1925
        %1927 = vst [vmem:[%s1694 + $0x170] sm:$0xf] %v1926
        %v1928 = vld [vmem:[%s1694 + $0x174] sm:$0x1]
        %v1929 = vsel %vm451, %v1365, %v1928
        %1930 = vst [vmem:[%s1694 + $0x174] sm:$0x1] %v1929
        %v1931 = vld [vmem:[%s1694 + $0x178] sm:$0xf]
        %v1932 = vsel %vm1696, %v1372, %v1931
        %1933 = vst [vmem:[%s1694 + $0x178] sm:$0xf] %v1932
        %v1934 = vld [vmem:[%s1694 + $0x17c] sm:$0x1]
        %v1935 = vsel %vm451, %v1373, %v1934
        %1936 = vst [vmem:[%s1694 + $0x17c] sm:$0x1] %v1935
        %v1937 = vld [vmem:[%s1694 + $0x190] sm:$0xf]
        %v1938 = vsel %vm1696, %v1380, %v1937
        %1939 = vst [vmem:[%s1694 + $0x190] sm:$0xf] %v1938
        %v1940 = vld [vmem:[%s1694 + $0x194] sm:$0x1]
        %v1941 = vsel %vm451, %v1381, %v1940
        %1942 = vst [vmem:[%s1694 + $0x194] sm:$0x1] %v1941
        %v1943 = vld [vmem:[%s1694 + $0x198] sm:$0xf]
        %v1944 = vsel %vm1696, %v1388, %v1943
        %1945 = vst [vmem:[%s1694 + $0x198] sm:$0xf] %v1944
        %v1946 = vld [vmem:[%s1694 + $0x19c] sm:$0x1]
        %v1947 = vsel %vm451, %v1389, %v1946
        %1948 = vst [vmem:[%s1694 + $0x19c] sm:$0x1] %v1947
        %v1949 = vld [vmem:[%s1694 + $0x1a0] sm:$0xf]
        %v1950 = vsel %vm1696, %v1396, %v1949
        %1951 = vst [vmem:[%s1694 + $0x1a0] sm:$0xf] %v1950
        %v1952 = vld [vmem:[%s1694 + $0x1a4] sm:$0x1]
        %v1953 = vsel %vm451, %v1397, %v1952
        %1954 = vst [vmem:[%s1694 + $0x1a4] sm:$0x1] %v1953
        %v1955 = vld [vmem:[%s1694 + $0x1a8] sm:$0xf]
        %v1956 = vsel %vm1696, %v1404, %v1955
        %1957 = vst [vmem:[%s1694 + $0x1a8] sm:$0xf] %v1956
        %v1958 = vld [vmem:[%s1694 + $0x1ac] sm:$0x1]
        %v1959 = vsel %vm451, %v1405, %v1958
        %1960 = vst [vmem:[%s1694 + $0x1ac] sm:$0x1] %v1959
        %v1961 = vld [vmem:[%s1694 + $0x1b0] sm:$0xf]
        %v1962 = vsel %vm1696, %v1412, %v1961
        %1963 = vst [vmem:[%s1694 + $0x1b0] sm:$0xf] %v1962
        %v1964 = vld [vmem:[%s1694 + $0x1b4] sm:$0x1]
        %v1965 = vsel %vm451, %v1413, %v1964
        %1966 = vst [vmem:[%s1694 + $0x1b4] sm:$0x1] %v1965
        %v1967 = vld [vmem:[%s1694 + $0x1b8] sm:$0xf]
        %v1968 = vsel %vm1696, %v1420, %v1967
        %1969 = vst [vmem:[%s1694 + $0x1b8] sm:$0xf] %v1968
        %v1970 = vld [vmem:[%s1694 + $0x1bc] sm:$0x1]
        %v1971 = vsel %vm451, %v1421, %v1970
        %1972 = vst [vmem:[%s1694 + $0x1bc] sm:$0x1] %v1971
        %v1973 = vld [vmem:[%s1694 + $0x1c0] sm:$0xf]
        %v1974 = vsel %vm1696, %v1428, %v1973
        %1975 = vst [vmem:[%s1694 + $0x1c0] sm:$0xf] %v1974
        %v1976 = vld [vmem:[%s1694 + $0x1c4] sm:$0x1]
        %v1977 = vsel %vm451, %v1429, %v1976
        %1978 = vst [vmem:[%s1694 + $0x1c4] sm:$0x1] %v1977
        %v1979 = vld [vmem:[%s1694 + $0x1c8] sm:$0xf]
        %v1980 = vsel %vm1696, %v1436, %v1979
        %1981 = vst [vmem:[%s1694 + $0x1c8] sm:$0xf] %v1980
        %v1982 = vld [vmem:[%s1694 + $0x1cc] sm:$0x1]
        %v1983 = vsel %vm451, %v1437, %v1982
        %1984 = vst [vmem:[%s1694 + $0x1cc] sm:$0x1] %v1983
        %v1985 = vld [vmem:[%s1694 + $0x1e0] sm:$0xf]
        %v1986 = vsel %vm1696, %v1444, %v1985
        %1987 = vst [vmem:[%s1694 + $0x1e0] sm:$0xf] %v1986
        %v1988 = vld [vmem:[%s1694 + $0x1e4] sm:$0x1]
        %v1989 = vsel %vm451, %v1445, %v1988
        %1990 = vst [vmem:[%s1694 + $0x1e4] sm:$0x1] %v1989
        %v1991 = vld [vmem:[%s1694 + $0x1e8] sm:$0xf]
        %v1992 = vsel %vm1696, %v1452, %v1991
        %1993 = vst [vmem:[%s1694 + $0x1e8] sm:$0xf] %v1992
        %v1994 = vld [vmem:[%s1694 + $0x1ec] sm:$0x1]
        %v1995 = vsel %vm451, %v1453, %v1994
        %1996 = vst [vmem:[%s1694 + $0x1ec] sm:$0x1] %v1995
        %v1997 = vld [vmem:[%s1694 + $0x1f0] sm:$0xf]
        %v1998 = vsel %vm1696, %v1460, %v1997
        %1999 = vst [vmem:[%s1694 + $0x1f0] sm:$0xf] %v1998
        %v2000 = vld [vmem:[%s1694 + $0x1f4] sm:$0x1]
        %v2001 = vsel %vm451, %v1461, %v2000
        %2002 = vst [vmem:[%s1694 + $0x1f4] sm:$0x1] %v2001
        %v2003 = vld [vmem:[%s1694 + $0x1f8] sm:$0xf]
        %v2004 = vsel %vm1696, %v1468, %v2003
        %2005 = vst [vmem:[%s1694 + $0x1f8] sm:$0xf] %v2004
        %v2006 = vld [vmem:[%s1694 + $0x1fc] sm:$0x1]
        %v2007 = vsel %vm451, %v1469, %v2006
        %2008 = vst [vmem:[%s1694 + $0x1fc] sm:$0x1] %v2007
        %v2009 = vld [vmem:[%s1694 + $0x200] sm:$0xf]
        %v2010 = vsel %vm1696, %v1476, %v2009
        %2011 = vst [vmem:[%s1694 + $0x200] sm:$0xf] %v2010
        %v2012 = vld [vmem:[%s1694 + $0x204] sm:$0x1]
        %v2013 = vsel %vm451, %v1477, %v2012
        %2014 = vst [vmem:[%s1694 + $0x204] sm:$0x1] %v2013
        %v2015 = vld [vmem:[%s1694 + $0x208] sm:$0xf]
        %v2016 = vsel %vm1696, %v1484, %v2015
        %2017 = vst [vmem:[%s1694 + $0x208] sm:$0xf] %v2016
        %v2018 = vld [vmem:[%s1694 + $0x20c] sm:$0x1]
        %v2019 = vsel %vm451, %v1485, %v2018
        %2020 = vst [vmem:[%s1694 + $0x20c] sm:$0x1] %v2019
        %v2021 = vld [vmem:[%s1694 + $0x210] sm:$0xf]
        %v2022 = vsel %vm1696, %v1492, %v2021
        %2023 = vst [vmem:[%s1694 + $0x210] sm:$0xf] %v2022
        %v2024 = vld [vmem:[%s1694 + $0x214] sm:$0x1]
        %v2025 = vsel %vm451, %v1493, %v2024
        %2026 = vst [vmem:[%s1694 + $0x214] sm:$0x1] %v2025
        %v2027 = vld [vmem:[%s1694 + $0x218] sm:$0xf]
        %v2028 = vsel %vm1696, %v1500, %v2027
        %2029 = vst [vmem:[%s1694 + $0x218] sm:$0xf] %v2028
        %v2030 = vld [vmem:[%s1694 + $0x21c] sm:$0x1]
        %v2031 = vsel %vm451, %v1501, %v2030
        %2032 = vst [vmem:[%s1694 + $0x21c] sm:$0x1] %v2031
        %v2033 = vld [vmem:[%s1694 + $0x230] sm:$0xf]
        %v2034 = vsel %vm1696, %v1508, %v2033
        %2035 = vst [vmem:[%s1694 + $0x230] sm:$0xf] %v2034
        %v2036 = vld [vmem:[%s1694 + $0x234] sm:$0x1]
        %v2037 = vsel %vm451, %v1509, %v2036
        %2038 = vst [vmem:[%s1694 + $0x234] sm:$0x1] %v2037
        %v2039 = vld [vmem:[%s1694 + $0x238] sm:$0xf]
        %v2040 = vsel %vm1696, %v1516, %v2039
        %2041 = vst [vmem:[%s1694 + $0x238] sm:$0xf] %v2040
        %v2042 = vld [vmem:[%s1694 + $0x23c] sm:$0x1]
        %v2043 = vsel %vm451, %v1517, %v2042
        %2044 = vst [vmem:[%s1694 + $0x23c] sm:$0x1] %v2043
        %v2045 = vld [vmem:[%s1694 + $0x240] sm:$0xf]
        %v2046 = vsel %vm1696, %v1524, %v2045
        %2047 = vst [vmem:[%s1694 + $0x240] sm:$0xf] %v2046
        %v2048 = vld [vmem:[%s1694 + $0x244] sm:$0x1]
        %v2049 = vsel %vm451, %v1525, %v2048
        %2050 = vst [vmem:[%s1694 + $0x244] sm:$0x1] %v2049
        %v2051 = vld [vmem:[%s1694 + $0x248] sm:$0xf]
        %v2052 = vsel %vm1696, %v1532, %v2051
        %2053 = vst [vmem:[%s1694 + $0x248] sm:$0xf] %v2052
        %v2054 = vld [vmem:[%s1694 + $0x24c] sm:$0x1]
        %v2055 = vsel %vm451, %v1533, %v2054
        %2056 = vst [vmem:[%s1694 + $0x24c] sm:$0x1] %v2055
        %v2057 = vld [vmem:[%s1694 + $0x250] sm:$0xf]
        %v2058 = vsel %vm1696, %v1540, %v2057
        %2059 = vst [vmem:[%s1694 + $0x250] sm:$0xf] %v2058
        %v2060 = vld [vmem:[%s1694 + $0x254] sm:$0x1]
        %v2061 = vsel %vm451, %v1541, %v2060
        %2062 = vst [vmem:[%s1694 + $0x254] sm:$0x1] %v2061
        %v2063 = vld [vmem:[%s1694 + $0x258] sm:$0xf]
        %v2064 = vsel %vm1696, %v1548, %v2063
        %2065 = vst [vmem:[%s1694 + $0x258] sm:$0xf] %v2064
        %v2066 = vld [vmem:[%s1694 + $0x25c] sm:$0x1]
        %v2067 = vsel %vm451, %v1549, %v2066
        %2068 = vst [vmem:[%s1694 + $0x25c] sm:$0x1] %v2067
        %v2069 = vld [vmem:[%s1694 + $0x260] sm:$0xf]
        %v2070 = vsel %vm1696, %v1556, %v2069
        %2071 = vst [vmem:[%s1694 + $0x260] sm:$0xf] %v2070
        %v2072 = vld [vmem:[%s1694 + $0x264] sm:$0x1]
        %v2073 = vsel %vm451, %v1557, %v2072
        %2074 = vst [vmem:[%s1694 + $0x264] sm:$0x1] %v2073
        %v2075 = vld [vmem:[%s1694 + $0x268] sm:$0xf]
        %v2076 = vsel %vm1696, %v1564, %v2075
        %2077 = vst [vmem:[%s1694 + $0x268] sm:$0xf] %v2076
        %v2078 = vld [vmem:[%s1694 + $0x26c] sm:$0x1]
        %v2079 = vsel %vm451, %v1565, %v2078
        %2080 = vst [vmem:[%s1694 + $0x26c] sm:$0x1] %v2079
        %v2081 = vld [vmem:[#allocation2] sm:$0xf]
        %v2082 = vld [vmem:[#allocation2 + $0x4] sm:$0x1]
        %v2083 = vld [vmem:[#allocation2 + $0x8] sm:$0xf]
        %v2084 = vld [vmem:[#allocation2 + $0xc] sm:$0x1]
        %v2085 = vld [vmem:[#allocation2 + $0x10] sm:$0xf]
        %v2086 = vld [vmem:[#allocation2 + $0x14] sm:$0x1]
        %v2087 = vld [vmem:[#allocation2 + $0x18] sm:$0xf]
        %v2088 = vld [vmem:[#allocation2 + $0x1c] sm:$0x1]
        %v2089 = vld [vmem:[#allocation2 + $0x20] sm:$0xf]
        %v2090 = vld [vmem:[#allocation2 + $0x24] sm:$0x1]
        %v2091 = vld [vmem:[#allocation2 + $0x28] sm:$0xf]
        %v2092 = vld [vmem:[#allocation2 + $0x2c] sm:$0x1]
        %v2093 = vld [vmem:[#allocation2 + $0x30] sm:$0xf]
        %v2094 = vld [vmem:[#allocation2 + $0x34] sm:$0x1]
        %v2095 = vld [vmem:[#allocation2 + $0x38] sm:$0xf]
        %v2096 = vld [vmem:[#allocation2 + $0x3c] sm:$0x1]
        %v2097 = vld [vmem:[#allocation2 + $0x40] sm:$0xf]
        %v2098 = vld [vmem:[#allocation2 + $0x44] sm:$0x1]
        %v2099 = vld [vmem:[#allocation2 + $0x50] sm:$0xf]
        %v2100 = vld [vmem:[#allocation2 + $0x54] sm:$0x1]
        %v2101 = vld [vmem:[#allocation2 + $0x58] sm:$0xf]
        %v2102 = vld [vmem:[#allocation2 + $0x5c] sm:$0x1]
        %v2103 = vld [vmem:[#allocation2 + $0x60] sm:$0xf]
        %v2104 = vld [vmem:[#allocation2 + $0x64] sm:$0x1]
        %v2105 = vld [vmem:[#allocation2 + $0x68] sm:$0xf]
        %v2106 = vld [vmem:[#allocation2 + $0x6c] sm:$0x1]
        %v2107 = vld [vmem:[#allocation2 + $0x70] sm:$0xf]
        %v2108 = vld [vmem:[#allocation2 + $0x74] sm:$0x1]
        %v2109 = vld [vmem:[#allocation2 + $0x78] sm:$0xf]
        %v2110 = vld [vmem:[#allocation2 + $0x7c] sm:$0x1]
        %v2111 = vld [vmem:[#allocation2 + $0x80] sm:$0xf]
        %v2112 = vld [vmem:[#allocation2 + $0x84] sm:$0x1]
        %v2113 = vld [vmem:[#allocation2 + $0x88] sm:$0xf]
        %v2114 = vld [vmem:[#allocation2 + $0x8c] sm:$0x1]
        %v2115 = vld [vmem:[#allocation2 + $0x90] sm:$0xf]
        %v2116 = vld [vmem:[#allocation2 + $0x94] sm:$0x1]
        %v2117 = vld [vmem:[#allocation2 + $0xa0] sm:$0xf]
        %v2118 = vld [vmem:[#allocation2 + $0xa4] sm:$0x1]
        %v2119 = vld [vmem:[#allocation2 + $0xa8] sm:$0xf]
        %v2120 = vld [vmem:[#allocation2 + $0xac] sm:$0x1]
        %v2121 = vld [vmem:[#allocation2 + $0xb0] sm:$0xf]
        %v2122 = vld [vmem:[#allocation2 + $0xb4] sm:$0x1]
        %v2123 = vld [vmem:[#allocation2 + $0xb8] sm:$0xf]
        %v2124 = vld [vmem:[#allocation2 + $0xbc] sm:$0x1]
        %v2125 = vld [vmem:[#allocation2 + $0xc0] sm:$0xf]
        %v2126 = vld [vmem:[#allocation2 + $0xc4] sm:$0x1]
        %v2127 = vld [vmem:[#allocation2 + $0xc8] sm:$0xf]
        %v2128 = vld [vmem:[#allocation2 + $0xcc] sm:$0x1]
        %v2129 = vld [vmem:[#allocation2 + $0xd0] sm:$0xf]
        %v2130 = vld [vmem:[#allocation2 + $0xd4] sm:$0x1]
        %v2131 = vld [vmem:[#allocation2 + $0xd8] sm:$0xf]
        %v2132 = vld [vmem:[#allocation2 + $0xdc] sm:$0x1]
        %v2133 = vld [vmem:[#allocation2 + $0xe0] sm:$0xf]
        %v2134 = vld [vmem:[#allocation2 + $0xe4] sm:$0x1]
        %v2135 = vld [vmem:[#allocation2 + $0xf0] sm:$0xf]
        %v2136 = vld [vmem:[#allocation2 + $0xf4] sm:$0x1]
        %v2137 = vld [vmem:[#allocation2 + $0xf8] sm:$0xf]
        %v2138 = vld [vmem:[#allocation2 + $0xfc] sm:$0x1]
        %v2139 = vld [vmem:[#allocation2 + $0x100] sm:$0xf]
        %v2140 = vld [vmem:[#allocation2 + $0x104] sm:$0x1]
        %v2141 = vld [vmem:[#allocation2 + $0x108] sm:$0xf]
        %v2142 = vld [vmem:[#allocation2 + $0x10c] sm:$0x1]
        %v2143 = vld [vmem:[#allocation2 + $0x110] sm:$0xf]
        %v2144 = vld [vmem:[#allocation2 + $0x114] sm:$0x1]
        %v2145 = vld [vmem:[#allocation2 + $0x118] sm:$0xf]
        %v2146 = vld [vmem:[#allocation2 + $0x11c] sm:$0x1]
        %v2147 = vld [vmem:[#allocation2 + $0x120] sm:$0xf]
        %v2148 = vld [vmem:[#allocation2 + $0x124] sm:$0x1]
        %v2149 = vld [vmem:[#allocation2 + $0x128] sm:$0xf]
        %v2150 = vld [vmem:[#allocation2 + $0x12c] sm:$0x1]
        %v2151 = vld [vmem:[#allocation2 + $0x130] sm:$0xf]
        %v2152 = vld [vmem:[#allocation2 + $0x134] sm:$0x1]
        %v2153 = vld [vmem:[#allocation2 + $0x140] sm:$0xf]
        %v2154 = vld [vmem:[#allocation2 + $0x144] sm:$0x1]
        %v2155 = vld [vmem:[#allocation2 + $0x148] sm:$0xf]
        %v2156 = vld [vmem:[#allocation2 + $0x14c] sm:$0x1]
        %v2157 = vld [vmem:[#allocation2 + $0x150] sm:$0xf]
        %v2158 = vld [vmem:[#allocation2 + $0x154] sm:$0x1]
        %v2159 = vld [vmem:[#allocation2 + $0x158] sm:$0xf]
        %v2160 = vld [vmem:[#allocation2 + $0x15c] sm:$0x1]
        %v2161 = vld [vmem:[#allocation2 + $0x160] sm:$0xf]
        %v2162 = vld [vmem:[#allocation2 + $0x164] sm:$0x1]
        %v2163 = vld [vmem:[#allocation2 + $0x168] sm:$0xf]
        %v2164 = vld [vmem:[#allocation2 + $0x16c] sm:$0x1]
        %v2165 = vld [vmem:[#allocation2 + $0x170] sm:$0xf]
        %v2166 = vld [vmem:[#allocation2 + $0x174] sm:$0x1]
        %v2167 = vld [vmem:[#allocation2 + $0x178] sm:$0xf]
        %v2168 = vld [vmem:[#allocation2 + $0x17c] sm:$0x1]
        %v2169 = vld [vmem:[#allocation2 + $0x180] sm:$0xf]
        %v2170 = vld [vmem:[#allocation2 + $0x184] sm:$0x1]
        %v2171 = vld [vmem:[#allocation2 + $0x190] sm:$0xf]
        %v2172 = vld [vmem:[#allocation2 + $0x194] sm:$0x1]
        %v2173 = vld [vmem:[#allocation2 + $0x198] sm:$0xf]
        %v2174 = vld [vmem:[#allocation2 + $0x19c] sm:$0x1]
        %v2175 = vld [vmem:[#allocation2 + $0x1a0] sm:$0xf]
        %v2176 = vld [vmem:[#allocation2 + $0x1a4] sm:$0x1]
        %v2177 = vld [vmem:[#allocation2 + $0x1a8] sm:$0xf]
        %v2178 = vld [vmem:[#allocation2 + $0x1ac] sm:$0x1]
        %v2179 = vld [vmem:[#allocation2 + $0x1b0] sm:$0xf]
        %v2180 = vld [vmem:[#allocation2 + $0x1b4] sm:$0x1]
        %v2181 = vld [vmem:[#allocation2 + $0x1b8] sm:$0xf]
        %v2182 = vld [vmem:[#allocation2 + $0x1bc] sm:$0x1]
        %v2183 = vld [vmem:[#allocation2 + $0x1c0] sm:$0xf]
        %v2184 = vld [vmem:[#allocation2 + $0x1c4] sm:$0x1]
        %v2185 = vld [vmem:[#allocation2 + $0x1c8] sm:$0xf]
        %v2186 = vld [vmem:[#allocation2 + $0x1cc] sm:$0x1]
        %v2187 = vld [vmem:[#allocation2 + $0x1d0] sm:$0xf]
        %v2188 = vld [vmem:[#allocation2 + $0x1d4] sm:$0x1]
        %v2189 = vld [vmem:[#allocation2 + $0x1e0] sm:$0xf]
        %v2190 = vld [vmem:[#allocation2 + $0x1e4] sm:$0x1]
        %v2191 = vld [vmem:[#allocation2 + $0x1e8] sm:$0xf]
        %v2192 = vld [vmem:[#allocation2 + $0x1ec] sm:$0x1]
        %v2193 = vld [vmem:[#allocation2 + $0x1f0] sm:$0xf]
        %v2194 = vld [vmem:[#allocation2 + $0x1f4] sm:$0x1]
        %v2195 = vld [vmem:[#allocation2 + $0x1f8] sm:$0xf]
        %v2196 = vld [vmem:[#allocation2 + $0x1fc] sm:$0x1]
        %v2197 = vld [vmem:[#allocation2 + $0x200] sm:$0xf]
        %v2198 = vld [vmem:[#allocation2 + $0x204] sm:$0x1]
        %v2199 = vld [vmem:[#allocation2 + $0x208] sm:$0xf]
        %v2200 = vld [vmem:[#allocation2 + $0x20c] sm:$0x1]
        %v2201 = vld [vmem:[#allocation2 + $0x210] sm:$0xf]
        %v2202 = vld [vmem:[#allocation2 + $0x214] sm:$0x1]
        %v2203 = vld [vmem:[#allocation2 + $0x218] sm:$0xf]
        %v2204 = vld [vmem:[#allocation2 + $0x21c] sm:$0x1]
        %v2205 = vld [vmem:[#allocation2 + $0x220] sm:$0xf]
        %v2206 = vld [vmem:[#allocation2 + $0x224] sm:$0x1]
        %v2207 = vld [vmem:[#allocation2 + $0x230] sm:$0xf]
        %v2208 = vld [vmem:[#allocation2 + $0x234] sm:$0x1]
        %v2209 = vld [vmem:[#allocation2 + $0x238] sm:$0xf]
        %v2210 = vld [vmem:[#allocation2 + $0x23c] sm:$0x1]
        %v2211 = vld [vmem:[#allocation2 + $0x240] sm:$0xf]
        %v2212 = vld [vmem:[#allocation2 + $0x244] sm:$0x1]
        %v2213 = vld [vmem:[#allocation2 + $0x248] sm:$0xf]
        %v2214 = vld [vmem:[#allocation2 + $0x24c] sm:$0x1]
        %v2215 = vld [vmem:[#allocation2 + $0x250] sm:$0xf]
        %v2216 = vld [vmem:[#allocation2 + $0x254] sm:$0x1]
        %v2217 = vld [vmem:[#allocation2 + $0x258] sm:$0xf]
        %v2218 = vld [vmem:[#allocation2 + $0x25c] sm:$0x1]
        %v2219 = vld [vmem:[#allocation2 + $0x260] sm:$0xf]
        %v2220 = vld [vmem:[#allocation2 + $0x264] sm:$0x1]
        %v2221 = vld [vmem:[#allocation2 + $0x268] sm:$0xf]
        %v2222 = vld [vmem:[#allocation2 + $0x26c] sm:$0x1]
        %v2223 = vld [vmem:[#allocation2 + $0x270] sm:$0xf]
        %v2224 = vld [vmem:[#allocation2 + $0x274] sm:$0x1]
        %v2225 = vld [vmem:[#allocation2 + $0x280] sm:$0xf]
        %v2226 = vld [vmem:[#allocation2 + $0x284] sm:$0x1]
        %v2227 = vld [vmem:[#allocation2 + $0x288] sm:$0xf]
        %v2228 = vld [vmem:[#allocation2 + $0x28c] sm:$0x1]
        %v2229 = vld [vmem:[#allocation2 + $0x290] sm:$0xf]
        %v2230 = vld [vmem:[#allocation2 + $0x294] sm:$0x1]
        %v2231 = vld [vmem:[#allocation2 + $0x298] sm:$0xf]
        %v2232 = vld [vmem:[#allocation2 + $0x29c] sm:$0x1]
        %v2233 = vld [vmem:[#allocation2 + $0x2a0] sm:$0xf]
        %v2234 = vld [vmem:[#allocation2 + $0x2a4] sm:$0x1]
        %v2235 = vld [vmem:[#allocation2 + $0x2a8] sm:$0xf]
        %v2236 = vld [vmem:[#allocation2 + $0x2ac] sm:$0x1]
        %v2237 = vld [vmem:[#allocation2 + $0x2b0] sm:$0xf]
        %v2238 = vld [vmem:[#allocation2 + $0x2b4] sm:$0x1]
        %v2239 = vld [vmem:[#allocation2 + $0x2b8] sm:$0xf]
        %v2240 = vld [vmem:[#allocation2 + $0x2bc] sm:$0x1]
        %v2241 = vld [vmem:[#allocation2 + $0x2c0] sm:$0xf]
        %v2242 = vld [vmem:[#allocation2 + $0x2c4] sm:$0x1]
        %v2275 = vunpack.c.l.b16 %v2081
        %v2276 = vunpack.c.l.b16 %v2082
        %v2277 = vunpack.c.l.b16 %v2085
        %v2278 = vunpack.c.l.b16 %v2086
        %v2279 = vunpack.c.l.b16 %v2089
        %v2280 = vunpack.c.l.b16 %v2090
        %v2281 = vunpack.c.l.b16 %v2093
        %v2282 = vunpack.c.l.b16 %v2094
        %v2283 = vunpack.c.l.b16 %v2117
        %v2284 = vunpack.c.l.b16 %v2118
        %v2285 = vunpack.c.l.b16 %v2121
        %v2286 = vunpack.c.l.b16 %v2122
        %v2287 = vunpack.c.l.b16 %v2125
        %v2288 = vunpack.c.l.b16 %v2126
        %v2289 = vunpack.c.l.b16 %v2129
        %v2290 = vunpack.c.l.b16 %v2130
        %v2291 = vunpack.c.l.b16 %v2153
        %v2292 = vunpack.c.l.b16 %v2154
        %v2293 = vunpack.c.l.b16 %v2157
        %v2294 = vunpack.c.l.b16 %v2158
        %v2295 = vunpack.c.l.b16 %v2161
        %v2296 = vunpack.c.l.b16 %v2162
        %v2297 = vunpack.c.l.b16 %v2165
        %v2298 = vunpack.c.l.b16 %v2166
        %v2299 = vunpack.c.l.b16 %v2189
        %v2300 = vunpack.c.l.b16 %v2190
        %v2301 = vunpack.c.l.b16 %v2193
        %v2302 = vunpack.c.l.b16 %v2194
        %v2303 = vunpack.c.l.b16 %v2197
        %v2304 = vunpack.c.l.b16 %v2198
        %v2305 = vunpack.c.l.b16 %v2201
        %v2306 = vunpack.c.l.b16 %v2202
        %v2307 = vpack.c.b16 %v2276, %v2275
        %v2308 = vpack.c.b16 %v2278, %v2277
        %v2309 = vpack.c.b16 %v2280, %v2279
        %v2310 = vpack.c.b16 %v2282, %v2281
        %v2311 = vpack.c.b16 %v2284, %v2283
        %v2312 = vpack.c.b16 %v2286, %v2285
        %v2313 = vpack.c.b16 %v2288, %v2287
        %v2314 = vpack.c.b16 %v2290, %v2289
        %v2315 = vpack.c.b16 %v2292, %v2291
        %v2316 = vpack.c.b16 %v2294, %v2293
        %v2317 = vpack.c.b16 %v2296, %v2295
        %v2318 = vpack.c.b16 %v2298, %v2297
        %v2319 = vpack.c.b16 %v2300, %v2299
        %v2320 = vpack.c.b16 %v2302, %v2301
        %v2321 = vpack.c.b16 %v2304, %v2303
        %v2322 = vpack.c.b16 %v2306, %v2305
        %v2324 = vshrl.u32 %v2307, 16
        %v2326 = vshll.u32 %v2307, 16
        %v2328 = vrot.slane %v2326, 1
        %v2329 = vor.u32 %v2324, %v2328
        %v2331 = vshrl.u32 %v2308, 16
        %v2333 = vshll.u32 %v2308, 16
        %v2335 = vrot.slane %v2333, 1
        %v2336 = vor.u32 %v2331, %v2335
        %v2338 = vshrl.u32 %v2309, 16
        %v2340 = vshll.u32 %v2309, 16
        %v2342 = vrot.slane %v2340, 1
        %v2343 = vor.u32 %v2338, %v2342
        %v2345 = vshrl.u32 %v2310, 16
        %v2347 = vshll.u32 %v2310, 16
        %v2349 = vrot.slane %v2347, 1
        %v2350 = vor.u32 %v2345, %v2349
        %v2352 = vshrl.u32 %v2311, 16
        %v2354 = vshll.u32 %v2311, 16
        %v2356 = vrot.slane %v2354, 1
        %v2357 = vor.u32 %v2352, %v2356
        %v2359 = vshrl.u32 %v2312, 16
        %v2361 = vshll.u32 %v2312, 16
        %v2363 = vrot.slane %v2361, 1
        %v2364 = vor.u32 %v2359, %v2363
        %v2366 = vshrl.u32 %v2313, 16
        %v2368 = vshll.u32 %v2313, 16
        %v2370 = vrot.slane %v2368, 1
        %v2371 = vor.u32 %v2366, %v2370
        %v2373 = vshrl.u32 %v2314, 16
        %v2375 = vshll.u32 %v2314, 16
        %v2377 = vrot.slane %v2375, 1
        %v2378 = vor.u32 %v2373, %v2377
        %v2380 = vshrl.u32 %v2315, 16
        %v2382 = vshll.u32 %v2315, 16
        %v2384 = vrot.slane %v2382, 1
        %v2385 = vor.u32 %v2380, %v2384
        %v2387 = vshrl.u32 %v2316, 16
        %v2389 = vshll.u32 %v2316, 16
        %v2391 = vrot.slane %v2389, 1
        %v2392 = vor.u32 %v2387, %v2391
        %v2394 = vshrl.u32 %v2317, 16
        %v2396 = vshll.u32 %v2317, 16
        %v2398 = vrot.slane %v2396, 1
        %v2399 = vor.u32 %v2394, %v2398
        %v2401 = vshrl.u32 %v2318, 16
        %v2403 = vshll.u32 %v2318, 16
        %v2405 = vrot.slane %v2403, 1
        %v2406 = vor.u32 %v2401, %v2405
        %v2408 = vshrl.u32 %v2319, 16
        %v2410 = vshll.u32 %v2319, 16
        %v2412 = vrot.slane %v2410, 1
        %v2413 = vor.u32 %v2408, %v2412
        %v2415 = vshrl.u32 %v2320, 16
        %v2417 = vshll.u32 %v2320, 16
        %v2419 = vrot.slane %v2417, 1
        %v2420 = vor.u32 %v2415, %v2419
        %v2422 = vshrl.u32 %v2321, 16
        %v2424 = vshll.u32 %v2321, 16
        %v2426 = vrot.slane %v2424, 1
        %v2427 = vor.u32 %v2422, %v2426
        %v2429 = vshrl.u32 %v2322, 16
        %v2431 = vshll.u32 %v2322, 16
        %v2433 = vrot.slane %v2431, 1
        %v2434 = vor.u32 %v2429, %v2433
        %2435 = vrot.lane.b32.xlu0 %v2329, 4
        %v2436 = vpop.permute.xlu0 %2435
        %2437 = vrot.lane.b32.xlu0 %v2336, 4
        %v2438 = vpop.permute.xlu0 %2437
        %2439 = vrot.lane.b32.xlu0 %v2343, 4
        %v2440 = vpop.permute.xlu0 %2439
        %2441 = vrot.lane.b32.xlu0 %v2350, 4
        %v2442 = vpop.permute.xlu0 %2441
        %2443 = vrot.lane.b32.xlu0 %v2357, 4
        %v2444 = vpop.permute.xlu0 %2443
        %2445 = vrot.lane.b32.xlu0 %v2364, 4
        %v2446 = vpop.permute.xlu0 %2445
        %2447 = vrot.lane.b32.xlu0 %v2371, 4
        %v2448 = vpop.permute.xlu0 %2447
        %2449 = vrot.lane.b32.xlu0 %v2378, 4
        %v2450 = vpop.permute.xlu0 %2449
        %2451 = vrot.lane.b32.xlu0 %v2385, 4
        %v2452 = vpop.permute.xlu0 %2451
        %2453 = vrot.lane.b32.xlu0 %v2392, 4
        %v2454 = vpop.permute.xlu0 %2453
        %2455 = vrot.lane.b32.xlu0 %v2399, 4
        %v2456 = vpop.permute.xlu0 %2455
        %2457 = vrot.lane.b32.xlu0 %v2406, 4
        %v2458 = vpop.permute.xlu0 %2457
        %2459 = vrot.lane.b32.xlu0 %v2413, 4
        %v2460 = vpop.permute.xlu0 %2459
        %2461 = vrot.lane.b32.xlu0 %v2420, 4
        %v2462 = vpop.permute.xlu0 %2461
        %2463 = vrot.lane.b32.xlu0 %v2427, 4
        %v2464 = vpop.permute.xlu0 %2463
        %2465 = vrot.lane.b32.xlu0 %v2434, 4
        %v2466 = vpop.permute.xlu0 %2465
        %v2467 = vrot.slane %v2307, 1
        %v2468 = vrot.slane %v2308, 1
        %v2469 = vrot.slane %v2309, 1
        %v2470 = vrot.slane %v2310, 1
        %v2471 = vrot.slane %v2311, 1
        %v2472 = vrot.slane %v2312, 1
        %v2473 = vrot.slane %v2313, 1
        %v2474 = vrot.slane %v2314, 1
        %v2475 = vrot.slane %v2315, 1
        %v2476 = vrot.slane %v2316, 1
        %v2477 = vrot.slane %v2317, 1
        %v2478 = vrot.slane %v2318, 1
        %v2479 = vrot.slane %v2319, 1
        %v2480 = vrot.slane %v2320, 1
        %v2481 = vrot.slane %v2321, 1
        %v2482 = vrot.slane %v2322, 1
        %2483 = vrot.lane.b32.xlu0 %v2467, 8
        %v2484 = vpop.permute.xlu0 %2483
        %2485 = vrot.lane.b32.xlu0 %v2468, 8
        %v2486 = vpop.permute.xlu0 %2485
        %2487 = vrot.lane.b32.xlu0 %v2469, 8
        %v2488 = vpop.permute.xlu0 %2487
        %2489 = vrot.lane.b32.xlu0 %v2470, 8
        %v2490 = vpop.permute.xlu0 %2489
        %2491 = vrot.lane.b32.xlu0 %v2471, 8
        %v2492 = vpop.permute.xlu0 %2491
        %2493 = vrot.lane.b32.xlu0 %v2472, 8
        %v2494 = vpop.permute.xlu0 %2493
        %2495 = vrot.lane.b32.xlu0 %v2473, 8
        %v2496 = vpop.permute.xlu0 %2495
        %2497 = vrot.lane.b32.xlu0 %v2474, 8
        %v2498 = vpop.permute.xlu0 %2497
        %2499 = vrot.lane.b32.xlu0 %v2475, 8
        %v2500 = vpop.permute.xlu0 %2499
        %2501 = vrot.lane.b32.xlu0 %v2476, 8
        %v2502 = vpop.permute.xlu0 %2501
        %2503 = vrot.lane.b32.xlu0 %v2477, 8
        %v2504 = vpop.permute.xlu0 %2503
        %2505 = vrot.lane.b32.xlu0 %v2478, 8
        %v2506 = vpop.permute.xlu0 %2505
        %2507 = vrot.lane.b32.xlu0 %v2479, 8
        %v2508 = vpop.permute.xlu0 %2507
        %2509 = vrot.lane.b32.xlu0 %v2480, 8
        %v2510 = vpop.permute.xlu0 %2509
        %2511 = vrot.lane.b32.xlu0 %v2481, 8
        %v2512 = vpop.permute.xlu0 %2511
        %2513 = vrot.lane.b32.xlu0 %v2482, 8
        %v2514 = vpop.permute.xlu0 %2513
        %v2531 = vunpack.c.l.b16 %v2083
        %v2532 = vunpack.c.l.b16 %v2087
        %v2533 = vunpack.c.l.b16 %v2091
        %v2534 = vunpack.c.l.b16 %v2095
        %v2535 = vunpack.c.l.b16 %v2119
        %v2536 = vunpack.c.l.b16 %v2123
        %v2537 = vunpack.c.l.b16 %v2127
        %v2538 = vunpack.c.l.b16 %v2131
        %v2539 = vunpack.c.l.b16 %v2155
        %v2540 = vunpack.c.l.b16 %v2159
        %v2541 = vunpack.c.l.b16 %v2163
        %v2542 = vunpack.c.l.b16 %v2167
        %v2543 = vunpack.c.l.b16 %v2191
        %v2544 = vunpack.c.l.b16 %v2195
        %v2545 = vunpack.c.l.b16 %v2199
        %v2546 = vunpack.c.l.b16 %v2203
        %v2547 = vpack.c.b16 %v2531, %v2531
        %v2548 = vpack.c.b16 %v2532, %v2532
        %v2549 = vpack.c.b16 %v2533, %v2533
        %v2550 = vpack.c.b16 %v2534, %v2534
        %v2551 = vpack.c.b16 %v2535, %v2535
        %v2552 = vpack.c.b16 %v2536, %v2536
        %v2553 = vpack.c.b16 %v2537, %v2537
        %v2554 = vpack.c.b16 %v2538, %v2538
        %v2555 = vpack.c.b16 %v2539, %v2539
        %v2556 = vpack.c.b16 %v2540, %v2540
        %v2557 = vpack.c.b16 %v2541, %v2541
        %v2558 = vpack.c.b16 %v2542, %v2542
        %v2559 = vpack.c.b16 %v2543, %v2543
        %v2560 = vpack.c.b16 %v2544, %v2544
        %v2561 = vpack.c.b16 %v2545, %v2545
        %v2562 = vpack.c.b16 %v2546, %v2546
        %2563 = vrot.lane.b32.xlu0 %v2547, 12
        %v2564 = vpop.permute.xlu0 %2563
        %2565 = vrot.lane.b32.xlu0 %v2548, 12
        %v2566 = vpop.permute.xlu0 %2565
        %2567 = vrot.lane.b32.xlu0 %v2549, 12
        %v2568 = vpop.permute.xlu0 %2567
        %2569 = vrot.lane.b32.xlu0 %v2550, 12
        %v2570 = vpop.permute.xlu0 %2569
        %2571 = vrot.lane.b32.xlu0 %v2551, 12
        %v2572 = vpop.permute.xlu0 %2571
        %2573 = vrot.lane.b32.xlu0 %v2552, 12
        %v2574 = vpop.permute.xlu0 %2573
        %2575 = vrot.lane.b32.xlu0 %v2553, 12
        %v2576 = vpop.permute.xlu0 %2575
        %2577 = vrot.lane.b32.xlu0 %v2554, 12
        %v2578 = vpop.permute.xlu0 %2577
        %2579 = vrot.lane.b32.xlu0 %v2555, 12
        %v2580 = vpop.permute.xlu0 %2579
        %2581 = vrot.lane.b32.xlu0 %v2556, 12
        %v2582 = vpop.permute.xlu0 %2581
        %2583 = vrot.lane.b32.xlu0 %v2557, 12
        %v2584 = vpop.permute.xlu0 %2583
        %2585 = vrot.lane.b32.xlu0 %v2558, 12
        %v2586 = vpop.permute.xlu0 %2585
        %2587 = vrot.lane.b32.xlu0 %v2559, 12
        %v2588 = vpop.permute.xlu0 %2587
        %2589 = vrot.lane.b32.xlu0 %v2560, 12
        %v2590 = vpop.permute.xlu0 %2589
        %2591 = vrot.lane.b32.xlu0 %v2561, 12
        %v2592 = vpop.permute.xlu0 %2591
        %2593 = vrot.lane.b32.xlu0 %v2562, 12
        %v2594 = vpop.permute.xlu0 %2593
        %v2611 = vunpack.c.l.b16 %v2084
        %v2612 = vunpack.c.l.b16 %v2088
        %v2613 = vunpack.c.l.b16 %v2092
        %v2614 = vunpack.c.l.b16 %v2096
        %v2615 = vunpack.c.l.b16 %v2120
        %v2616 = vunpack.c.l.b16 %v2124
        %v2617 = vunpack.c.l.b16 %v2128
        %v2618 = vunpack.c.l.b16 %v2132
        %v2619 = vunpack.c.l.b16 %v2156
        %v2620 = vunpack.c.l.b16 %v2160
        %v2621 = vunpack.c.l.b16 %v2164
        %v2622 = vunpack.c.l.b16 %v2168
        %v2623 = vunpack.c.l.b16 %v2192
        %v2624 = vunpack.c.l.b16 %v2196
        %v2625 = vunpack.c.l.b16 %v2200
        %v2626 = vunpack.c.l.b16 %v2204
        %v2627 = vpack.c.b16 %v2611, %v2531
        %v2628 = vpack.c.b16 %v2612, %v2532
        %v2629 = vpack.c.b16 %v2613, %v2533
        %v2630 = vpack.c.b16 %v2614, %v2534
        %v2631 = vpack.c.b16 %v2615, %v2535
        %v2632 = vpack.c.b16 %v2616, %v2536
        %v2633 = vpack.c.b16 %v2617, %v2537
        %v2634 = vpack.c.b16 %v2618, %v2538
        %v2635 = vpack.c.b16 %v2619, %v2539
        %v2636 = vpack.c.b16 %v2620, %v2540
        %v2637 = vpack.c.b16 %v2621, %v2541
        %v2638 = vpack.c.b16 %v2622, %v2542
        %v2639 = vpack.c.b16 %v2623, %v2543
        %v2640 = vpack.c.b16 %v2624, %v2544
        %v2641 = vpack.c.b16 %v2625, %v2545
        %v2642 = vpack.c.b16 %v2626, %v2546
        %v2644 = vshrl.u32 %v2627, 16
        %v2646 = vshll.u32 %v2627, 16
        %v2648 = vrot.slane %v2646, 1
        %v2649 = vor.u32 %v2644, %v2648
        %v2651 = vshrl.u32 %v2628, 16
        %v2653 = vshll.u32 %v2628, 16
        %v2655 = vrot.slane %v2653, 1
        %v2656 = vor.u32 %v2651, %v2655
        %v2658 = vshrl.u32 %v2629, 16
        %v2660 = vshll.u32 %v2629, 16
        %v2662 = vrot.slane %v2660, 1
        %v2663 = vor.u32 %v2658, %v2662
        %v2665 = vshrl.u32 %v2630, 16
        %v2667 = vshll.u32 %v2630, 16
        %v2669 = vrot.slane %v2667, 1
        %v2670 = vor.u32 %v2665, %v2669
        %v2672 = vshrl.u32 %v2631, 16
        %v2674 = vshll.u32 %v2631, 16
        %v2676 = vrot.slane %v2674, 1
        %v2677 = vor.u32 %v2672, %v2676
        %v2679 = vshrl.u32 %v2632, 16
        %v2681 = vshll.u32 %v2632, 16
        %v2683 = vrot.slane %v2681, 1
        %v2684 = vor.u32 %v2679, %v2683
        %v2686 = vshrl.u32 %v2633, 16
        %v2688 = vshll.u32 %v2633, 16
        %v2690 = vrot.slane %v2688, 1
        %v2691 = vor.u32 %v2686, %v2690
        %v2693 = vshrl.u32 %v2634, 16
        %v2695 = vshll.u32 %v2634, 16
        %v2697 = vrot.slane %v2695, 1
        %v2698 = vor.u32 %v2693, %v2697
        %v2700 = vshrl.u32 %v2635, 16
        %v2702 = vshll.u32 %v2635, 16
        %v2704 = vrot.slane %v2702, 1
        %v2705 = vor.u32 %v2700, %v2704
        %v2707 = vshrl.u32 %v2636, 16
        %v2709 = vshll.u32 %v2636, 16
        %v2711 = vrot.slane %v2709, 1
        %v2712 = vor.u32 %v2707, %v2711
        %v2714 = vshrl.u32 %v2637, 16
        %v2716 = vshll.u32 %v2637, 16
        %v2718 = vrot.slane %v2716, 1
        %v2719 = vor.u32 %v2714, %v2718
        %v2721 = vshrl.u32 %v2638, 16
        %v2723 = vshll.u32 %v2638, 16
        %v2725 = vrot.slane %v2723, 1
        %v2726 = vor.u32 %v2721, %v2725
        %v2728 = vshrl.u32 %v2639, 16
        %v2730 = vshll.u32 %v2639, 16
        %v2732 = vrot.slane %v2730, 1
        %v2733 = vor.u32 %v2728, %v2732
        %v2735 = vshrl.u32 %v2640, 16
        %v2737 = vshll.u32 %v2640, 16
        %v2739 = vrot.slane %v2737, 1
        %v2740 = vor.u32 %v2735, %v2739
        %v2742 = vshrl.u32 %v2641, 16
        %v2744 = vshll.u32 %v2641, 16
        %v2746 = vrot.slane %v2744, 1
        %v2747 = vor.u32 %v2742, %v2746
        %v2749 = vshrl.u32 %v2642, 16
        %v2751 = vshll.u32 %v2642, 16
        %v2753 = vrot.slane %v2751, 1
        %v2754 = vor.u32 %v2749, %v2753
        %2755 = vrot.lane.b32.xlu0 %v2649, 16
        %v2756 = vpop.permute.xlu0 %2755
        %2757 = vrot.lane.b32.xlu0 %v2656, 16
        %v2758 = vpop.permute.xlu0 %2757
        %2759 = vrot.lane.b32.xlu0 %v2663, 16
        %v2760 = vpop.permute.xlu0 %2759
        %2761 = vrot.lane.b32.xlu0 %v2670, 16
        %v2762 = vpop.permute.xlu0 %2761
        %2763 = vrot.lane.b32.xlu0 %v2677, 16
        %v2764 = vpop.permute.xlu0 %2763
        %2765 = vrot.lane.b32.xlu0 %v2684, 16
        %v2766 = vpop.permute.xlu0 %2765
        %2767 = vrot.lane.b32.xlu0 %v2691, 16
        %v2768 = vpop.permute.xlu0 %2767
        %2769 = vrot.lane.b32.xlu0 %v2698, 16
        %v2770 = vpop.permute.xlu0 %2769
        %2771 = vrot.lane.b32.xlu0 %v2705, 16
        %v2772 = vpop.permute.xlu0 %2771
        %2773 = vrot.lane.b32.xlu0 %v2712, 16
        %v2774 = vpop.permute.xlu0 %2773
        %2775 = vrot.lane.b32.xlu0 %v2719, 16
        %v2776 = vpop.permute.xlu0 %2775
        %2777 = vrot.lane.b32.xlu0 %v2726, 16
        %v2778 = vpop.permute.xlu0 %2777
        %2779 = vrot.lane.b32.xlu0 %v2733, 16
        %v2780 = vpop.permute.xlu0 %2779
        %2781 = vrot.lane.b32.xlu0 %v2740, 16
        %v2782 = vpop.permute.xlu0 %2781
        %2783 = vrot.lane.b32.xlu0 %v2747, 16
        %v2784 = vpop.permute.xlu0 %2783
        %2785 = vrot.lane.b32.xlu0 %v2754, 16
        %v2786 = vpop.permute.xlu0 %2785
        %v2787 = vrot.slane %v2627, 1
        %v2788 = vrot.slane %v2628, 1
        %v2789 = vrot.slane %v2629, 1
        %v2790 = vrot.slane %v2630, 1
        %v2791 = vrot.slane %v2631, 1
        %v2792 = vrot.slane %v2632, 1
        %v2793 = vrot.slane %v2633, 1
        %v2794 = vrot.slane %v2634, 1
        %v2795 = vrot.slane %v2635, 1
        %v2796 = vrot.slane %v2636, 1
        %v2797 = vrot.slane %v2637, 1
        %v2798 = vrot.slane %v2638, 1
        %v2799 = vrot.slane %v2639, 1
        %v2800 = vrot.slane %v2640, 1
        %v2801 = vrot.slane %v2641, 1
        %v2802 = vrot.slane %v2642, 1
        %2803 = vrot.lane.b32.xlu0 %v2787, 20
        %v2804 = vpop.permute.xlu0 %2803
        %2805 = vrot.lane.b32.xlu0 %v2788, 20
        %v2806 = vpop.permute.xlu0 %2805
        %2807 = vrot.lane.b32.xlu0 %v2789, 20
        %v2808 = vpop.permute.xlu0 %2807
        %2809 = vrot.lane.b32.xlu0 %v2790, 20
        %v2810 = vpop.permute.xlu0 %2809
        %2811 = vrot.lane.b32.xlu0 %v2791, 20
        %v2812 = vpop.permute.xlu0 %2811
        %2813 = vrot.lane.b32.xlu0 %v2792, 20
        %v2814 = vpop.permute.xlu0 %2813
        %2815 = vrot.lane.b32.xlu0 %v2793, 20
        %v2816 = vpop.permute.xlu0 %2815
        %2817 = vrot.lane.b32.xlu0 %v2794, 20
        %v2818 = vpop.permute.xlu0 %2817
        %2819 = vrot.lane.b32.xlu0 %v2795, 20
        %v2820 = vpop.permute.xlu0 %2819
        %2821 = vrot.lane.b32.xlu0 %v2796, 20
        %v2822 = vpop.permute.xlu0 %2821
        %2823 = vrot.lane.b32.xlu0 %v2797, 20
        %v2824 = vpop.permute.xlu0 %2823
        %2825 = vrot.lane.b32.xlu0 %v2798, 20
        %v2826 = vpop.permute.xlu0 %2825
        %2827 = vrot.lane.b32.xlu0 %v2799, 20
        %v2828 = vpop.permute.xlu0 %2827
        %2829 = vrot.lane.b32.xlu0 %v2800, 20
        %v2830 = vpop.permute.xlu0 %2829
        %2831 = vrot.lane.b32.xlu0 %v2801, 20
        %v2832 = vpop.permute.xlu0 %2831
        %2833 = vrot.lane.b32.xlu0 %v2802, 20
        %v2834 = vpop.permute.xlu0 %2833
        %v2839 = vunpack.c.l.b16 %v2097
        %v2840 = vunpack.c.l.b16 %v2133
        %v2841 = vunpack.c.l.b16 %v2169
        %v2842 = vunpack.c.l.b16 %v2205
        %v2843 = vpack.c.b16 %v2277, %v2277
        %v2844 = vpack.c.b16 %v2279, %v2279
        %v2845 = vpack.c.b16 %v2281, %v2281
        %v2846 = vpack.c.b16 %v2839, %v2839
        %v2847 = vpack.c.b16 %v2285, %v2285
        %v2848 = vpack.c.b16 %v2287, %v2287
        %v2849 = vpack.c.b16 %v2289, %v2289
        %v2850 = vpack.c.b16 %v2840, %v2840
        %v2851 = vpack.c.b16 %v2293, %v2293
        %v2852 = vpack.c.b16 %v2295, %v2295
        %v2853 = vpack.c.b16 %v2297, %v2297
        %v2854 = vpack.c.b16 %v2841, %v2841
        %v2855 = vpack.c.b16 %v2301, %v2301
        %v2856 = vpack.c.b16 %v2303, %v2303
        %v2857 = vpack.c.b16 %v2305, %v2305
        %v2858 = vpack.c.b16 %v2842, %v2842
        %2859 = vrot.lane.b32.xlu0 %v2843, 24
        %v2860 = vpop.permute.xlu0 %2859
        %2861 = vrot.lane.b32.xlu0 %v2844, 24
        %v2862 = vpop.permute.xlu0 %2861
        %2863 = vrot.lane.b32.xlu0 %v2845, 24
        %v2864 = vpop.permute.xlu0 %2863
        %2865 = vrot.lane.b32.xlu0 %v2846, 24
        %v2866 = vpop.permute.xlu0 %2865
        %2867 = vrot.lane.b32.xlu0 %v2847, 24
        %v2868 = vpop.permute.xlu0 %2867
        %2869 = vrot.lane.b32.xlu0 %v2848, 24
        %v2870 = vpop.permute.xlu0 %2869
        %2871 = vrot.lane.b32.xlu0 %v2849, 24
        %v2872 = vpop.permute.xlu0 %2871
        %2873 = vrot.lane.b32.xlu0 %v2850, 24
        %v2874 = vpop.permute.xlu0 %2873
        %2875 = vrot.lane.b32.xlu0 %v2851, 24
        %v2876 = vpop.permute.xlu0 %2875
        %2877 = vrot.lane.b32.xlu0 %v2852, 24
        %v2878 = vpop.permute.xlu0 %2877
        %2879 = vrot.lane.b32.xlu0 %v2853, 24
        %v2880 = vpop.permute.xlu0 %2879
        %2881 = vrot.lane.b32.xlu0 %v2854, 24
        %v2882 = vpop.permute.xlu0 %2881
        %2883 = vrot.lane.b32.xlu0 %v2855, 24
        %v2884 = vpop.permute.xlu0 %2883
        %2885 = vrot.lane.b32.xlu0 %v2856, 24
        %v2886 = vpop.permute.xlu0 %2885
        %2887 = vrot.lane.b32.xlu0 %v2857, 24
        %v2888 = vpop.permute.xlu0 %2887
        %2889 = vrot.lane.b32.xlu0 %v2858, 24
        %v2890 = vpop.permute.xlu0 %2889
        %v2895 = vunpack.c.l.b16 %v2098
        %v2896 = vunpack.c.l.b16 %v2134
        %v2897 = vunpack.c.l.b16 %v2170
        %v2898 = vunpack.c.l.b16 %v2206
        %v2899 = vpack.c.b16 %v2895, %v2839
        %v2900 = vpack.c.b16 %v2896, %v2840
        %v2901 = vpack.c.b16 %v2897, %v2841
        %v2902 = vpack.c.b16 %v2898, %v2842
        %v2904 = vshrl.u32 %v2899, 16
        %v2906 = vshll.u32 %v2899, 16
        %v2908 = vrot.slane %v2906, 1
        %v2909 = vor.u32 %v2904, %v2908
        %v2911 = vshrl.u32 %v2900, 16
        %v2913 = vshll.u32 %v2900, 16
        %v2915 = vrot.slane %v2913, 1
        %v2916 = vor.u32 %v2911, %v2915
        %v2918 = vshrl.u32 %v2901, 16
        %v2920 = vshll.u32 %v2901, 16
        %v2922 = vrot.slane %v2920, 1
        %v2923 = vor.u32 %v2918, %v2922
        %v2925 = vshrl.u32 %v2902, 16
        %v2927 = vshll.u32 %v2902, 16
        %v2929 = vrot.slane %v2927, 1
        %v2930 = vor.u32 %v2925, %v2929
        %2931 = vrot.lane.b32.xlu0 %v2336, 28
        %v2932 = vpop.permute.xlu0 %2931
        %2933 = vrot.lane.b32.xlu0 %v2343, 28
        %v2934 = vpop.permute.xlu0 %2933
        %2935 = vrot.lane.b32.xlu0 %v2350, 28
        %v2936 = vpop.permute.xlu0 %2935
        %2937 = vrot.lane.b32.xlu0 %v2909, 28
        %v2938 = vpop.permute.xlu0 %2937
        %2939 = vrot.lane.b32.xlu0 %v2364, 28
        %v2940 = vpop.permute.xlu0 %2939
        %2941 = vrot.lane.b32.xlu0 %v2371, 28
        %v2942 = vpop.permute.xlu0 %2941
        %2943 = vrot.lane.b32.xlu0 %v2378, 28
        %v2944 = vpop.permute.xlu0 %2943
        %2945 = vrot.lane.b32.xlu0 %v2916, 28
        %v2946 = vpop.permute.xlu0 %2945
        %2947 = vrot.lane.b32.xlu0 %v2392, 28
        %v2948 = vpop.permute.xlu0 %2947
        %2949 = vrot.lane.b32.xlu0 %v2399, 28
        %v2950 = vpop.permute.xlu0 %2949
        %2951 = vrot.lane.b32.xlu0 %v2406, 28
        %v2952 = vpop.permute.xlu0 %2951
        %2953 = vrot.lane.b32.xlu0 %v2923, 28
        %v2954 = vpop.permute.xlu0 %2953
        %2955 = vrot.lane.b32.xlu0 %v2420, 28
        %v2956 = vpop.permute.xlu0 %2955
        %2957 = vrot.lane.b32.xlu0 %v2427, 28
        %v2958 = vpop.permute.xlu0 %2957
        %2959 = vrot.lane.b32.xlu0 %v2434, 28
        %v2960 = vpop.permute.xlu0 %2959
        %2961 = vrot.lane.b32.xlu0 %v2930, 28
        %v2962 = vpop.permute.xlu0 %2961
        %v2963 = vrot.slane %v2899, 1
        %v2964 = vrot.slane %v2900, 1
        %v2965 = vrot.slane %v2901, 1
        %v2966 = vrot.slane %v2902, 1
        %2967 = vrot.lane.b32.xlu0 %v2468, 32
        %v2968 = vpop.permute.xlu0 %2967
        %2969 = vrot.lane.b32.xlu0 %v2469, 32
        %v2970 = vpop.permute.xlu0 %2969
        %2971 = vrot.lane.b32.xlu0 %v2470, 32
        %v2972 = vpop.permute.xlu0 %2971
        %2973 = vrot.lane.b32.xlu0 %v2963, 32
        %v2974 = vpop.permute.xlu0 %2973
        %2975 = vrot.lane.b32.xlu0 %v2472, 32
        %v2976 = vpop.permute.xlu0 %2975
        %2977 = vrot.lane.b32.xlu0 %v2473, 32
        %v2978 = vpop.permute.xlu0 %2977
        %2979 = vrot.lane.b32.xlu0 %v2474, 32
        %v2980 = vpop.permute.xlu0 %2979
        %2981 = vrot.lane.b32.xlu0 %v2964, 32
        %v2982 = vpop.permute.xlu0 %2981
        %2983 = vrot.lane.b32.xlu0 %v2476, 32
        %v2984 = vpop.permute.xlu0 %2983
        %2985 = vrot.lane.b32.xlu0 %v2477, 32
        %v2986 = vpop.permute.xlu0 %2985
        %2987 = vrot.lane.b32.xlu0 %v2478, 32
        %v2988 = vpop.permute.xlu0 %2987
        %2989 = vrot.lane.b32.xlu0 %v2965, 32
        %v2990 = vpop.permute.xlu0 %2989
        %2991 = vrot.lane.b32.xlu0 %v2480, 32
        %v2992 = vpop.permute.xlu0 %2991
        %2993 = vrot.lane.b32.xlu0 %v2481, 32
        %v2994 = vpop.permute.xlu0 %2993
        %2995 = vrot.lane.b32.xlu0 %v2482, 32
        %v2996 = vpop.permute.xlu0 %2995
        %2997 = vrot.lane.b32.xlu0 %v2966, 32
        %v2998 = vpop.permute.xlu0 %2997
        %v3015 = vunpack.c.l.b16 %v2099
        %v3016 = vunpack.c.l.b16 %v2103
        %v3017 = vunpack.c.l.b16 %v2107
        %v3018 = vunpack.c.l.b16 %v2111
        %v3019 = vunpack.c.l.b16 %v2135
        %v3020 = vunpack.c.l.b16 %v2139
        %v3021 = vunpack.c.l.b16 %v2143
        %v3022 = vunpack.c.l.b16 %v2147
        %v3023 = vunpack.c.l.b16 %v2171
        %v3024 = vunpack.c.l.b16 %v2175
        %v3025 = vunpack.c.l.b16 %v2179
        %v3026 = vunpack.c.l.b16 %v2183
        %v3027 = vunpack.c.l.b16 %v2207
        %v3028 = vunpack.c.l.b16 %v2211
        %v3029 = vunpack.c.l.b16 %v2215
        %v3030 = vunpack.c.l.b16 %v2219
        %v3031 = vpack.c.b16 %v3015, %v3015
        %v3032 = vpack.c.b16 %v3016, %v3016
        %v3033 = vpack.c.b16 %v3017, %v3017
        %v3034 = vpack.c.b16 %v3018, %v3018
        %v3035 = vpack.c.b16 %v3019, %v3019
        %v3036 = vpack.c.b16 %v3020, %v3020
        %v3037 = vpack.c.b16 %v3021, %v3021
        %v3038 = vpack.c.b16 %v3022, %v3022
        %v3039 = vpack.c.b16 %v3023, %v3023
        %v3040 = vpack.c.b16 %v3024, %v3024
        %v3041 = vpack.c.b16 %v3025, %v3025
        %v3042 = vpack.c.b16 %v3026, %v3026
        %v3043 = vpack.c.b16 %v3027, %v3027
        %v3044 = vpack.c.b16 %v3028, %v3028
        %v3045 = vpack.c.b16 %v3029, %v3029
        %v3046 = vpack.c.b16 %v3030, %v3030
        %3047 = vrot.lane.b32.xlu0 %v3031, 36
        %v3048 = vpop.permute.xlu0 %3047
        %3049 = vrot.lane.b32.xlu0 %v3032, 36
        %v3050 = vpop.permute.xlu0 %3049
        %3051 = vrot.lane.b32.xlu0 %v3033, 36
        %v3052 = vpop.permute.xlu0 %3051
        %3053 = vrot.lane.b32.xlu0 %v3034, 36
        %v3054 = vpop.permute.xlu0 %3053
        %3055 = vrot.lane.b32.xlu0 %v3035, 36
        %v3056 = vpop.permute.xlu0 %3055
        %3057 = vrot.lane.b32.xlu0 %v3036, 36
        %v3058 = vpop.permute.xlu0 %3057
        %3059 = vrot.lane.b32.xlu0 %v3037, 36
        %v3060 = vpop.permute.xlu0 %3059
        %3061 = vrot.lane.b32.xlu0 %v3038, 36
        %v3062 = vpop.permute.xlu0 %3061
        %3063 = vrot.lane.b32.xlu0 %v3039, 36
        %v3064 = vpop.permute.xlu0 %3063
        %3065 = vrot.lane.b32.xlu0 %v3040, 36
        %v3066 = vpop.permute.xlu0 %3065
        %3067 = vrot.lane.b32.xlu0 %v3041, 36
        %v3068 = vpop.permute.xlu0 %3067
        %3069 = vrot.lane.b32.xlu0 %v3042, 36
        %v3070 = vpop.permute.xlu0 %3069
        %3071 = vrot.lane.b32.xlu0 %v3043, 36
        %v3072 = vpop.permute.xlu0 %3071
        %3073 = vrot.lane.b32.xlu0 %v3044, 36
        %v3074 = vpop.permute.xlu0 %3073
        %3075 = vrot.lane.b32.xlu0 %v3045, 36
        %v3076 = vpop.permute.xlu0 %3075
        %3077 = vrot.lane.b32.xlu0 %v3046, 36
        %v3078 = vpop.permute.xlu0 %3077
        %v3095 = vunpack.c.l.b16 %v2100
        %v3096 = vunpack.c.l.b16 %v2104
        %v3097 = vunpack.c.l.b16 %v2108
        %v3098 = vunpack.c.l.b16 %v2112
        %v3099 = vunpack.c.l.b16 %v2136
        %v3100 = vunpack.c.l.b16 %v2140
        %v3101 = vunpack.c.l.b16 %v2144
        %v3102 = vunpack.c.l.b16 %v2148
        %v3103 = vunpack.c.l.b16 %v2172
        %v3104 = vunpack.c.l.b16 %v2176
        %v3105 = vunpack.c.l.b16 %v2180
        %v3106 = vunpack.c.l.b16 %v2184
        %v3107 = vunpack.c.l.b16 %v2208
        %v3108 = vunpack.c.l.b16 %v2212
        %v3109 = vunpack.c.l.b16 %v2216
        %v3110 = vunpack.c.l.b16 %v2220
        %v3111 = vpack.c.b16 %v3095, %v3015
        %v3112 = vpack.c.b16 %v3096, %v3016
        %v3113 = vpack.c.b16 %v3097, %v3017
        %v3114 = vpack.c.b16 %v3098, %v3018
        %v3115 = vpack.c.b16 %v3099, %v3019
        %v3116 = vpack.c.b16 %v3100, %v3020
        %v3117 = vpack.c.b16 %v3101, %v3021
        %v3118 = vpack.c.b16 %v3102, %v3022
        %v3119 = vpack.c.b16 %v3103, %v3023
        %v3120 = vpack.c.b16 %v3104, %v3024
        %v3121 = vpack.c.b16 %v3105, %v3025
        %v3122 = vpack.c.b16 %v3106, %v3026
        %v3123 = vpack.c.b16 %v3107, %v3027
        %v3124 = vpack.c.b16 %v3108, %v3028
        %v3125 = vpack.c.b16 %v3109, %v3029
        %v3126 = vpack.c.b16 %v3110, %v3030
        %v3128 = vshrl.u32 %v3111, 16
        %v3130 = vshll.u32 %v3111, 16
        %v3132 = vrot.slane %v3130, 1
        %v3133 = vor.u32 %v3128, %v3132
        %v3135 = vshrl.u32 %v3112, 16
        %v3137 = vshll.u32 %v3112, 16
        %v3139 = vrot.slane %v3137, 1
        %v3140 = vor.u32 %v3135, %v3139
        %v3142 = vshrl.u32 %v3113, 16
        %v3144 = vshll.u32 %v3113, 16
        %v3146 = vrot.slane %v3144, 1
        %v3147 = vor.u32 %v3142, %v3146
        %v3149 = vshrl.u32 %v3114, 16
        %v3151 = vshll.u32 %v3114, 16
        %v3153 = vrot.slane %v3151, 1
        %v3154 = vor.u32 %v3149, %v3153
        %v3156 = vshrl.u32 %v3115, 16
        %v3158 = vshll.u32 %v3115, 16
        %v3160 = vrot.slane %v3158, 1
        %v3161 = vor.u32 %v3156, %v3160
        %v3163 = vshrl.u32 %v3116, 16
        %v3165 = vshll.u32 %v3116, 16
        %v3167 = vrot.slane %v3165, 1
        %v3168 = vor.u32 %v3163, %v3167
        %v3170 = vshrl.u32 %v3117, 16
        %v3172 = vshll.u32 %v3117, 16
        %v3174 = vrot.slane %v3172, 1
        %v3175 = vor.u32 %v3170, %v3174
        %v3177 = vshrl.u32 %v3118, 16
        %v3179 = vshll.u32 %v3118, 16
        %v3181 = vrot.slane %v3179, 1
        %v3182 = vor.u32 %v3177, %v3181
        %v3184 = vshrl.u32 %v3119, 16
        %v3186 = vshll.u32 %v3119, 16
        %v3188 = vrot.slane %v3186, 1
        %v3189 = vor.u32 %v3184, %v3188
        %v3191 = vshrl.u32 %v3120, 16
        %v3193 = vshll.u32 %v3120, 16
        %v3195 = vrot.slane %v3193, 1
        %v3196 = vor.u32 %v3191, %v3195
        %v3198 = vshrl.u32 %v3121, 16
        %v3200 = vshll.u32 %v3121, 16
        %v3202 = vrot.slane %v3200, 1
        %v3203 = vor.u32 %v3198, %v3202
        %v3205 = vshrl.u32 %v3122, 16
        %v3207 = vshll.u32 %v3122, 16
        %v3209 = vrot.slane %v3207, 1
        %v3210 = vor.u32 %v3205, %v3209
        %v3212 = vshrl.u32 %v3123, 16
        %v3214 = vshll.u32 %v3123, 16
        %v3216 = vrot.slane %v3214, 1
        %v3217 = vor.u32 %v3212, %v3216
        %v3219 = vshrl.u32 %v3124, 16
        %v3221 = vshll.u32 %v3124, 16
        %v3223 = vrot.slane %v3221, 1
        %v3224 = vor.u32 %v3219, %v3223
        %v3226 = vshrl.u32 %v3125, 16
        %v3228 = vshll.u32 %v3125, 16
        %v3230 = vrot.slane %v3228, 1
        %v3231 = vor.u32 %v3226, %v3230
        %v3233 = vshrl.u32 %v3126, 16
        %v3235 = vshll.u32 %v3126, 16
        %v3237 = vrot.slane %v3235, 1
        %v3238 = vor.u32 %v3233, %v3237
        %3239 = vrot.lane.b32.xlu0 %v3133, 40
        %v3240 = vpop.permute.xlu0 %3239
        %3241 = vrot.lane.b32.xlu0 %v3140, 40
        %v3242 = vpop.permute.xlu0 %3241
        %3243 = vrot.lane.b32.xlu0 %v3147, 40
        %v3244 = vpop.permute.xlu0 %3243
        %3245 = vrot.lane.b32.xlu0 %v3154, 40
        %v3246 = vpop.permute.xlu0 %3245
        %3247 = vrot.lane.b32.xlu0 %v3161, 40
        %v3248 = vpop.permute.xlu0 %3247
        %3249 = vrot.lane.b32.xlu0 %v3168, 40
        %v3250 = vpop.permute.xlu0 %3249
        %3251 = vrot.lane.b32.xlu0 %v3175, 40
        %v3252 = vpop.permute.xlu0 %3251
        %3253 = vrot.lane.b32.xlu0 %v3182, 40
        %v3254 = vpop.permute.xlu0 %3253
        %3255 = vrot.lane.b32.xlu0 %v3189, 40
        %v3256 = vpop.permute.xlu0 %3255
        %3257 = vrot.lane.b32.xlu0 %v3196, 40
        %v3258 = vpop.permute.xlu0 %3257
        %3259 = vrot.lane.b32.xlu0 %v3203, 40
        %v3260 = vpop.permute.xlu0 %3259
        %3261 = vrot.lane.b32.xlu0 %v3210, 40
        %v3262 = vpop.permute.xlu0 %3261
        %3263 = vrot.lane.b32.xlu0 %v3217, 40
        %v3264 = vpop.permute.xlu0 %3263
        %3265 = vrot.lane.b32.xlu0 %v3224, 40
        %v3266 = vpop.permute.xlu0 %3265
        %3267 = vrot.lane.b32.xlu0 %v3231, 40
        %v3268 = vpop.permute.xlu0 %3267
        %3269 = vrot.lane.b32.xlu0 %v3238, 40
        %v3270 = vpop.permute.xlu0 %3269
        %v3271 = vrot.slane %v3111, 1
        %v3272 = vrot.slane %v3112, 1
        %v3273 = vrot.slane %v3113, 1
        %v3274 = vrot.slane %v3114, 1
        %v3275 = vrot.slane %v3115, 1
        %v3276 = vrot.slane %v3116, 1
        %v3277 = vrot.slane %v3117, 1
        %v3278 = vrot.slane %v3118, 1
        %v3279 = vrot.slane %v3119, 1
        %v3280 = vrot.slane %v3120, 1
        %v3281 = vrot.slane %v3121, 1
        %v3282 = vrot.slane %v3122, 1
        %v3283 = vrot.slane %v3123, 1
        %v3284 = vrot.slane %v3124, 1
        %v3285 = vrot.slane %v3125, 1
        %v3286 = vrot.slane %v3126, 1
        %3287 = vrot.lane.b32.xlu0 %v3271, 44
        %v3288 = vpop.permute.xlu0 %3287
        %3289 = vrot.lane.b32.xlu0 %v3272, 44
        %v3290 = vpop.permute.xlu0 %3289
        %3291 = vrot.lane.b32.xlu0 %v3273, 44
        %v3292 = vpop.permute.xlu0 %3291
        %3293 = vrot.lane.b32.xlu0 %v3274, 44
        %v3294 = vpop.permute.xlu0 %3293
        %3295 = vrot.lane.b32.xlu0 %v3275, 44
        %v3296 = vpop.permute.xlu0 %3295
        %3297 = vrot.lane.b32.xlu0 %v3276, 44
        %v3298 = vpop.permute.xlu0 %3297
        %3299 = vrot.lane.b32.xlu0 %v3277, 44
        %v3300 = vpop.permute.xlu0 %3299
        %3301 = vrot.lane.b32.xlu0 %v3278, 44
        %v3302 = vpop.permute.xlu0 %3301
        %3303 = vrot.lane.b32.xlu0 %v3279, 44
        %v3304 = vpop.permute.xlu0 %3303
        %3305 = vrot.lane.b32.xlu0 %v3280, 44
        %v3306 = vpop.permute.xlu0 %3305
        %3307 = vrot.lane.b32.xlu0 %v3281, 44
        %v3308 = vpop.permute.xlu0 %3307
        %3309 = vrot.lane.b32.xlu0 %v3282, 44
        %v3310 = vpop.permute.xlu0 %3309
        %3311 = vrot.lane.b32.xlu0 %v3283, 44
        %v3312 = vpop.permute.xlu0 %3311
        %3313 = vrot.lane.b32.xlu0 %v3284, 44
        %v3314 = vpop.permute.xlu0 %3313
        %3315 = vrot.lane.b32.xlu0 %v3285, 44
        %v3316 = vpop.permute.xlu0 %3315
        %3317 = vrot.lane.b32.xlu0 %v3286, 44
        %v3318 = vpop.permute.xlu0 %3317
        %v3335 = vunpack.c.l.b16 %v2101
        %v3336 = vunpack.c.l.b16 %v2105
        %v3337 = vunpack.c.l.b16 %v2109
        %v3338 = vunpack.c.l.b16 %v2113
        %v3339 = vunpack.c.l.b16 %v2137
        %v3340 = vunpack.c.l.b16 %v2141
        %v3341 = vunpack.c.l.b16 %v2145
        %v3342 = vunpack.c.l.b16 %v2149
        %v3343 = vunpack.c.l.b16 %v2173
        %v3344 = vunpack.c.l.b16 %v2177
        %v3345 = vunpack.c.l.b16 %v2181
        %v3346 = vunpack.c.l.b16 %v2185
        %v3347 = vunpack.c.l.b16 %v2209
        %v3348 = vunpack.c.l.b16 %v2213
        %v3349 = vunpack.c.l.b16 %v2217
        %v3350 = vunpack.c.l.b16 %v2221
        %v3351 = vpack.c.b16 %v3335, %v3335
        %v3352 = vpack.c.b16 %v3336, %v3336
        %v3353 = vpack.c.b16 %v3337, %v3337
        %v3354 = vpack.c.b16 %v3338, %v3338
        %v3355 = vpack.c.b16 %v3339, %v3339
        %v3356 = vpack.c.b16 %v3340, %v3340
        %v3357 = vpack.c.b16 %v3341, %v3341
        %v3358 = vpack.c.b16 %v3342, %v3342
        %v3359 = vpack.c.b16 %v3343, %v3343
        %v3360 = vpack.c.b16 %v3344, %v3344
        %v3361 = vpack.c.b16 %v3345, %v3345
        %v3362 = vpack.c.b16 %v3346, %v3346
        %v3363 = vpack.c.b16 %v3347, %v3347
        %v3364 = vpack.c.b16 %v3348, %v3348
        %v3365 = vpack.c.b16 %v3349, %v3349
        %v3366 = vpack.c.b16 %v3350, %v3350
        %3367 = vrot.lane.b32.xlu0 %v3351, 48
        %v3368 = vpop.permute.xlu0 %3367
        %3369 = vrot.lane.b32.xlu0 %v3352, 48
        %v3370 = vpop.permute.xlu0 %3369
        %3371 = vrot.lane.b32.xlu0 %v3353, 48
        %v3372 = vpop.permute.xlu0 %3371
        %3373 = vrot.lane.b32.xlu0 %v3354, 48
        %v3374 = vpop.permute.xlu0 %3373
        %3375 = vrot.lane.b32.xlu0 %v3355, 48
        %v3376 = vpop.permute.xlu0 %3375
        %3377 = vrot.lane.b32.xlu0 %v3356, 48
        %v3378 = vpop.permute.xlu0 %3377
        %3379 = vrot.lane.b32.xlu0 %v3357, 48
        %v3380 = vpop.permute.xlu0 %3379
        %3381 = vrot.lane.b32.xlu0 %v3358, 48
        %v3382 = vpop.permute.xlu0 %3381
        %3383 = vrot.lane.b32.xlu0 %v3359, 48
        %v3384 = vpop.permute.xlu0 %3383
        %3385 = vrot.lane.b32.xlu0 %v3360, 48
        %v3386 = vpop.permute.xlu0 %3385
        %3387 = vrot.lane.b32.xlu0 %v3361, 48
        %v3388 = vpop.permute.xlu0 %3387
        %3389 = vrot.lane.b32.xlu0 %v3362, 48
        %v3390 = vpop.permute.xlu0 %3389
        %3391 = vrot.lane.b32.xlu0 %v3363, 48
        %v3392 = vpop.permute.xlu0 %3391
        %3393 = vrot.lane.b32.xlu0 %v3364, 48
        %v3394 = vpop.permute.xlu0 %3393
        %3395 = vrot.lane.b32.xlu0 %v3365, 48
        %v3396 = vpop.permute.xlu0 %3395
        %3397 = vrot.lane.b32.xlu0 %v3366, 48
        %v3398 = vpop.permute.xlu0 %3397
        %v3415 = vunpack.c.l.b16 %v2102
        %v3416 = vunpack.c.l.b16 %v2106
        %v3417 = vunpack.c.l.b16 %v2110
        %v3418 = vunpack.c.l.b16 %v2114
        %v3419 = vunpack.c.l.b16 %v2138
        %v3420 = vunpack.c.l.b16 %v2142
        %v3421 = vunpack.c.l.b16 %v2146
        %v3422 = vunpack.c.l.b16 %v2150
        %v3423 = vunpack.c.l.b16 %v2174
        %v3424 = vunpack.c.l.b16 %v2178
        %v3425 = vunpack.c.l.b16 %v2182
        %v3426 = vunpack.c.l.b16 %v2186
        %v3427 = vunpack.c.l.b16 %v2210
        %v3428 = vunpack.c.l.b16 %v2214
        %v3429 = vunpack.c.l.b16 %v2218
        %v3430 = vunpack.c.l.b16 %v2222
        %v3431 = vpack.c.b16 %v3415, %v3335
        %v3432 = vpack.c.b16 %v3416, %v3336
        %v3433 = vpack.c.b16 %v3417, %v3337
        %v3434 = vpack.c.b16 %v3418, %v3338
        %v3435 = vpack.c.b16 %v3419, %v3339
        %v3436 = vpack.c.b16 %v3420, %v3340
        %v3437 = vpack.c.b16 %v3421, %v3341
        %v3438 = vpack.c.b16 %v3422, %v3342
        %v3439 = vpack.c.b16 %v3423, %v3343
        %v3440 = vpack.c.b16 %v3424, %v3344
        %v3441 = vpack.c.b16 %v3425, %v3345
        %v3442 = vpack.c.b16 %v3426, %v3346
        %v3443 = vpack.c.b16 %v3427, %v3347
        %v3444 = vpack.c.b16 %v3428, %v3348
        %v3445 = vpack.c.b16 %v3429, %v3349
        %v3446 = vpack.c.b16 %v3430, %v3350
        %v3448 = vshrl.u32 %v3431, 16
        %v3450 = vshll.u32 %v3431, 16
        %v3452 = vrot.slane %v3450, 1
        %v3453 = vor.u32 %v3448, %v3452
        %v3455 = vshrl.u32 %v3432, 16
        %v3457 = vshll.u32 %v3432, 16
        %v3459 = vrot.slane %v3457, 1
        %v3460 = vor.u32 %v3455, %v3459
        %v3462 = vshrl.u32 %v3433, 16
        %v3464 = vshll.u32 %v3433, 16
        %v3466 = vrot.slane %v3464, 1
        %v3467 = vor.u32 %v3462, %v3466
        %v3469 = vshrl.u32 %v3434, 16
        %v3471 = vshll.u32 %v3434, 16
        %v3473 = vrot.slane %v3471, 1
        %v3474 = vor.u32 %v3469, %v3473
        %v3476 = vshrl.u32 %v3435, 16
        %v3478 = vshll.u32 %v3435, 16
        %v3480 = vrot.slane %v3478, 1
        %v3481 = vor.u32 %v3476, %v3480
        %v3483 = vshrl.u32 %v3436, 16
        %v3485 = vshll.u32 %v3436, 16
        %v3487 = vrot.slane %v3485, 1
        %v3488 = vor.u32 %v3483, %v3487
        %v3490 = vshrl.u32 %v3437, 16
        %v3492 = vshll.u32 %v3437, 16
        %v3494 = vrot.slane %v3492, 1
        %v3495 = vor.u32 %v3490, %v3494
        %v3497 = vshrl.u32 %v3438, 16
        %v3499 = vshll.u32 %v3438, 16
        %v3501 = vrot.slane %v3499, 1
        %v3502 = vor.u32 %v3497, %v3501
        %v3504 = vshrl.u32 %v3439, 16
        %v3506 = vshll.u32 %v3439, 16
        %v3508 = vrot.slane %v3506, 1
        %v3509 = vor.u32 %v3504, %v3508
        %v3511 = vshrl.u32 %v3440, 16
        %v3513 = vshll.u32 %v3440, 16
        %v3515 = vrot.slane %v3513, 1
        %v3516 = vor.u32 %v3511, %v3515
        %v3518 = vshrl.u32 %v3441, 16
        %v3520 = vshll.u32 %v3441, 16
        %v3522 = vrot.slane %v3520, 1
        %v3523 = vor.u32 %v3518, %v3522
        %v3525 = vshrl.u32 %v3442, 16
        %v3527 = vshll.u32 %v3442, 16
        %v3529 = vrot.slane %v3527, 1
        %v3530 = vor.u32 %v3525, %v3529
        %v3532 = vshrl.u32 %v3443, 16
        %v3534 = vshll.u32 %v3443, 16
        %v3536 = vrot.slane %v3534, 1
        %v3537 = vor.u32 %v3532, %v3536
        %v3539 = vshrl.u32 %v3444, 16
        %v3541 = vshll.u32 %v3444, 16
        %v3543 = vrot.slane %v3541, 1
        %v3544 = vor.u32 %v3539, %v3543
        %v3546 = vshrl.u32 %v3445, 16
        %v3548 = vshll.u32 %v3445, 16
        %v3550 = vrot.slane %v3548, 1
        %v3551 = vor.u32 %v3546, %v3550
        %v3553 = vshrl.u32 %v3446, 16
        %v3555 = vshll.u32 %v3446, 16
        %v3557 = vrot.slane %v3555, 1
        %v3558 = vor.u32 %v3553, %v3557
        %3559 = vrot.lane.b32.xlu0 %v3453, 52
        %v3560 = vpop.permute.xlu0 %3559
        %3561 = vrot.lane.b32.xlu0 %v3460, 52
        %v3562 = vpop.permute.xlu0 %3561
        %3563 = vrot.lane.b32.xlu0 %v3467, 52
        %v3564 = vpop.permute.xlu0 %3563
        %3565 = vrot.lane.b32.xlu0 %v3474, 52
        %v3566 = vpop.permute.xlu0 %3565
        %3567 = vrot.lane.b32.xlu0 %v3481, 52
        %v3568 = vpop.permute.xlu0 %3567
        %3569 = vrot.lane.b32.xlu0 %v3488, 52
        %v3570 = vpop.permute.xlu0 %3569
        %3571 = vrot.lane.b32.xlu0 %v3495, 52
        %v3572 = vpop.permute.xlu0 %3571
        %3573 = vrot.lane.b32.xlu0 %v3502, 52
        %v3574 = vpop.permute.xlu0 %3573
        %3575 = vrot.lane.b32.xlu0 %v3509, 52
        %v3576 = vpop.permute.xlu0 %3575
        %3577 = vrot.lane.b32.xlu0 %v3516, 52
        %v3578 = vpop.permute.xlu0 %3577
        %3579 = vrot.lane.b32.xlu0 %v3523, 52
        %v3580 = vpop.permute.xlu0 %3579
        %3581 = vrot.lane.b32.xlu0 %v3530, 52
        %v3582 = vpop.permute.xlu0 %3581
        %3583 = vrot.lane.b32.xlu0 %v3537, 52
        %v3584 = vpop.permute.xlu0 %3583
        %3585 = vrot.lane.b32.xlu0 %v3544, 52
        %v3586 = vpop.permute.xlu0 %3585
        %3587 = vrot.lane.b32.xlu0 %v3551, 52
        %v3588 = vpop.permute.xlu0 %3587
        %3589 = vrot.lane.b32.xlu0 %v3558, 52
        %v3590 = vpop.permute.xlu0 %3589
        %v3591 = vrot.slane %v3431, 1
        %v3592 = vrot.slane %v3432, 1
        %v3593 = vrot.slane %v3433, 1
        %v3594 = vrot.slane %v3434, 1
        %v3595 = vrot.slane %v3435, 1
        %v3596 = vrot.slane %v3436, 1
        %v3597 = vrot.slane %v3437, 1
        %v3598 = vrot.slane %v3438, 1
        %v3599 = vrot.slane %v3439, 1
        %v3600 = vrot.slane %v3440, 1
        %v3601 = vrot.slane %v3441, 1
        %v3602 = vrot.slane %v3442, 1
        %v3603 = vrot.slane %v3443, 1
        %v3604 = vrot.slane %v3444, 1
        %v3605 = vrot.slane %v3445, 1
        %v3606 = vrot.slane %v3446, 1
        %3607 = vrot.lane.b32.xlu0 %v3591, 56
        %v3608 = vpop.permute.xlu0 %3607
        %3609 = vrot.lane.b32.xlu0 %v3592, 56
        %v3610 = vpop.permute.xlu0 %3609
        %3611 = vrot.lane.b32.xlu0 %v3593, 56
        %v3612 = vpop.permute.xlu0 %3611
        %3613 = vrot.lane.b32.xlu0 %v3594, 56
        %v3614 = vpop.permute.xlu0 %3613
        %3615 = vrot.lane.b32.xlu0 %v3595, 56
        %v3616 = vpop.permute.xlu0 %3615
        %3617 = vrot.lane.b32.xlu0 %v3596, 56
        %v3618 = vpop.permute.xlu0 %3617
        %3619 = vrot.lane.b32.xlu0 %v3597, 56
        %v3620 = vpop.permute.xlu0 %3619
        %3621 = vrot.lane.b32.xlu0 %v3598, 56
        %v3622 = vpop.permute.xlu0 %3621
        %3623 = vrot.lane.b32.xlu0 %v3599, 56
        %v3624 = vpop.permute.xlu0 %3623
        %3625 = vrot.lane.b32.xlu0 %v3600, 56
        %v3626 = vpop.permute.xlu0 %3625
        %3627 = vrot.lane.b32.xlu0 %v3601, 56
        %v3628 = vpop.permute.xlu0 %3627
        %3629 = vrot.lane.b32.xlu0 %v3602, 56
        %v3630 = vpop.permute.xlu0 %3629
        %3631 = vrot.lane.b32.xlu0 %v3603, 56
        %v3632 = vpop.permute.xlu0 %3631
        %3633 = vrot.lane.b32.xlu0 %v3604, 56
        %v3634 = vpop.permute.xlu0 %3633
        %3635 = vrot.lane.b32.xlu0 %v3605, 56
        %v3636 = vpop.permute.xlu0 %3635
        %3637 = vrot.lane.b32.xlu0 %v3606, 56
        %v3638 = vpop.permute.xlu0 %3637
        %v3643 = vunpack.c.l.b16 %v2115
        %v3644 = vunpack.c.l.b16 %v2151
        %v3645 = vunpack.c.l.b16 %v2187
        %v3646 = vunpack.c.l.b16 %v2223
        %v3647 = vpack.c.b16 %v3643, %v3643
        %v3648 = vpack.c.b16 %v3644, %v3644
        %v3649 = vpack.c.b16 %v3645, %v3645
        %v3650 = vpack.c.b16 %v3646, %v3646
        %3651 = vrot.lane.b32.xlu0 %v3032, 60
        %v3652 = vpop.permute.xlu0 %3651
        %3653 = vrot.lane.b32.xlu0 %v3033, 60
        %v3654 = vpop.permute.xlu0 %3653
        %3655 = vrot.lane.b32.xlu0 %v3034, 60
        %v3656 = vpop.permute.xlu0 %3655
        %3657 = vrot.lane.b32.xlu0 %v3647, 60
        %v3658 = vpop.permute.xlu0 %3657
        %3659 = vrot.lane.b32.xlu0 %v3036, 60
        %v3660 = vpop.permute.xlu0 %3659
        %3661 = vrot.lane.b32.xlu0 %v3037, 60
        %v3662 = vpop.permute.xlu0 %3661
        %3663 = vrot.lane.b32.xlu0 %v3038, 60
        %v3664 = vpop.permute.xlu0 %3663
        %3665 = vrot.lane.b32.xlu0 %v3648, 60
        %v3666 = vpop.permute.xlu0 %3665
        %3667 = vrot.lane.b32.xlu0 %v3040, 60
        %v3668 = vpop.permute.xlu0 %3667
        %3669 = vrot.lane.b32.xlu0 %v3041, 60
        %v3670 = vpop.permute.xlu0 %3669
        %3671 = vrot.lane.b32.xlu0 %v3042, 60
        %v3672 = vpop.permute.xlu0 %3671
        %3673 = vrot.lane.b32.xlu0 %v3649, 60
        %v3674 = vpop.permute.xlu0 %3673
        %3675 = vrot.lane.b32.xlu0 %v3044, 60
        %v3676 = vpop.permute.xlu0 %3675
        %3677 = vrot.lane.b32.xlu0 %v3045, 60
        %v3678 = vpop.permute.xlu0 %3677
        %3679 = vrot.lane.b32.xlu0 %v3046, 60
        %v3680 = vpop.permute.xlu0 %3679
        %3681 = vrot.lane.b32.xlu0 %v3650, 60
        %v3682 = vpop.permute.xlu0 %3681
        %vm3683 = vcmask 31744
        %v3686 = vsel %vm3683, %v2081, %v2436
        %v3689 = vsel %vm3683, %v2085, %v2438
        %v3692 = vsel %vm3683, %v2089, %v2440
        %v3695 = vsel %vm3683, %v2093, %v2442
        %v3698 = vsel %vm3683, %v2117, %v2444
        %v3701 = vsel %vm3683, %v2121, %v2446
        %v3704 = vsel %vm3683, %v2125, %v2448
        %v3707 = vsel %vm3683, %v2129, %v2450
        %v3710 = vsel %vm3683, %v2153, %v2452
        %v3713 = vsel %vm3683, %v2157, %v2454
        %v3716 = vsel %vm3683, %v2161, %v2456
        %v3719 = vsel %vm3683, %v2165, %v2458
        %v3722 = vsel %vm3683, %v2189, %v2460
        %v3725 = vsel %vm3683, %v2193, %v2462
        %v3728 = vsel %vm3683, %v2197, %v2464
        %v3731 = vsel %vm3683, %v2201, %v2466
        %vm3732 = vcmask 64512
        %v3734 = vsel %vm3732, %v3686, %v2484
        %v3736 = vsel %vm3732, %v3689, %v2486
        %v3738 = vsel %vm3732, %v3692, %v2488
        %v3740 = vsel %vm3732, %v3695, %v2490
        %v3742 = vsel %vm3732, %v3698, %v2492
        %v3744 = vsel %vm3732, %v3701, %v2494
        %v3746 = vsel %vm3732, %v3704, %v2496
        %v3748 = vsel %vm3732, %v3707, %v2498
        %v3750 = vsel %vm3732, %v3710, %v2500
        %v3752 = vsel %vm3732, %v3713, %v2502
        %v3754 = vsel %vm3732, %v3716, %v2504
        %v3756 = vsel %vm3732, %v3719, %v2506
        %v3758 = vsel %vm3732, %v3722, %v2508
        %v3760 = vsel %vm3732, %v3725, %v2510
        %v3762 = vsel %vm3732, %v3728, %v2512
        %v3764 = vsel %vm3732, %v3731, %v2514
        %vm3765 = vcmask 97280
        %v3767 = vsel %vm3765, %v3734, %v2564
        %v3769 = vsel %vm3765, %v3736, %v2566
        %v3771 = vsel %vm3765, %v3738, %v2568
        %v3773 = vsel %vm3765, %v3740, %v2570
        %v3775 = vsel %vm3765, %v3742, %v2572
        %v3777 = vsel %vm3765, %v3744, %v2574
        %v3779 = vsel %vm3765, %v3746, %v2576
        %v3781 = vsel %vm3765, %v3748, %v2578
        %v3783 = vsel %vm3765, %v3750, %v2580
        %v3785 = vsel %vm3765, %v3752, %v2582
        %v3787 = vsel %vm3765, %v3754, %v2584
        %v3789 = vsel %vm3765, %v3756, %v2586
        %v3791 = vsel %vm3765, %v3758, %v2588
        %v3793 = vsel %vm3765, %v3760, %v2590
        %v3795 = vsel %vm3765, %v3762, %v2592
        %v3797 = vsel %vm3765, %v3764, %v2594
        %vm3798 = vcmask 130048
        %v3800 = vsel %vm3798, %v3767, %v2756
        %v3802 = vsel %vm3798, %v3769, %v2758
        %v3804 = vsel %vm3798, %v3771, %v2760
        %v3806 = vsel %vm3798, %v3773, %v2762
        %v3808 = vsel %vm3798, %v3775, %v2764
        %v3810 = vsel %vm3798, %v3777, %v2766
        %v3812 = vsel %vm3798, %v3779, %v2768
        %v3814 = vsel %vm3798, %v3781, %v2770
        %v3816 = vsel %vm3798, %v3783, %v2772
        %v3818 = vsel %vm3798, %v3785, %v2774
        %v3820 = vsel %vm3798, %v3787, %v2776
        %v3822 = vsel %vm3798, %v3789, %v2778
        %v3824 = vsel %vm3798, %v3791, %v2780
        %v3826 = vsel %vm3798, %v3793, %v2782
        %v3828 = vsel %vm3798, %v3795, %v2784
        %v3830 = vsel %vm3798, %v3797, %v2786
        %vm3831 = vcmask 162816
        %v3833 = vsel %vm3831, %v3800, %v2804
        %v3835 = vsel %vm3831, %v3802, %v2806
        %v3837 = vsel %vm3831, %v3804, %v2808
        %v3839 = vsel %vm3831, %v3806, %v2810
        %v3841 = vsel %vm3831, %v3808, %v2812
        %v3843 = vsel %vm3831, %v3810, %v2814
        %v3845 = vsel %vm3831, %v3812, %v2816
        %v3847 = vsel %vm3831, %v3814, %v2818
        %v3849 = vsel %vm3831, %v3816, %v2820
        %v3851 = vsel %vm3831, %v3818, %v2822
        %v3853 = vsel %vm3831, %v3820, %v2824
        %v3855 = vsel %vm3831, %v3822, %v2826
        %v3857 = vsel %vm3831, %v3824, %v2828
        %v3859 = vsel %vm3831, %v3826, %v2830
        %v3861 = vsel %vm3831, %v3828, %v2832
        %v3863 = vsel %vm3831, %v3830, %v2834
        %vm3864 = vcmask 195584
        %v3866 = vsel %vm3864, %v3833, %v2860
        %v3868 = vsel %vm3864, %v3835, %v2862
        %v3870 = vsel %vm3864, %v3837, %v2864
        %v3872 = vsel %vm3864, %v3839, %v2866
        %v3874 = vsel %vm3864, %v3841, %v2868
        %v3876 = vsel %vm3864, %v3843, %v2870
        %v3878 = vsel %vm3864, %v3845, %v2872
        %v3880 = vsel %vm3864, %v3847, %v2874
        %v3882 = vsel %vm3864, %v3849, %v2876
        %v3884 = vsel %vm3864, %v3851, %v2878
        %v3886 = vsel %vm3864, %v3853, %v2880
        %v3888 = vsel %vm3864, %v3855, %v2882
        %v3890 = vsel %vm3864, %v3857, %v2884
        %v3892 = vsel %vm3864, %v3859, %v2886
        %v3894 = vsel %vm3864, %v3861, %v2888
        %v3896 = vsel %vm3864, %v3863, %v2890
        %vm3897 = vcmask 228352
        %v3899 = vsel %vm3897, %v3866, %v2932
        %v3901 = vsel %vm3897, %v3868, %v2934
        %v3903 = vsel %vm3897, %v3870, %v2936
        %v3905 = vsel %vm3897, %v3872, %v2938
        %v3907 = vsel %vm3897, %v3874, %v2940
        %v3909 = vsel %vm3897, %v3876, %v2942
        %v3911 = vsel %vm3897, %v3878, %v2944
        %v3913 = vsel %vm3897, %v3880, %v2946
        %v3915 = vsel %vm3897, %v3882, %v2948
        %v3917 = vsel %vm3897, %v3884, %v2950
        %v3919 = vsel %vm3897, %v3886, %v2952
        %v3921 = vsel %vm3897, %v3888, %v2954
        %v3923 = vsel %vm3897, %v3890, %v2956
        %v3925 = vsel %vm3897, %v3892, %v2958
        %v3927 = vsel %vm3897, %v3894, %v2960
        %v3929 = vsel %vm3897, %v3896, %v2962
        %vm3930 = vcmask 261120
        %v3932 = vsel %vm3930, %v3899, %v2968
        %v3934 = vsel %vm3930, %v3901, %v2970
        %v3936 = vsel %vm3930, %v3903, %v2972
        %v3938 = vsel %vm3930, %v3905, %v2974
        %v3940 = vsel %vm3930, %v3907, %v2976
        %v3942 = vsel %vm3930, %v3909, %v2978
        %v3944 = vsel %vm3930, %v3911, %v2980
        %v3946 = vsel %vm3930, %v3913, %v2982
        %v3948 = vsel %vm3930, %v3915, %v2984
        %v3950 = vsel %vm3930, %v3917, %v2986
        %v3952 = vsel %vm3930, %v3919, %v2988
        %v3954 = vsel %vm3930, %v3921, %v2990
        %v3956 = vsel %vm3930, %v3923, %v2992
        %v3958 = vsel %vm3930, %v3925, %v2994
        %v3960 = vsel %vm3930, %v3927, %v2996
        %v3962 = vsel %vm3930, %v3929, %v2998
        %vm3963 = vcmask 293888
        %v3965 = vsel %vm3963, %v3932, %v3048
        %v3967 = vsel %vm3963, %v3934, %v3050
        %v3969 = vsel %vm3963, %v3936, %v3052
        %v3971 = vsel %vm3963, %v3938, %v3054
        %v3973 = vsel %vm3963, %v3940, %v3056
        %v3975 = vsel %vm3963, %v3942, %v3058
        %v3977 = vsel %vm3963, %v3944, %v3060
        %v3979 = vsel %vm3963, %v3946, %v3062
        %v3981 = vsel %vm3963, %v3948, %v3064
        %v3983 = vsel %vm3963, %v3950, %v3066
        %v3985 = vsel %vm3963, %v3952, %v3068
        %v3987 = vsel %vm3963, %v3954, %v3070
        %v3989 = vsel %vm3963, %v3956, %v3072
        %v3991 = vsel %vm3963, %v3958, %v3074
        %v3993 = vsel %vm3963, %v3960, %v3076
        %v3995 = vsel %vm3963, %v3962, %v3078
        %vm3996 = vcmask 326656
        %v3998 = vsel %vm3996, %v3965, %v3240
        %v4000 = vsel %vm3996, %v3967, %v3242
        %v4002 = vsel %vm3996, %v3969, %v3244
        %v4004 = vsel %vm3996, %v3971, %v3246
        %v4006 = vsel %vm3996, %v3973, %v3248
        %v4008 = vsel %vm3996, %v3975, %v3250
        %v4010 = vsel %vm3996, %v3977, %v3252
        %v4012 = vsel %vm3996, %v3979, %v3254
        %v4014 = vsel %vm3996, %v3981, %v3256
        %v4016 = vsel %vm3996, %v3983, %v3258
        %v4018 = vsel %vm3996, %v3985, %v3260
        %v4020 = vsel %vm3996, %v3987, %v3262
        %v4022 = vsel %vm3996, %v3989, %v3264
        %v4024 = vsel %vm3996, %v3991, %v3266
        %v4026 = vsel %vm3996, %v3993, %v3268
        %v4028 = vsel %vm3996, %v3995, %v3270
        %vm4029 = vcmask 359424
        %v4031 = vsel %vm4029, %v3998, %v3288
        %v4033 = vsel %vm4029, %v4000, %v3290
        %v4035 = vsel %vm4029, %v4002, %v3292
        %v4037 = vsel %vm4029, %v4004, %v3294
        %v4039 = vsel %vm4029, %v4006, %v3296
        %v4041 = vsel %vm4029, %v4008, %v3298
        %v4043 = vsel %vm4029, %v4010, %v3300
        %v4045 = vsel %vm4029, %v4012, %v3302
        %v4047 = vsel %vm4029, %v4014, %v3304
        %v4049 = vsel %vm4029, %v4016, %v3306
        %v4051 = vsel %vm4029, %v4018, %v3308
        %v4053 = vsel %vm4029, %v4020, %v3310
        %v4055 = vsel %vm4029, %v4022, %v3312
        %v4057 = vsel %vm4029, %v4024, %v3314
        %v4059 = vsel %vm4029, %v4026, %v3316
        %v4061 = vsel %vm4029, %v4028, %v3318
        %vm4062 = vcmask 392192
        %v4064 = vsel %vm4062, %v4031, %v3368
        %v4066 = vsel %vm4062, %v4033, %v3370
        %v4068 = vsel %vm4062, %v4035, %v3372
        %v4070 = vsel %vm4062, %v4037, %v3374
        %v4072 = vsel %vm4062, %v4039, %v3376
        %v4074 = vsel %vm4062, %v4041, %v3378
        %v4076 = vsel %vm4062, %v4043, %v3380
        %v4078 = vsel %vm4062, %v4045, %v3382
        %v4080 = vsel %vm4062, %v4047, %v3384
        %v4082 = vsel %vm4062, %v4049, %v3386
        %v4084 = vsel %vm4062, %v4051, %v3388
        %v4086 = vsel %vm4062, %v4053, %v3390
        %v4088 = vsel %vm4062, %v4055, %v3392
        %v4090 = vsel %vm4062, %v4057, %v3394
        %v4092 = vsel %vm4062, %v4059, %v3396
        %v4094 = vsel %vm4062, %v4061, %v3398
        %vm4095 = vcmask 424960
        %v4097 = vsel %vm4095, %v4064, %v3560
        %v4099 = vsel %vm4095, %v4066, %v3562
        %v4101 = vsel %vm4095, %v4068, %v3564
        %v4103 = vsel %vm4095, %v4070, %v3566
        %v4105 = vsel %vm4095, %v4072, %v3568
        %v4107 = vsel %vm4095, %v4074, %v3570
        %v4109 = vsel %vm4095, %v4076, %v3572
        %v4111 = vsel %vm4095, %v4078, %v3574
        %v4113 = vsel %vm4095, %v4080, %v3576
        %v4115 = vsel %vm4095, %v4082, %v3578
        %v4117 = vsel %vm4095, %v4084, %v3580
        %v4119 = vsel %vm4095, %v4086, %v3582
        %v4121 = vsel %vm4095, %v4088, %v3584
        %v4123 = vsel %vm4095, %v4090, %v3586
        %v4125 = vsel %vm4095, %v4092, %v3588
        %v4127 = vsel %vm4095, %v4094, %v3590
        %vm4128 = vcmask 457728
        %v4130 = vsel %vm4128, %v4097, %v3608
        %v4132 = vsel %vm4128, %v4099, %v3610
        %v4134 = vsel %vm4128, %v4101, %v3612
        %v4136 = vsel %vm4128, %v4103, %v3614
        %v4138 = vsel %vm4128, %v4105, %v3616
        %v4140 = vsel %vm4128, %v4107, %v3618
        %v4142 = vsel %vm4128, %v4109, %v3620
        %v4144 = vsel %vm4128, %v4111, %v3622
        %v4146 = vsel %vm4128, %v4113, %v3624
        %v4148 = vsel %vm4128, %v4115, %v3626
        %v4150 = vsel %vm4128, %v4117, %v3628
        %v4152 = vsel %vm4128, %v4119, %v3630
        %v4154 = vsel %vm4128, %v4121, %v3632
        %v4156 = vsel %vm4128, %v4123, %v3634
        %v4158 = vsel %vm4128, %v4125, %v3636
        %v4160 = vsel %vm4128, %v4127, %v3638
        %vm4161 = vcmask 490496
        %v4163 = vsel %vm4161, %v4130, %v3652
        %v4165 = vsel %vm4161, %v4132, %v3654
        %v4167 = vsel %vm4161, %v4134, %v3656
        %v4169 = vsel %vm4161, %v4136, %v3658
        %v4171 = vsel %vm4161, %v4138, %v3660
        %v4173 = vsel %vm4161, %v4140, %v3662
        %v4175 = vsel %vm4161, %v4142, %v3664
        %v4177 = vsel %vm4161, %v4144, %v3666
        %v4179 = vsel %vm4161, %v4146, %v3668
        %v4181 = vsel %vm4161, %v4148, %v3670
        %v4183 = vsel %vm4161, %v4150, %v3672
        %v4185 = vsel %vm4161, %v4152, %v3674
        %v4187 = vsel %vm4161, %v4154, %v3676
        %v4189 = vsel %vm4161, %v4156, %v3678
        %v4191 = vsel %vm4161, %v4158, %v3680
        %v4193 = vsel %vm4161, %v4160, %v3682
        %v4198 = vunpack.c.l.b16 %v2116
        %v4199 = vunpack.c.l.b16 %v2152
        %v4200 = vunpack.c.l.b16 %v2188
        %v4201 = vunpack.c.l.b16 %v2224
        %v4202 = vpack.c.b16 %v4198, %v3643
        %v4203 = vpack.c.b16 %v4199, %v3644
        %v4204 = vpack.c.b16 %v4200, %v3645
        %v4205 = vpack.c.b16 %v4201, %v3646
        %v4207 = vshrl.u32 %v4202, 16
        %v4209 = vshll.u32 %v4202, 16
        %v4211 = vrot.slane %v4209, 1
        %v4212 = vor.u32 %v4207, %v4211
        %v4214 = vshrl.u32 %v4203, 16
        %v4216 = vshll.u32 %v4203, 16
        %v4218 = vrot.slane %v4216, 1
        %v4219 = vor.u32 %v4214, %v4218
        %v4221 = vshrl.u32 %v4204, 16
        %v4223 = vshll.u32 %v4204, 16
        %v4225 = vrot.slane %v4223, 1
        %v4226 = vor.u32 %v4221, %v4225
        %v4228 = vshrl.u32 %v4205, 16
        %v4230 = vshll.u32 %v4205, 16
        %v4232 = vrot.slane %v4230, 1
        %v4233 = vor.u32 %v4228, %v4232
        %4234 = vrot.lane.b32.xlu0 %v3140, 4
        %v4235 = vpop.permute.xlu0 %4234
        %4236 = vrot.lane.b32.xlu0 %v3147, 4
        %v4237 = vpop.permute.xlu0 %4236
        %4238 = vrot.lane.b32.xlu0 %v3154, 4
        %v4239 = vpop.permute.xlu0 %4238
        %4240 = vrot.lane.b32.xlu0 %v4212, 4
        %v4241 = vpop.permute.xlu0 %4240
        %4242 = vrot.lane.b32.xlu0 %v3168, 4
        %v4243 = vpop.permute.xlu0 %4242
        %4244 = vrot.lane.b32.xlu0 %v3175, 4
        %v4245 = vpop.permute.xlu0 %4244
        %4246 = vrot.lane.b32.xlu0 %v3182, 4
        %v4247 = vpop.permute.xlu0 %4246
        %4248 = vrot.lane.b32.xlu0 %v4219, 4
        %v4249 = vpop.permute.xlu0 %4248
        %4250 = vrot.lane.b32.xlu0 %v3196, 4
        %v4251 = vpop.permute.xlu0 %4250
        %4252 = vrot.lane.b32.xlu0 %v3203, 4
        %v4253 = vpop.permute.xlu0 %4252
        %4254 = vrot.lane.b32.xlu0 %v3210, 4
        %v4255 = vpop.permute.xlu0 %4254
        %4256 = vrot.lane.b32.xlu0 %v4226, 4
        %v4257 = vpop.permute.xlu0 %4256
        %4258 = vrot.lane.b32.xlu0 %v3224, 4
        %v4259 = vpop.permute.xlu0 %4258
        %4260 = vrot.lane.b32.xlu0 %v3231, 4
        %v4261 = vpop.permute.xlu0 %4260
        %4262 = vrot.lane.b32.xlu0 %v3238, 4
        %v4263 = vpop.permute.xlu0 %4262
        %4264 = vrot.lane.b32.xlu0 %v4233, 4
        %v4265 = vpop.permute.xlu0 %4264
        %v4270 = vunpack.c.l.b16 %v2225
        %v4271 = vunpack.c.l.b16 %v2229
        %v4272 = vunpack.c.l.b16 %v2233
        %v4273 = vunpack.c.l.b16 %v2237
        %v4274 = vpack.c.b16 %v2283, %v2283
        %v4275 = vpack.c.b16 %v2291, %v2291
        %v4276 = vpack.c.b16 %v2299, %v2299
        %v4277 = vpack.c.b16 %v4270, %v4270
        %v4278 = vpack.c.b16 %v4271, %v4271
        %v4279 = vpack.c.b16 %v4272, %v4272
        %v4280 = vpack.c.b16 %v4273, %v4273
        %v4282 = vshrl.u32 %v4274, 16
        %v4284 = vrot.slane %v4282, 7
        %v4285 = vshll.u32 %v4274, 16
        %v4287 = vor.u32 %v4284, %v4285
        %v4289 = vshrl.u32 %v2847, 16
        %v4291 = vrot.slane %v4289, 7
        %v4292 = vshll.u32 %v2847, 16
        %v4294 = vor.u32 %v4291, %v4292
        %v4296 = vshrl.u32 %v2848, 16
        %v4298 = vrot.slane %v4296, 7
        %v4299 = vshll.u32 %v2848, 16
        %v4301 = vor.u32 %v4298, %v4299
        %v4303 = vshrl.u32 %v2849, 16
        %v4305 = vrot.slane %v4303, 7
        %v4306 = vshll.u32 %v2849, 16
        %v4308 = vor.u32 %v4305, %v4306
        %v4310 = vshrl.u32 %v4275, 16
        %v4312 = vrot.slane %v4310, 7
        %v4313 = vshll.u32 %v4275, 16
        %v4315 = vor.u32 %v4312, %v4313
        %v4317 = vshrl.u32 %v2851, 16
        %v4319 = vrot.slane %v4317, 7
        %v4320 = vshll.u32 %v2851, 16
        %v4322 = vor.u32 %v4319, %v4320
        %v4324 = vshrl.u32 %v2852, 16
        %v4326 = vrot.slane %v4324, 7
        %v4327 = vshll.u32 %v2852, 16
        %v4329 = vor.u32 %v4326, %v4327
        %v4331 = vshrl.u32 %v2853, 16
        %v4333 = vrot.slane %v4331, 7
        %v4334 = vshll.u32 %v2853, 16
        %v4336 = vor.u32 %v4333, %v4334
        %v4338 = vshrl.u32 %v4276, 16
        %v4340 = vrot.slane %v4338, 7
        %v4341 = vshll.u32 %v4276, 16
        %v4343 = vor.u32 %v4340, %v4341
        %v4345 = vshrl.u32 %v2855, 16
        %v4347 = vrot.slane %v4345, 7
        %v4348 = vshll.u32 %v2855, 16
        %v4350 = vor.u32 %v4347, %v4348
        %v4352 = vshrl.u32 %v2856, 16
        %v4354 = vrot.slane %v4352, 7
        %v4355 = vshll.u32 %v2856, 16
        %v4357 = vor.u32 %v4354, %v4355
        %v4359 = vshrl.u32 %v2857, 16
        %v4361 = vrot.slane %v4359, 7
        %v4362 = vshll.u32 %v2857, 16
        %v4364 = vor.u32 %v4361, %v4362
        %v4366 = vshrl.u32 %v4277, 16
        %v4368 = vrot.slane %v4366, 7
        %v4369 = vshll.u32 %v4277, 16
        %v4371 = vor.u32 %v4368, %v4369
        %v4373 = vshrl.u32 %v4278, 16
        %v4375 = vrot.slane %v4373, 7
        %v4376 = vshll.u32 %v4278, 16
        %v4378 = vor.u32 %v4375, %v4376
        %v4380 = vshrl.u32 %v4279, 16
        %v4382 = vrot.slane %v4380, 7
        %v4383 = vshll.u32 %v4279, 16
        %v4385 = vor.u32 %v4382, %v4383
        %v4387 = vshrl.u32 %v4280, 16
        %v4389 = vrot.slane %v4387, 7
        %v4390 = vshll.u32 %v4280, 16
        %v4392 = vor.u32 %v4389, %v4390
        %4393 = vrot.lane.b32.xlu0 %v4287, 8
        %v4394 = vpop.permute.xlu0 %4393
        %4395 = vrot.lane.b32.xlu0 %v4294, 8
        %v4396 = vpop.permute.xlu0 %4395
        %4397 = vrot.lane.b32.xlu0 %v4301, 8
        %v4398 = vpop.permute.xlu0 %4397
        %4399 = vrot.lane.b32.xlu0 %v4308, 8
        %v4400 = vpop.permute.xlu0 %4399
        %4401 = vrot.lane.b32.xlu0 %v4315, 8
        %v4402 = vpop.permute.xlu0 %4401
        %4403 = vrot.lane.b32.xlu0 %v4322, 8
        %v4404 = vpop.permute.xlu0 %4403
        %4405 = vrot.lane.b32.xlu0 %v4329, 8
        %v4406 = vpop.permute.xlu0 %4405
        %4407 = vrot.lane.b32.xlu0 %v4336, 8
        %v4408 = vpop.permute.xlu0 %4407
        %4409 = vrot.lane.b32.xlu0 %v4343, 8
        %v4410 = vpop.permute.xlu0 %4409
        %4411 = vrot.lane.b32.xlu0 %v4350, 8
        %v4412 = vpop.permute.xlu0 %4411
        %4413 = vrot.lane.b32.xlu0 %v4357, 8
        %v4414 = vpop.permute.xlu0 %4413
        %4415 = vrot.lane.b32.xlu0 %v4364, 8
        %v4416 = vpop.permute.xlu0 %4415
        %4417 = vrot.lane.b32.xlu0 %v4371, 8
        %v4418 = vpop.permute.xlu0 %4417
        %4419 = vrot.lane.b32.xlu0 %v4378, 8
        %v4420 = vpop.permute.xlu0 %4419
        %4421 = vrot.lane.b32.xlu0 %v4385, 8
        %v4422 = vpop.permute.xlu0 %4421
        %4423 = vrot.lane.b32.xlu0 %v4392, 8
        %v4424 = vpop.permute.xlu0 %4423
        %v4429 = vunpack.c.l.b16 %v2226
        %v4430 = vunpack.c.l.b16 %v2230
        %v4431 = vunpack.c.l.b16 %v2234
        %v4432 = vunpack.c.l.b16 %v2238
        %v4433 = vpack.c.b16 %v4429, %v4270
        %v4434 = vpack.c.b16 %v4430, %v4271
        %v4435 = vpack.c.b16 %v4431, %v4272
        %v4436 = vpack.c.b16 %v4432, %v4273
        %4437 = vrot.lane.b32.xlu0 %v2311, 12
        %v4438 = vpop.permute.xlu0 %4437
        %4439 = vrot.lane.b32.xlu0 %v2312, 12
        %v4440 = vpop.permute.xlu0 %4439
        %4441 = vrot.lane.b32.xlu0 %v2313, 12
        %v4442 = vpop.permute.xlu0 %4441
        %4443 = vrot.lane.b32.xlu0 %v2314, 12
        %v4444 = vpop.permute.xlu0 %4443
        %4445 = vrot.lane.b32.xlu0 %v2315, 12
        %v4446 = vpop.permute.xlu0 %4445
        %4447 = vrot.lane.b32.xlu0 %v2316, 12
        %v4448 = vpop.permute.xlu0 %4447
        %4449 = vrot.lane.b32.xlu0 %v2317, 12
        %v4450 = vpop.permute.xlu0 %4449
        %4451 = vrot.lane.b32.xlu0 %v2318, 12
        %v4452 = vpop.permute.xlu0 %4451
        %4453 = vrot.lane.b32.xlu0 %v2319, 12
        %v4454 = vpop.permute.xlu0 %4453
        %4455 = vrot.lane.b32.xlu0 %v2320, 12
        %v4456 = vpop.permute.xlu0 %4455
        %4457 = vrot.lane.b32.xlu0 %v2321, 12
        %v4458 = vpop.permute.xlu0 %4457
        %4459 = vrot.lane.b32.xlu0 %v2322, 12
        %v4460 = vpop.permute.xlu0 %4459
        %4461 = vrot.lane.b32.xlu0 %v4433, 12
        %v4462 = vpop.permute.xlu0 %4461
        %4463 = vrot.lane.b32.xlu0 %v4434, 12
        %v4464 = vpop.permute.xlu0 %4463
        %4465 = vrot.lane.b32.xlu0 %v4435, 12
        %v4466 = vpop.permute.xlu0 %4465
        %4467 = vrot.lane.b32.xlu0 %v4436, 12
        %v4468 = vpop.permute.xlu0 %4467
        %v4470 = vshrl.u32 %v4433, 16
        %v4472 = vshll.u32 %v4433, 16
        %v4474 = vrot.slane %v4472, 1
        %v4475 = vor.u32 %v4470, %v4474
        %v4477 = vshrl.u32 %v4434, 16
        %v4479 = vshll.u32 %v4434, 16
        %v4481 = vrot.slane %v4479, 1
        %v4482 = vor.u32 %v4477, %v4481
        %v4484 = vshrl.u32 %v4435, 16
        %v4486 = vshll.u32 %v4435, 16
        %v4488 = vrot.slane %v4486, 1
        %v4489 = vor.u32 %v4484, %v4488
        %v4491 = vshrl.u32 %v4436, 16
        %v4493 = vshll.u32 %v4436, 16
        %v4495 = vrot.slane %v4493, 1
        %v4496 = vor.u32 %v4491, %v4495
        %4497 = vrot.lane.b32.xlu0 %v2357, 16
        %v4498 = vpop.permute.xlu0 %4497
        %4499 = vrot.lane.b32.xlu0 %v2364, 16
        %v4500 = vpop.permute.xlu0 %4499
        %4501 = vrot.lane.b32.xlu0 %v2371, 16
        %v4502 = vpop.permute.xlu0 %4501
        %4503 = vrot.lane.b32.xlu0 %v2378, 16
        %v4504 = vpop.permute.xlu0 %4503
        %4505 = vrot.lane.b32.xlu0 %v2385, 16
        %v4506 = vpop.permute.xlu0 %4505
        %4507 = vrot.lane.b32.xlu0 %v2392, 16
        %v4508 = vpop.permute.xlu0 %4507
        %4509 = vrot.lane.b32.xlu0 %v2399, 16
        %v4510 = vpop.permute.xlu0 %4509
        %4511 = vrot.lane.b32.xlu0 %v2406, 16
        %v4512 = vpop.permute.xlu0 %4511
        %4513 = vrot.lane.b32.xlu0 %v2413, 16
        %v4514 = vpop.permute.xlu0 %4513
        %4515 = vrot.lane.b32.xlu0 %v2420, 16
        %v4516 = vpop.permute.xlu0 %4515
        %4517 = vrot.lane.b32.xlu0 %v2427, 16
        %v4518 = vpop.permute.xlu0 %4517
        %4519 = vrot.lane.b32.xlu0 %v2434, 16
        %v4520 = vpop.permute.xlu0 %4519
        %4521 = vrot.lane.b32.xlu0 %v4475, 16
        %v4522 = vpop.permute.xlu0 %4521
        %4523 = vrot.lane.b32.xlu0 %v4482, 16
        %v4524 = vpop.permute.xlu0 %4523
        %4525 = vrot.lane.b32.xlu0 %v4489, 16
        %v4526 = vpop.permute.xlu0 %4525
        %4527 = vrot.lane.b32.xlu0 %v4496, 16
        %v4528 = vpop.permute.xlu0 %4527
        %v4533 = vunpack.c.l.b16 %v2227
        %v4534 = vunpack.c.l.b16 %v2231
        %v4535 = vunpack.c.l.b16 %v2235
        %v4536 = vunpack.c.l.b16 %v2239
        %v4537 = vpack.c.b16 %v4533, %v4533
        %v4538 = vpack.c.b16 %v4534, %v4534
        %v4539 = vpack.c.b16 %v4535, %v4535
        %v4540 = vpack.c.b16 %v4536, %v4536
        %v4542 = vshrl.u32 %v2551, 16
        %v4544 = vrot.slane %v4542, 7
        %v4545 = vshll.u32 %v2551, 16
        %v4547 = vor.u32 %v4544, %v4545
        %v4549 = vshrl.u32 %v2552, 16
        %v4551 = vrot.slane %v4549, 7
        %v4552 = vshll.u32 %v2552, 16
        %v4554 = vor.u32 %v4551, %v4552
        %v4556 = vshrl.u32 %v2553, 16
        %v4558 = vrot.slane %v4556, 7
        %v4559 = vshll.u32 %v2553, 16
        %v4561 = vor.u32 %v4558, %v4559
        %v4563 = vshrl.u32 %v2554, 16
        %v4565 = vrot.slane %v4563, 7
        %v4566 = vshll.u32 %v2554, 16
        %v4568 = vor.u32 %v4565, %v4566
        %v4570 = vshrl.u32 %v2555, 16
        %v4572 = vrot.slane %v4570, 7
        %v4573 = vshll.u32 %v2555, 16
        %v4575 = vor.u32 %v4572, %v4573
        %v4577 = vshrl.u32 %v2556, 16
        %v4579 = vrot.slane %v4577, 7
        %v4580 = vshll.u32 %v2556, 16
        %v4582 = vor.u32 %v4579, %v4580
        %v4584 = vshrl.u32 %v2557, 16
        %v4586 = vrot.slane %v4584, 7
        %v4587 = vshll.u32 %v2557, 16
        %v4589 = vor.u32 %v4586, %v4587
        %v4591 = vshrl.u32 %v2558, 16
        %v4593 = vrot.slane %v4591, 7
        %v4594 = vshll.u32 %v2558, 16
        %v4596 = vor.u32 %v4593, %v4594
        %v4598 = vshrl.u32 %v2559, 16
        %v4600 = vrot.slane %v4598, 7
        %v4601 = vshll.u32 %v2559, 16
        %v4603 = vor.u32 %v4600, %v4601
        %v4605 = vshrl.u32 %v2560, 16
        %v4607 = vrot.slane %v4605, 7
        %v4608 = vshll.u32 %v2560, 16
        %v4610 = vor.u32 %v4607, %v4608
        %v4612 = vshrl.u32 %v2561, 16
        %v4614 = vrot.slane %v4612, 7
        %v4615 = vshll.u32 %v2561, 16
        %v4617 = vor.u32 %v4614, %v4615
        %v4619 = vshrl.u32 %v2562, 16
        %v4621 = vrot.slane %v4619, 7
        %v4622 = vshll.u32 %v2562, 16
        %v4624 = vor.u32 %v4621, %v4622
        %v4626 = vshrl.u32 %v4537, 16
        %v4628 = vrot.slane %v4626, 7
        %v4629 = vshll.u32 %v4537, 16
        %v4631 = vor.u32 %v4628, %v4629
        %v4633 = vshrl.u32 %v4538, 16
        %v4635 = vrot.slane %v4633, 7
        %v4636 = vshll.u32 %v4538, 16
        %v4638 = vor.u32 %v4635, %v4636
        %v4640 = vshrl.u32 %v4539, 16
        %v4642 = vrot.slane %v4640, 7
        %v4643 = vshll.u32 %v4539, 16
        %v4645 = vor.u32 %v4642, %v4643
        %v4647 = vshrl.u32 %v4540, 16
        %v4649 = vrot.slane %v4647, 7
        %v4650 = vshll.u32 %v4540, 16
        %v4652 = vor.u32 %v4649, %v4650
        %4653 = vrot.lane.b32.xlu0 %v4547, 20
        %v4654 = vpop.permute.xlu0 %4653
        %4655 = vrot.lane.b32.xlu0 %v4554, 20
        %v4656 = vpop.permute.xlu0 %4655
        %4657 = vrot.lane.b32.xlu0 %v4561, 20
        %v4658 = vpop.permute.xlu0 %4657
        %4659 = vrot.lane.b32.xlu0 %v4568, 20
        %v4660 = vpop.permute.xlu0 %4659
        %4661 = vrot.lane.b32.xlu0 %v4575, 20
        %v4662 = vpop.permute.xlu0 %4661
        %4663 = vrot.lane.b32.xlu0 %v4582, 20
        %v4664 = vpop.permute.xlu0 %4663
        %4665 = vrot.lane.b32.xlu0 %v4589, 20
        %v4666 = vpop.permute.xlu0 %4665
        %4667 = vrot.lane.b32.xlu0 %v4596, 20
        %v4668 = vpop.permute.xlu0 %4667
        %4669 = vrot.lane.b32.xlu0 %v4603, 20
        %v4670 = vpop.permute.xlu0 %4669
        %4671 = vrot.lane.b32.xlu0 %v4610, 20
        %v4672 = vpop.permute.xlu0 %4671
        %4673 = vrot.lane.b32.xlu0 %v4617, 20
        %v4674 = vpop.permute.xlu0 %4673
        %4675 = vrot.lane.b32.xlu0 %v4624, 20
        %v4676 = vpop.permute.xlu0 %4675
        %4677 = vrot.lane.b32.xlu0 %v4631, 20
        %v4678 = vpop.permute.xlu0 %4677
        %4679 = vrot.lane.b32.xlu0 %v4638, 20
        %v4680 = vpop.permute.xlu0 %4679
        %4681 = vrot.lane.b32.xlu0 %v4645, 20
        %v4682 = vpop.permute.xlu0 %4681
        %4683 = vrot.lane.b32.xlu0 %v4652, 20
        %v4684 = vpop.permute.xlu0 %4683
        %v4689 = vunpack.c.l.b16 %v2228
        %v4690 = vunpack.c.l.b16 %v2232
        %v4691 = vunpack.c.l.b16 %v2236
        %v4692 = vunpack.c.l.b16 %v2240
        %v4693 = vpack.c.b16 %v4689, %v4533
        %v4694 = vpack.c.b16 %v4690, %v4534
        %v4695 = vpack.c.b16 %v4691, %v4535
        %v4696 = vpack.c.b16 %v4692, %v4536
        %4697 = vrot.lane.b32.xlu0 %v2631, 24
        %v4698 = vpop.permute.xlu0 %4697
        %4699 = vrot.lane.b32.xlu0 %v2632, 24
        %v4700 = vpop.permute.xlu0 %4699
        %4701 = vrot.lane.b32.xlu0 %v2633, 24
        %v4702 = vpop.permute.xlu0 %4701
        %4703 = vrot.lane.b32.xlu0 %v2634, 24
        %v4704 = vpop.permute.xlu0 %4703
        %4705 = vrot.lane.b32.xlu0 %v2635, 24
        %v4706 = vpop.permute.xlu0 %4705
        %4707 = vrot.lane.b32.xlu0 %v2636, 24
        %v4708 = vpop.permute.xlu0 %4707
        %4709 = vrot.lane.b32.xlu0 %v2637, 24
        %v4710 = vpop.permute.xlu0 %4709
        %4711 = vrot.lane.b32.xlu0 %v2638, 24
        %v4712 = vpop.permute.xlu0 %4711
        %4713 = vrot.lane.b32.xlu0 %v2639, 24
        %v4714 = vpop.permute.xlu0 %4713
        %4715 = vrot.lane.b32.xlu0 %v2640, 24
        %v4716 = vpop.permute.xlu0 %4715
        %4717 = vrot.lane.b32.xlu0 %v2641, 24
        %v4718 = vpop.permute.xlu0 %4717
        %4719 = vrot.lane.b32.xlu0 %v2642, 24
        %v4720 = vpop.permute.xlu0 %4719
        %4721 = vrot.lane.b32.xlu0 %v4693, 24
        %v4722 = vpop.permute.xlu0 %4721
        %4723 = vrot.lane.b32.xlu0 %v4694, 24
        %v4724 = vpop.permute.xlu0 %4723
        %4725 = vrot.lane.b32.xlu0 %v4695, 24
        %v4726 = vpop.permute.xlu0 %4725
        %4727 = vrot.lane.b32.xlu0 %v4696, 24
        %v4728 = vpop.permute.xlu0 %4727
        %v4730 = vshrl.u32 %v4693, 16
        %v4732 = vshll.u32 %v4693, 16
        %v4734 = vrot.slane %v4732, 1
        %v4735 = vor.u32 %v4730, %v4734
        %v4737 = vshrl.u32 %v4694, 16
        %v4739 = vshll.u32 %v4694, 16
        %v4741 = vrot.slane %v4739, 1
        %v4742 = vor.u32 %v4737, %v4741
        %v4744 = vshrl.u32 %v4695, 16
        %v4746 = vshll.u32 %v4695, 16
        %v4748 = vrot.slane %v4746, 1
        %v4749 = vor.u32 %v4744, %v4748
        %v4751 = vshrl.u32 %v4696, 16
        %v4753 = vshll.u32 %v4696, 16
        %v4755 = vrot.slane %v4753, 1
        %v4756 = vor.u32 %v4751, %v4755
        %4757 = vrot.lane.b32.xlu0 %v2677, 28
        %v4758 = vpop.permute.xlu0 %4757
        %4759 = vrot.lane.b32.xlu0 %v2684, 28
        %v4760 = vpop.permute.xlu0 %4759
        %4761 = vrot.lane.b32.xlu0 %v2691, 28
        %v4762 = vpop.permute.xlu0 %4761
        %4763 = vrot.lane.b32.xlu0 %v2698, 28
        %v4764 = vpop.permute.xlu0 %4763
        %4765 = vrot.lane.b32.xlu0 %v2705, 28
        %v4766 = vpop.permute.xlu0 %4765
        %4767 = vrot.lane.b32.xlu0 %v2712, 28
        %v4768 = vpop.permute.xlu0 %4767
        %4769 = vrot.lane.b32.xlu0 %v2719, 28
        %v4770 = vpop.permute.xlu0 %4769
        %4771 = vrot.lane.b32.xlu0 %v2726, 28
        %v4772 = vpop.permute.xlu0 %4771
        %4773 = vrot.lane.b32.xlu0 %v2733, 28
        %v4774 = vpop.permute.xlu0 %4773
        %4775 = vrot.lane.b32.xlu0 %v2740, 28
        %v4776 = vpop.permute.xlu0 %4775
        %4777 = vrot.lane.b32.xlu0 %v2747, 28
        %v4778 = vpop.permute.xlu0 %4777
        %4779 = vrot.lane.b32.xlu0 %v2754, 28
        %v4780 = vpop.permute.xlu0 %4779
        %4781 = vrot.lane.b32.xlu0 %v4735, 28
        %v4782 = vpop.permute.xlu0 %4781
        %4783 = vrot.lane.b32.xlu0 %v4742, 28
        %v4784 = vpop.permute.xlu0 %4783
        %4785 = vrot.lane.b32.xlu0 %v4749, 28
        %v4786 = vpop.permute.xlu0 %4785
        %4787 = vrot.lane.b32.xlu0 %v4756, 28
        %v4788 = vpop.permute.xlu0 %4787
        %v4790 = vunpack.c.l.b16 %v2241
        %v4791 = vpack.c.b16 %v4790, %v4790
        %v4793 = vshrl.u32 %v2850, 16
        %v4795 = vrot.slane %v4793, 7
        %v4796 = vshll.u32 %v2850, 16
        %v4798 = vor.u32 %v4795, %v4796
        %v4800 = vshrl.u32 %v2854, 16
        %v4802 = vrot.slane %v4800, 7
        %v4803 = vshll.u32 %v2854, 16
        %v4805 = vor.u32 %v4802, %v4803
        %v4807 = vshrl.u32 %v2858, 16
        %v4809 = vrot.slane %v4807, 7
        %v4810 = vshll.u32 %v2858, 16
        %v4812 = vor.u32 %v4809, %v4810
        %v4814 = vshrl.u32 %v4791, 16
        %v4816 = vrot.slane %v4814, 7
        %v4817 = vshll.u32 %v4791, 16
        %v4819 = vor.u32 %v4816, %v4817
        %4820 = vrot.lane.b32.xlu0 %v4294, 32
        %v4821 = vpop.permute.xlu0 %4820
        %4822 = vrot.lane.b32.xlu0 %v4301, 32
        %v4823 = vpop.permute.xlu0 %4822
        %4824 = vrot.lane.b32.xlu0 %v4308, 32
        %v4825 = vpop.permute.xlu0 %4824
        %4826 = vrot.lane.b32.xlu0 %v4798, 32
        %v4827 = vpop.permute.xlu0 %4826
        %4828 = vrot.lane.b32.xlu0 %v4322, 32
        %v4829 = vpop.permute.xlu0 %4828
        %4830 = vrot.lane.b32.xlu0 %v4329, 32
        %v4831 = vpop.permute.xlu0 %4830
        %4832 = vrot.lane.b32.xlu0 %v4336, 32
        %v4833 = vpop.permute.xlu0 %4832
        %4834 = vrot.lane.b32.xlu0 %v4805, 32
        %v4835 = vpop.permute.xlu0 %4834
        %4836 = vrot.lane.b32.xlu0 %v4350, 32
        %v4837 = vpop.permute.xlu0 %4836
        %4838 = vrot.lane.b32.xlu0 %v4357, 32
        %v4839 = vpop.permute.xlu0 %4838
        %4840 = vrot.lane.b32.xlu0 %v4364, 32
        %v4841 = vpop.permute.xlu0 %4840
        %4842 = vrot.lane.b32.xlu0 %v4812, 32
        %v4843 = vpop.permute.xlu0 %4842
        %4844 = vrot.lane.b32.xlu0 %v4378, 32
        %v4845 = vpop.permute.xlu0 %4844
        %4846 = vrot.lane.b32.xlu0 %v4385, 32
        %v4847 = vpop.permute.xlu0 %4846
        %4848 = vrot.lane.b32.xlu0 %v4392, 32
        %v4849 = vpop.permute.xlu0 %4848
        %4850 = vrot.lane.b32.xlu0 %v4819, 32
        %v4851 = vpop.permute.xlu0 %4850
        %v4853 = vunpack.c.l.b16 %v2242
        %v4854 = vpack.c.b16 %v4853, %v4790
        %4855 = vrot.lane.b32.xlu0 %v2312, 36
        %v4856 = vpop.permute.xlu0 %4855
        %4857 = vrot.lane.b32.xlu0 %v2313, 36
        %v4858 = vpop.permute.xlu0 %4857
        %4859 = vrot.lane.b32.xlu0 %v2314, 36
        %v4860 = vpop.permute.xlu0 %4859
        %4861 = vrot.lane.b32.xlu0 %v2900, 36
        %v4862 = vpop.permute.xlu0 %4861
        %4863 = vrot.lane.b32.xlu0 %v2316, 36
        %v4864 = vpop.permute.xlu0 %4863
        %4865 = vrot.lane.b32.xlu0 %v2317, 36
        %v4866 = vpop.permute.xlu0 %4865
        %4867 = vrot.lane.b32.xlu0 %v2318, 36
        %v4868 = vpop.permute.xlu0 %4867
        %4869 = vrot.lane.b32.xlu0 %v2901, 36
        %v4870 = vpop.permute.xlu0 %4869
        %4871 = vrot.lane.b32.xlu0 %v2320, 36
        %v4872 = vpop.permute.xlu0 %4871
        %4873 = vrot.lane.b32.xlu0 %v2321, 36
        %v4874 = vpop.permute.xlu0 %4873
        %4875 = vrot.lane.b32.xlu0 %v2322, 36
        %v4876 = vpop.permute.xlu0 %4875
        %4877 = vrot.lane.b32.xlu0 %v2902, 36
        %v4878 = vpop.permute.xlu0 %4877
        %4879 = vrot.lane.b32.xlu0 %v4434, 36
        %v4880 = vpop.permute.xlu0 %4879
        %4881 = vrot.lane.b32.xlu0 %v4435, 36
        %v4882 = vpop.permute.xlu0 %4881
        %4883 = vrot.lane.b32.xlu0 %v4436, 36
        %v4884 = vpop.permute.xlu0 %4883
        %4885 = vrot.lane.b32.xlu0 %v4854, 36
        %v4886 = vpop.permute.xlu0 %4885
        %v4888 = vshrl.u32 %v4854, 16
        %v4890 = vshll.u32 %v4854, 16
        %v4892 = vrot.slane %v4890, 1
        %v4893 = vor.u32 %v4888, %v4892
        %4894 = vrot.lane.b32.xlu0 %v2364, 40
        %v4895 = vpop.permute.xlu0 %4894
        %4896 = vrot.lane.b32.xlu0 %v2371, 40
        %v4897 = vpop.permute.xlu0 %4896
        %4898 = vrot.lane.b32.xlu0 %v2378, 40
        %v4899 = vpop.permute.xlu0 %4898
        %4900 = vrot.lane.b32.xlu0 %v2916, 40
        %v4901 = vpop.permute.xlu0 %4900
        %4902 = vrot.lane.b32.xlu0 %v2392, 40
        %v4903 = vpop.permute.xlu0 %4902
        %4904 = vrot.lane.b32.xlu0 %v2399, 40
        %v4905 = vpop.permute.xlu0 %4904
        %4906 = vrot.lane.b32.xlu0 %v2406, 40
        %v4907 = vpop.permute.xlu0 %4906
        %4908 = vrot.lane.b32.xlu0 %v2923, 40
        %v4909 = vpop.permute.xlu0 %4908
        %4910 = vrot.lane.b32.xlu0 %v2420, 40
        %v4911 = vpop.permute.xlu0 %4910
        %4912 = vrot.lane.b32.xlu0 %v2427, 40
        %v4913 = vpop.permute.xlu0 %4912
        %4914 = vrot.lane.b32.xlu0 %v2434, 40
        %v4915 = vpop.permute.xlu0 %4914
        %4916 = vrot.lane.b32.xlu0 %v2930, 40
        %v4917 = vpop.permute.xlu0 %4916
        %4918 = vrot.lane.b32.xlu0 %v4482, 40
        %v4919 = vpop.permute.xlu0 %4918
        %4920 = vrot.lane.b32.xlu0 %v4489, 40
        %v4921 = vpop.permute.xlu0 %4920
        %4922 = vrot.lane.b32.xlu0 %v4496, 40
        %v4923 = vpop.permute.xlu0 %4922
        %4924 = vrot.lane.b32.xlu0 %v4893, 40
        %v4925 = vpop.permute.xlu0 %4924
        %v4927 = vsel %vm3683, %v3112, %v4235
        %v4929 = vsel %vm3683, %v3113, %v4237
        %v4931 = vsel %vm3683, %v3114, %v4239
        %v4933 = vsel %vm3683, %v4202, %v4241
        %v4935 = vsel %vm3683, %v3116, %v4243
        %v4937 = vsel %vm3683, %v3117, %v4245
        %v4939 = vsel %vm3683, %v3118, %v4247
        %v4941 = vsel %vm3683, %v4203, %v4249
        %v4943 = vsel %vm3683, %v3120, %v4251
        %v4945 = vsel %vm3683, %v3121, %v4253
        %v4947 = vsel %vm3683, %v3122, %v4255
        %v4949 = vsel %vm3683, %v4204, %v4257
        %v4951 = vsel %vm3683, %v3124, %v4259
        %v4953 = vsel %vm3683, %v3125, %v4261
        %v4955 = vsel %vm3683, %v3126, %v4263
        %v4957 = vsel %vm3683, %v4205, %v4265
        %v4959 = vsel %vm3732, %v4927, %v4394
        %v4961 = vsel %vm3732, %v4929, %v4396
        %v4963 = vsel %vm3732, %v4931, %v4398
        %v4965 = vsel %vm3732, %v4933, %v4400
        %v4967 = vsel %vm3732, %v4935, %v4402
        %v4969 = vsel %vm3732, %v4937, %v4404
        %v4971 = vsel %vm3732, %v4939, %v4406
        %v4973 = vsel %vm3732, %v4941, %v4408
        %v4975 = vsel %vm3732, %v4943, %v4410
        %v4977 = vsel %vm3732, %v4945, %v4412
        %v4979 = vsel %vm3732, %v4947, %v4414
        %v4981 = vsel %vm3732, %v4949, %v4416
        %v4983 = vsel %vm3732, %v4951, %v4418
        %v4985 = vsel %vm3732, %v4953, %v4420
        %v4987 = vsel %vm3732, %v4955, %v4422
        %v4989 = vsel %vm3732, %v4957, %v4424
        %v4991 = vsel %vm3765, %v4959, %v4438
        %v4993 = vsel %vm3765, %v4961, %v4440
        %v4995 = vsel %vm3765, %v4963, %v4442
        %v4997 = vsel %vm3765, %v4965, %v4444
        %v4999 = vsel %vm3765, %v4967, %v4446
        %v5001 = vsel %vm3765, %v4969, %v4448
        %v5003 = vsel %vm3765, %v4971, %v4450
        %v5005 = vsel %vm3765, %v4973, %v4452
        %v5007 = vsel %vm3765, %v4975, %v4454
        %v5009 = vsel %vm3765, %v4977, %v4456
        %v5011 = vsel %vm3765, %v4979, %v4458
        %v5013 = vsel %vm3765, %v4981, %v4460
        %v5015 = vsel %vm3765, %v4983, %v4462
        %v5017 = vsel %vm3765, %v4985, %v4464
        %v5019 = vsel %vm3765, %v4987, %v4466
        %v5021 = vsel %vm3765, %v4989, %v4468
        %v5023 = vsel %vm3798, %v4991, %v4498
        %v5025 = vsel %vm3798, %v4993, %v4500
        %v5027 = vsel %vm3798, %v4995, %v4502
        %v5029 = vsel %vm3798, %v4997, %v4504
        %v5031 = vsel %vm3798, %v4999, %v4506
        %v5033 = vsel %vm3798, %v5001, %v4508
        %v5035 = vsel %vm3798, %v5003, %v4510
        %v5037 = vsel %vm3798, %v5005, %v4512
        %v5039 = vsel %vm3798, %v5007, %v4514
        %v5041 = vsel %vm3798, %v5009, %v4516
        %v5043 = vsel %vm3798, %v5011, %v4518
        %v5045 = vsel %vm3798, %v5013, %v4520
        %v5047 = vsel %vm3798, %v5015, %v4522
        %v5049 = vsel %vm3798, %v5017, %v4524
        %v5051 = vsel %vm3798, %v5019, %v4526
        %v5053 = vsel %vm3798, %v5021, %v4528
        %v5055 = vsel %vm3831, %v5023, %v4654
        %v5057 = vsel %vm3831, %v5025, %v4656
        %v5059 = vsel %vm3831, %v5027, %v4658
        %v5061 = vsel %vm3831, %v5029, %v4660
        %v5063 = vsel %vm3831, %v5031, %v4662
        %v5065 = vsel %vm3831, %v5033, %v4664
        %v5067 = vsel %vm3831, %v5035, %v4666
        %v5069 = vsel %vm3831, %v5037, %v4668
        %v5071 = vsel %vm3831, %v5039, %v4670
        %v5073 = vsel %vm3831, %v5041, %v4672
        %v5075 = vsel %vm3831, %v5043, %v4674
        %v5077 = vsel %vm3831, %v5045, %v4676
        %v5079 = vsel %vm3831, %v5047, %v4678
        %v5081 = vsel %vm3831, %v5049, %v4680
        %v5083 = vsel %vm3831, %v5051, %v4682
        %v5085 = vsel %vm3831, %v5053, %v4684
        %v5087 = vsel %vm3864, %v5055, %v4698
        %v5089 = vsel %vm3864, %v5057, %v4700
        %v5091 = vsel %vm3864, %v5059, %v4702
        %v5093 = vsel %vm3864, %v5061, %v4704
        %v5095 = vsel %vm3864, %v5063, %v4706
        %v5097 = vsel %vm3864, %v5065, %v4708
        %v5099 = vsel %vm3864, %v5067, %v4710
        %v5101 = vsel %vm3864, %v5069, %v4712
        %v5103 = vsel %vm3864, %v5071, %v4714
        %v5105 = vsel %vm3864, %v5073, %v4716
        %v5107 = vsel %vm3864, %v5075, %v4718
        %v5109 = vsel %vm3864, %v5077, %v4720
        %v5111 = vsel %vm3864, %v5079, %v4722
        %v5113 = vsel %vm3864, %v5081, %v4724
        %v5115 = vsel %vm3864, %v5083, %v4726
        %v5117 = vsel %vm3864, %v5085, %v4728
        %v5119 = vsel %vm3897, %v5087, %v4758
        %v5121 = vsel %vm3897, %v5089, %v4760
        %v5123 = vsel %vm3897, %v5091, %v4762
        %v5125 = vsel %vm3897, %v5093, %v4764
        %v5127 = vsel %vm3897, %v5095, %v4766
        %v5129 = vsel %vm3897, %v5097, %v4768
        %v5131 = vsel %vm3897, %v5099, %v4770
        %v5133 = vsel %vm3897, %v5101, %v4772
        %v5135 = vsel %vm3897, %v5103, %v4774
        %v5137 = vsel %vm3897, %v5105, %v4776
        %v5139 = vsel %vm3897, %v5107, %v4778
        %v5141 = vsel %vm3897, %v5109, %v4780
        %v5143 = vsel %vm3897, %v5111, %v4782
        %v5145 = vsel %vm3897, %v5113, %v4784
        %v5147 = vsel %vm3897, %v5115, %v4786
        %v5149 = vsel %vm3897, %v5117, %v4788
        %v5151 = vsel %vm3930, %v5119, %v4821
        %v5153 = vsel %vm3930, %v5121, %v4823
        %v5155 = vsel %vm3930, %v5123, %v4825
        %v5157 = vsel %vm3930, %v5125, %v4827
        %v5159 = vsel %vm3930, %v5127, %v4829
        %v5161 = vsel %vm3930, %v5129, %v4831
        %v5163 = vsel %vm3930, %v5131, %v4833
        %v5165 = vsel %vm3930, %v5133, %v4835
        %v5167 = vsel %vm3930, %v5135, %v4837
        %v5169 = vsel %vm3930, %v5137, %v4839
        %v5171 = vsel %vm3930, %v5139, %v4841
        %v5173 = vsel %vm3930, %v5141, %v4843
        %v5175 = vsel %vm3930, %v5143, %v4845
        %v5177 = vsel %vm3930, %v5145, %v4847
        %v5179 = vsel %vm3930, %v5147, %v4849
        %v5181 = vsel %vm3930, %v5149, %v4851
        %v5183 = vsel %vm3963, %v5151, %v4856
        %v5185 = vsel %vm3963, %v5153, %v4858
        %v5187 = vsel %vm3963, %v5155, %v4860
        %v5189 = vsel %vm3963, %v5157, %v4862
        %v5191 = vsel %vm3963, %v5159, %v4864
        %v5193 = vsel %vm3963, %v5161, %v4866
        %v5195 = vsel %vm3963, %v5163, %v4868
        %v5197 = vsel %vm3963, %v5165, %v4870
        %v5199 = vsel %vm3963, %v5167, %v4872
        %v5201 = vsel %vm3963, %v5169, %v4874
        %v5203 = vsel %vm3963, %v5171, %v4876
        %v5205 = vsel %vm3963, %v5173, %v4878
        %v5207 = vsel %vm3963, %v5175, %v4880
        %v5209 = vsel %vm3963, %v5177, %v4882
        %v5211 = vsel %vm3963, %v5179, %v4884
        %v5213 = vsel %vm3963, %v5181, %v4886
        %v5215 = vsel %vm3996, %v5183, %v4895
        %v5217 = vsel %vm3996, %v5185, %v4897
        %v5219 = vsel %vm3996, %v5187, %v4899
        %v5221 = vsel %vm3996, %v5189, %v4901
        %v5223 = vsel %vm3996, %v5191, %v4903
        %v5225 = vsel %vm3996, %v5193, %v4905
        %v5227 = vsel %vm3996, %v5195, %v4907
        %v5229 = vsel %vm3996, %v5197, %v4909
        %v5231 = vsel %vm3996, %v5199, %v4911
        %v5233 = vsel %vm3996, %v5201, %v4913
        %v5235 = vsel %vm3996, %v5203, %v4915
        %v5237 = vsel %vm3996, %v5205, %v4917
        %v5239 = vsel %vm3996, %v5207, %v4919
        %v5241 = vsel %vm3996, %v5209, %v4921
        %v5243 = vsel %vm3996, %v5211, %v4923
        %v5245 = vsel %vm3996, %v5213, %v4925
        %v5246 = vshrl.u32 %v5215, 16
        %v5248 = vshll.u32 %v5215, 16
        %v5250 = vrot.slane %v5248, 1
        %v5251 = vor.u32 %v5246, %v5250
        %v5252 = vshrl.u32 %v5217, 16
        %v5254 = vshll.u32 %v5217, 16
        %v5256 = vrot.slane %v5254, 1
        %v5257 = vor.u32 %v5252, %v5256
        %v5258 = vshrl.u32 %v5219, 16
        %v5260 = vshll.u32 %v5219, 16
        %v5262 = vrot.slane %v5260, 1
        %v5263 = vor.u32 %v5258, %v5262
        %v5264 = vshrl.u32 %v5221, 16
        %v5266 = vshll.u32 %v5221, 16
        %v5268 = vrot.slane %v5266, 1
        %v5269 = vor.u32 %v5264, %v5268
        %v5270 = vshrl.u32 %v5223, 16
        %v5272 = vshll.u32 %v5223, 16
        %v5274 = vrot.slane %v5272, 1
        %v5275 = vor.u32 %v5270, %v5274
        %v5276 = vshrl.u32 %v5225, 16
        %v5278 = vshll.u32 %v5225, 16
        %v5280 = vrot.slane %v5278, 1
        %v5281 = vor.u32 %v5276, %v5280
        %v5282 = vshrl.u32 %v5227, 16
        %v5284 = vshll.u32 %v5227, 16
        %v5286 = vrot.slane %v5284, 1
        %v5287 = vor.u32 %v5282, %v5286
        %v5288 = vshrl.u32 %v5229, 16
        %v5290 = vshll.u32 %v5229, 16
        %v5292 = vrot.slane %v5290, 1
        %v5293 = vor.u32 %v5288, %v5292
        %v5294 = vshrl.u32 %v5231, 16
        %v5296 = vshll.u32 %v5231, 16
        %v5298 = vrot.slane %v5296, 1
        %v5299 = vor.u32 %v5294, %v5298
        %v5300 = vshrl.u32 %v5233, 16
        %v5302 = vshll.u32 %v5233, 16
        %v5304 = vrot.slane %v5302, 1
        %v5305 = vor.u32 %v5300, %v5304
        %v5306 = vshrl.u32 %v5235, 16
        %v5308 = vshll.u32 %v5235, 16
        %v5310 = vrot.slane %v5308, 1
        %v5311 = vor.u32 %v5306, %v5310
        %v5312 = vshrl.u32 %v5237, 16
        %v5314 = vshll.u32 %v5237, 16
        %v5316 = vrot.slane %v5314, 1
        %v5317 = vor.u32 %v5312, %v5316
        %v5318 = vshrl.u32 %v5239, 16
        %v5320 = vshll.u32 %v5239, 16
        %v5322 = vrot.slane %v5320, 1
        %v5323 = vor.u32 %v5318, %v5322
        %v5324 = vshrl.u32 %v5241, 16
        %v5326 = vshll.u32 %v5241, 16
        %v5328 = vrot.slane %v5326, 1
        %v5329 = vor.u32 %v5324, %v5328
        %v5330 = vshrl.u32 %v5243, 16
        %v5332 = vshll.u32 %v5243, 16
        %v5334 = vrot.slane %v5332, 1
        %v5335 = vor.u32 %v5330, %v5334
        %v5336 = vshrl.u32 %v5245, 16
        %v5338 = vshll.u32 %v5245, 16
        %v5340 = vrot.slane %v5338, 1
        %v5341 = vor.u32 %v5336, %v5340
        %5342 = vrot.lane.b32.xlu0 %v5251, 64
        %v5343 = vpop.permute.xlu0 %5342
        %5344 = vrot.lane.b32.xlu0 %v5257, 64
        %v5345 = vpop.permute.xlu0 %5344
        %5346 = vrot.lane.b32.xlu0 %v5263, 64
        %v5347 = vpop.permute.xlu0 %5346
        %5348 = vrot.lane.b32.xlu0 %v5269, 64
        %v5349 = vpop.permute.xlu0 %5348
        %5350 = vrot.lane.b32.xlu0 %v5275, 64
        %v5351 = vpop.permute.xlu0 %5350
        %5352 = vrot.lane.b32.xlu0 %v5281, 64
        %v5353 = vpop.permute.xlu0 %5352
        %5354 = vrot.lane.b32.xlu0 %v5287, 64
        %v5355 = vpop.permute.xlu0 %5354
        %5356 = vrot.lane.b32.xlu0 %v5293, 64
        %v5357 = vpop.permute.xlu0 %5356
        %5358 = vrot.lane.b32.xlu0 %v5299, 64
        %v5359 = vpop.permute.xlu0 %5358
        %5360 = vrot.lane.b32.xlu0 %v5305, 64
        %v5361 = vpop.permute.xlu0 %5360
        %5362 = vrot.lane.b32.xlu0 %v5311, 64
        %v5363 = vpop.permute.xlu0 %5362
        %5364 = vrot.lane.b32.xlu0 %v5317, 64
        %v5365 = vpop.permute.xlu0 %5364
        %5366 = vrot.lane.b32.xlu0 %v5323, 64
        %v5367 = vpop.permute.xlu0 %5366
        %5368 = vrot.lane.b32.xlu0 %v5329, 64
        %v5369 = vpop.permute.xlu0 %5368
        %5370 = vrot.lane.b32.xlu0 %v5335, 64
        %v5371 = vpop.permute.xlu0 %5370
        %5372 = vrot.lane.b32.xlu0 %v5341, 64
        %v5373 = vpop.permute.xlu0 %5372
        %vm5374 = vcmask 523264
        %v5376 = vsel %vm5374, %v4163, %v5343
        %v5378 = vsel %vm5374, %v4165, %v5345
        %v5380 = vsel %vm5374, %v4167, %v5347
        %v5382 = vsel %vm5374, %v4169, %v5349
        %v5384 = vsel %vm5374, %v4171, %v5351
        %v5386 = vsel %vm5374, %v4173, %v5353
        %v5388 = vsel %vm5374, %v4175, %v5355
        %v5390 = vsel %vm5374, %v4177, %v5357
        %v5392 = vsel %vm5374, %v4179, %v5359
        %v5394 = vsel %vm5374, %v4181, %v5361
        %v5396 = vsel %vm5374, %v4183, %v5363
        %v5398 = vsel %vm5374, %v4185, %v5365
        %v5400 = vsel %vm5374, %v4187, %v5367
        %v5402 = vsel %vm5374, %v4189, %v5369
        %v5404 = vsel %vm5374, %v4191, %v5371
        %v5406 = vsel %vm5374, %v4193, %v5373
        %v5407 = vld [vmem:[%s1] sm:$0xf]
        %v5408 = vld [vmem:[%s1 + $0x4] sm:$0xf]
        %v5409 = vld [vmem:[%s1 + $0x8] sm:$0xf]
        %v5410 = vld [vmem:[%s1 + $0xc] sm:$0xf]
        %v5411 = vld [vmem:[%s1 + $0x10] sm:$0xf]
        %v5412 = vld [vmem:[%s1 + $0x14] sm:$0xf]
        %v5413 = vld [vmem:[%s1 + $0x18] sm:$0xf]
        %v5414 = vld [vmem:[%s1 + $0x1c] sm:$0xf]
        %v5415 = vld [vmem:[%s1 + $0x20] sm:$0xf]
        %v5416 = vld [vmem:[%s1 + $0x24] sm:$0xf]
        %v5417 = vld [vmem:[%s1 + $0x28] sm:$0xf]
        %v5418 = vld [vmem:[%s1 + $0x2c] sm:$0xf]
        %v5419 = vld [vmem:[%s1 + $0x30] sm:$0xf]
        %v5420 = vld [vmem:[%s1 + $0x34] sm:$0x3]
        %v5437 = vunpack.c.l.b16 %v5376
        %v5438 = vunpack.c.l.b16 %v5378
        %v5439 = vunpack.c.l.b16 %v5380
        %v5440 = vunpack.c.l.b16 %v5382
        %v5441 = vunpack.c.l.b16 %v5384
        %v5442 = vunpack.c.l.b16 %v5386
        %v5443 = vunpack.c.l.b16 %v5388
        %v5444 = vunpack.c.l.b16 %v5390
        %v5445 = vunpack.c.l.b16 %v5392
        %v5446 = vunpack.c.l.b16 %v5394
        %v5447 = vunpack.c.l.b16 %v5396
        %v5448 = vunpack.c.l.b16 %v5398
        %v5449 = vunpack.c.l.b16 %v5400
        %v5450 = vunpack.c.l.b16 %v5402
        %v5451 = vunpack.c.l.b16 %v5404
        %v5452 = vunpack.c.l.b16 %v5406
        %v5453 = vpack.c.b16 %v5438, %v5437
        %v5454 = vpack.c.b16 %v5440, %v5439
        %v5455 = vpack.c.b16 %v5442, %v5441
        %v5456 = vpack.c.b16 %v5444, %v5443
        %v5457 = vpack.c.b16 %v5446, %v5445
        %v5458 = vpack.c.b16 %v5448, %v5447
        %v5459 = vpack.c.b16 %v5450, %v5449
        %v5460 = vpack.c.b16 %v5452, %v5451
        %v5475 = vunpack.c.l.b16 %v5407
        %v5476 = vunpack.c.l.b16 %v5408
        %v5477 = vunpack.c.l.b16 %v5409
        %v5478 = vunpack.c.l.b16 %v5410
        %v5479 = vunpack.c.l.b16 %v5411
        %v5480 = vunpack.c.l.b16 %v5412
        %v5481 = vunpack.c.l.b16 %v5413
        %v5482 = vunpack.c.l.b16 %v5414
        %v5483 = vunpack.c.l.b16 %v5415
        %v5484 = vunpack.c.l.b16 %v5416
        %v5485 = vunpack.c.l.b16 %v5417
        %v5486 = vunpack.c.l.b16 %v5418
        %v5487 = vunpack.c.l.b16 %v5419
        %v5488 = vunpack.c.l.b16 %v5420
        %v5489 = vpack.c.b16 %v5476, %v5475
        %v5490 = vpack.c.b16 %v5478, %v5477
        %v5491 = vpack.c.b16 %v5480, %v5479
        %v5492 = vpack.c.b16 %v5482, %v5481
        %v5493 = vpack.c.b16 %v5484, %v5483
        %v5494 = vpack.c.b16 %v5486, %v5485
        %v5495 = vpack.c.b16 %v5488, %v5487
        %vm5502 = vcmask 883712
        %v5504 = vsel %vm5502, %v5453, 0
        %v5507 = vsel %vm5502, %v5454, 0
        %v5510 = vsel %vm5502, %v5455, 0
        %v5513 = vsel %vm5502, %v5456, 0
        %v5516 = vsel %vm5502, %v5457, 0
        %v5519 = vsel %vm5502, %v5458, 0
        %v5522 = vsel %vm5502, %v5459, 0
        %v5525 = vsel %vm5502, %v5460, 0
        %vm5527 = vcmask 1045504
        %v5529 = vsel %vm5527, %v5495, 0
        %5531 = vmatpush.bf16.msra.mxu0 0
        %5532 = vmatpush.bf16.msra.mxu0 %v5529
        %5533 = vmatpush.bf16.msra.mxu0 %v5494
        %5534 = vmatpush.bf16.msra.mxu0 %v5493
        %5535 = vmatpush.bf16.msra.mxu0 %v5492
        %5536 = vmatpush.bf16.msra.mxu0 %v5491
        %5537 = vmatpush.bf16.msra.mxu0 %v5490
        %5538 = vmatpush.bf16.msra.mxu0 %v5489
        %5539 = vmatmul.bf16.gmra.mxu0 %v5504
        %v5540 = vpop.f32.mrf.mxu0
        %v5541 = vadd.f32 0.0, %v5540
        %v5542 = vpop.f32.mrf.mxu0
        %v5543 = vadd.f32 0.0, %v5542
        %5544 = vmatmul.bf16.gmra.mxu0 %v5507
        %v5545 = vpop.f32.mrf.mxu0
        %v5546 = vadd.f32 0.0, %v5545
        %v5547 = vpop.f32.mrf.mxu0
        %v5548 = vadd.f32 0.0, %v5547
        %5549 = vmatmul.bf16.gmra.mxu0 %v5510
        %v5550 = vpop.f32.mrf.mxu0
        %v5551 = vadd.f32 0.0, %v5550
        %v5552 = vpop.f32.mrf.mxu0
        %v5553 = vadd.f32 0.0, %v5552
        %5554 = vmatmul.bf16.gmra.mxu0 %v5513
        %v5555 = vpop.f32.mrf.mxu0
        %v5556 = vadd.f32 0.0, %v5555
        %v5557 = vpop.f32.mrf.mxu0
        %v5558 = vadd.f32 0.0, %v5557
        %5559 = vmatmul.bf16.gmra.mxu0 %v5516
        %v5560 = vpop.f32.mrf.mxu0
        %v5561 = vadd.f32 0.0, %v5560
        %v5562 = vpop.f32.mrf.mxu0
        %v5563 = vadd.f32 0.0, %v5562
        %5564 = vmatmul.bf16.gmra.mxu0 %v5519
        %v5565 = vpop.f32.mrf.mxu0
        %v5566 = vadd.f32 0.0, %v5565
        %v5567 = vpop.f32.mrf.mxu0
        %v5568 = vadd.f32 0.0, %v5567
        %5569 = vmatmul.bf16.gmra.mxu0 %v5522
        %v5570 = vpop.f32.mrf.mxu0
        %v5571 = vadd.f32 0.0, %v5570
        %v5572 = vpop.f32.mrf.mxu0
        %v5573 = vadd.f32 0.0, %v5572
        %5574 = vmatmul.bf16.gmra.mxu0 %v5525
        %v5575 = vpop.f32.mrf.mxu0
        %v5576 = vadd.f32 0.0, %v5575
        %v5577 = vpop.f32.mrf.mxu0
        %v5578 = vadd.f32 0.0, %v5577
        %5579 = vdwg.mxu0
        %5580 = vst.msk [vmem:[%s235] sm:$0xff] %vm3683, %v5541
        %5581 = vst.msk [vmem:[%s235 + $0x8] sm:$0xff] %vm3683, %v5543
        %5582 = vst.msk [vmem:[%s235 + $0x10] sm:$0xff] %vm3683, %v5546
        %5583 = vst.msk [vmem:[%s235 + $0x18] sm:$0xff] %vm3683, %v5548
        %5584 = vst.msk [vmem:[%s235 + $0x20] sm:$0xff] %vm3683, %v5551
        %5585 = vst.msk [vmem:[%s235 + $0x28] sm:$0xff] %vm3683, %v5553
        %5586 = vst.msk [vmem:[%s235 + $0x30] sm:$0xff] %vm3683, %v5556
        %5587 = vst.msk [vmem:[%s235 + $0x38] sm:$0xff] %vm3683, %v5558
        %5588 = vst.msk [vmem:[%s235 + $0x40] sm:$0xff] %vm3683, %v5561
        %5589 = vst.msk [vmem:[%s235 + $0x48] sm:$0xff] %vm3683, %v5563
        %5590 = vst.msk [vmem:[%s235 + $0x50] sm:$0xff] %vm3683, %v5566
        %5591 = vst.msk [vmem:[%s235 + $0x58] sm:$0xff] %vm3683, %v5568
        %5592 = vst.msk [vmem:[%s235 + $0x60] sm:$0xff] %vm3683, %v5571
        %5593 = vst.msk [vmem:[%s235 + $0x68] sm:$0xff] %vm3683, %v5573
        %5594 = vst.msk [vmem:[%s235 + $0x70] sm:$0xff] %vm3683, %v5576
        %5595 = vst.msk [vmem:[%s235 + $0x78] sm:$0xff] %vm3683, %v5578
        %v5596 = vsel %vm3683, %v5541, 0.0
        %v5597 = vsel %vm3683, %v5543, 0.0
        %v5598 = vadd.f32 %v5596, %v5597
        %v5599 = vsel %vm3683, %v5546, 0.0
        %v5600 = vadd.f32 %v5598, %v5599
        %v5601 = vsel %vm3683, %v5548, 0.0
        %v5602 = vadd.f32 %v5600, %v5601
        %v5603 = vsel %vm3683, %v5551, 0.0
        %v5604 = vadd.f32 %v5602, %v5603
        %v5605 = vsel %vm3683, %v5553, 0.0
        %v5606 = vadd.f32 %v5604, %v5605
        %v5607 = vsel %vm3683, %v5556, 0.0
        %v5608 = vadd.f32 %v5606, %v5607
        %v5609 = vsel %vm3683, %v5558, 0.0
        %v5610 = vadd.f32 %v5608, %v5609
        %v5611 = vsel %vm3683, %v5561, 0.0
        %v5612 = vadd.f32 %v5610, %v5611
        %v5613 = vsel %vm3683, %v5563, 0.0
        %v5614 = vadd.f32 %v5612, %v5613
        %v5615 = vsel %vm3683, %v5566, 0.0
        %v5616 = vadd.f32 %v5614, %v5615
        %v5617 = vsel %vm3683, %v5568, 0.0
        %v5618 = vadd.f32 %v5616, %v5617
        %v5619 = vsel %vm3683, %v5571, 0.0
        %v5620 = vadd.f32 %v5618, %v5619
        %v5621 = vsel %vm3683, %v5573, 0.0
        %v5622 = vadd.f32 %v5620, %v5621
        %v5623 = vsel %vm3683, %v5576, 0.0
        %v5624 = vadd.f32 %v5622, %v5623
        %v5625 = vsel %vm3683, %v5578, 0.0
        %v5626 = vadd.f32 %v5624, %v5625
        %v5627 = vrot.slane %v5626, 4
        %v5628 = vadd.f32 %v5626, %v5627
        %v5629 = vrot.slane %v5628, 2
        %v5630 = vadd.f32 %v5628, %v5629
        %v5631 = vrot.slane %v5630, 1
        %v5632 = vadd.f32 %v5630, %v5631
        %v5633 = vmul.f32 %v5541, %v5541
        %v5634 = vmul.f32 %v5543, %v5543
        %v5635 = vmul.f32 %v5546, %v5546
        %v5636 = vmul.f32 %v5548, %v5548
        %v5637 = vmul.f32 %v5551, %v5551
        %v5638 = vmul.f32 %v5553, %v5553
        %v5639 = vmul.f32 %v5556, %v5556
        %v5640 = vmul.f32 %v5558, %v5558
        %v5641 = vmul.f32 %v5561, %v5561
        %v5642 = vmul.f32 %v5563, %v5563
        %v5643 = vmul.f32 %v5566, %v5566
        %v5644 = vmul.f32 %v5568, %v5568
        %v5645 = vmul.f32 %v5571, %v5571
        %v5646 = vmul.f32 %v5573, %v5573
        %v5647 = vmul.f32 %v5576, %v5576
        %v5648 = vmul.f32 %v5578, %v5578
        %v5649 = vsel %vm3683, %v5633, 0.0
        %v5650 = vsel %vm3683, %v5634, 0.0
        %v5651 = vadd.f32 %v5649, %v5650
        %v5652 = vsel %vm3683, %v5635, 0.0
        %v5653 = vadd.f32 %v5651, %v5652
        %v5654 = vsel %vm3683, %v5636, 0.0
        %v5655 = vadd.f32 %v5653, %v5654
        %v5656 = vsel %vm3683, %v5637, 0.0
        %v5657 = vadd.f32 %v5655, %v5656
        %v5658 = vsel %vm3683, %v5638, 0.0
        %v5659 = vadd.f32 %v5657, %v5658
        %v5660 = vsel %vm3683, %v5639, 0.0
        %v5661 = vadd.f32 %v5659, %v5660
        %v5662 = vsel %vm3683, %v5640, 0.0
        %v5663 = vadd.f32 %v5661, %v5662
        %v5664 = vsel %vm3683, %v5641, 0.0
        %v5665 = vadd.f32 %v5663, %v5664
        %v5666 = vsel %vm3683, %v5642, 0.0
        %v5667 = vadd.f32 %v5665, %v5666
        %v5668 = vsel %vm3683, %v5643, 0.0
        %v5669 = vadd.f32 %v5667, %v5668
        %v5670 = vsel %vm3683, %v5644, 0.0
        %v5671 = vadd.f32 %v5669, %v5670
        %v5672 = vsel %vm3683, %v5645, 0.0
        %v5673 = vadd.f32 %v5671, %v5672
        %v5674 = vsel %vm3683, %v5646, 0.0
        %v5675 = vadd.f32 %v5673, %v5674
        %v5676 = vsel %vm3683, %v5647, 0.0
        %v5677 = vadd.f32 %v5675, %v5676
        %v5678 = vsel %vm3683, %v5648, 0.0
        %v5679 = vadd.f32 %v5677, %v5678
        %v5680 = vrot.slane %v5679, 4
        %v5681 = vadd.f32 %v5679, %v5680
        %v5682 = vrot.slane %v5681, 2
        %v5683 = vadd.f32 %v5681, %v5682
        %v5684 = vrot.slane %v5683, 1
        %v5685 = vadd.f32 %v5683, %v5684
        %vm5686 = vcmask 1040384
        %v5687 = vsel %vm5686, %v5632, %v5685
        %vm5688 = vcmask 25600
        %5689 = vst.msk [vmem:[%s225] sm:$0x3] %vm5688, %v5687
        %p5690 = scmp.lt.s32.totalorder %s20, 1
        %s5691 = scalar_select %p5690, %s20, 1
        %s5692 = smul.addr %s5691, 16
        %s5693 = smul.addr %s5692, 8
        %s5694 = scalar_lea.vmem %s4, %s5693
        %s5695 = sand.u32 %s143, 1
        %s5696 = scalar_lea.sflag [#allocation4], %s5695
        %s5697 = sand.u32 %s143, 1
        %s5698 = smul.addr %s5697, 2
        %s5699 = scalar_lea.vmem [#allocation3], %s5698
        // Predicated region
        $region37: #{tpu_custom_call.1} parent=35 // pred_check
          %p5700 = pneg %p127
        $region38: #{tpu_custom_call.1} parent=35 // pred_check_branch
          %5702 = sbr.rel (%p5700) target = $region40
        $region39: #{tpu_custom_call.1} parent=35 // pred_region
          _
        $region40: #{tpu_custom_call.1} parent=35 // pred_fallthru
          _
        // Predicated region
        $region41: #{tpu_custom_call.1} parent=35 // pred_check
          %p5703 = pneg %p153
        $region42: #{tpu_custom_call.1} parent=35 // pred_check_branch
          %5705 = sbr.rel (%p5703) target = $region44
        $region43: #{tpu_custom_call.1} parent=35 // pred_region
          %5707 = vsyncadd %s5696, 0
          %s5708 = smul.addr %s20, 2
          %s5709 = scalar_lea.hbm %s5, %s5708
          %s5711 = sshll.u32 %s5699, 4
          %s5712 = int_to_ptr.vmem [resolvable:$true] %s5711
          %s5713 = sshll.u32 %s5709, 4
          %s5714 = int_to_ptr.hbm [resolvable:$true] %s5713
          %5716 = dma.vmem_to_hbm [thread:$0]  %s5712, 32, %s5714, %s5696
        $region44: #{tpu_custom_call.1} parent=35 // pred_fallthru
          _
      $region36: #{tpu_custom_call.1} parent=5 // pred_fallthru
        _
      %p5717 = scmp.le.s32.totalorder 2, %s15
      // Predicated region
      $region45: #{tpu_custom_call.1} parent=5 // pred_check
        %p5718 = pneg %p5717
      $region46: #{tpu_custom_call.1} parent=5 // pred_check_branch
        %5720 = sbr.rel (%p5718) target = $region48
      $region47: #{tpu_custom_call.1} parent=5 // pred_region
        %s5721 = ssub.s32 %s15, 2
        // Predicated region
        $region49: #{tpu_custom_call.1} parent=47 // pred_check
          %p5722 = pneg %p133
        $region50: #{tpu_custom_call.1} parent=47 // pred_check_branch
          %5724 = sbr.rel (%p5722) target = $region52
        $region51: #{tpu_custom_call.1} parent=47 // pred_region
          %p5725 = scmp.lt.s32.totalorder %s21, 1
          %s5726 = scalar_select %p5725, %s21, 1
          %s5727 = smul.addr %s5726, 16
          %s5728 = smul.addr %s5727, 8
          %s5729 = scalar_lea.vmem %s4, %s5728
        $region52: #{tpu_custom_call.1} parent=47 // pred_fallthru
          _
        // Predicated region
        $region53: #{tpu_custom_call.1} parent=47 // pred_check
          %p5730 = pneg %p159
        $region54: #{tpu_custom_call.1} parent=47 // pred_check_branch
          %5732 = sbr.rel (%p5730) target = $region56
        $region55: #{tpu_custom_call.1} parent=47 // pred_region
          %s5733 = sand.u32 %s144, 1
          %s5734 = scalar_lea.sflag [#allocation4], %s5733
          %s5735 = sand.u32 %s144, 1
          %s5736 = smul.addr %s5735, 2
          %s5737 = scalar_lea.vmem [#allocation3], %s5736
          %5739 = dma.done %s5734, 32
        $region56: #{tpu_custom_call.1} parent=47 // pred_fallthru
          _
      $region48: #{tpu_custom_call.1} parent=5 // pred_fallthru
        _
    $region6: #{tpu_custom_call.1} parent=1 // loop_footer
      %s19 = sadd.s32 1, %s15
    $region7: #{tpu_custom_call.1} parent=1 // loop_footer_branch
      %14 = sbr.rel target = $region3
    $region8: #{tpu_custom_call.1} parent=1 // loop_exit
      _
    %5740 = vsyncpa [#allocation4], 1
    %s5741 = scalar_lea.sflag [#allocation4], 1
    %5742 = vsyncpa %s5741, 1

</llo_original>
